<compile_context>
chip_gen: v7x
topology: tpu7x:2x2x1
jax: 0.10.0
libtpu: 0.0.40
codegen_flags: <defaults>
</compile_context>

<pallas_src>
import math
import functools

import jax
import jax.numpy as jnp
from jax import lax
from jax.experimental import pallas as pl
from jax.experimental.pallas import tpu as pltpu

_LANES = 128


# ---------------------------------------------------------------------------
# Fused whole-network kernel (single invocation, batch folded onto sublanes).
# ---------------------------------------------------------------------------

def _transformer_kernel(x_ref, slab_ref, o_ref, ctx_ref, *,
                        layout, num_layers, num_heads, d_qk, hidden_dim,
                        mlp_dim, input_dim, output_dim, batch, seqlen):
    B, S = batch, seqlen
    Dm, Dqk, Dmlp = hidden_dim, d_qk, mlp_dim
    H = num_heads
    Dh = Dqk // H           # qk head dim
    Dv = Dm // H            # v head dim
    scale = 1.0 / math.sqrt(Dh)

    def w(name, r, c):
        off = layout[name]                      # static Python int
        return slab_ref[off:off + r, :c]        # sublane-aligned static slice

    def layer_norm(z, g, b):
        mean = jnp.mean(z, axis=-1, keepdims=True)
        var = jnp.mean((z - mean) ** 2, axis=-1, keepdims=True)
        return (z - mean) * lax.rsqrt(var + 1e-5) * g + b

    # Hoisted causal additive mask (shared across layers / heads / batches).
    row = lax.broadcasted_iota(jnp.int32, (S, S), 0)
    col = lax.broadcasted_iota(jnp.int32, (S, S), 1)
    causal_bias = jnp.where(col > row, -10000.0, 0.0).astype(jnp.float32)

    x = x_ref[...]                              # (B*S, In) f32

    # Encoder: nn.Linear(input_dim, hidden_dim)
    h = jnp.dot(x, w("enc_w", input_dim, Dm),
                preferred_element_type=jnp.float32) + w("enc_b", 1, Dm)

    # Transformer blocks (statically unrolled; slab stays resident in VMEM).
    for l in range(num_layers):
        def p(name, r, c, _l=l):
            return w("l{}_{}".format(_l, name), r, c)

        lam = p("lambd", 1, 1)                  # (1,1) broadcast
        ln_g = p("ln_g", 1, Dm)
        ln_b = p("ln_b", 1, Dm)

        skip = lam * h
        hn = layer_norm(h, ln_g, ln_b)

        # Fused QK/V projection: one (16, 32) x (32, 96) matmul.
        qkv = (jnp.dot(hn, p("wqkv_w", Dm, 2 * Dqk + Dm),
                       preferred_element_type=jnp.float32)
               + p("wqkv_b", 1, 2 * Dqk + Dm))

        # Multi-head causal softmax attention, per batch element via
        # sublane-aligned row slices; head split via static lane slices
        # (matches rearrange '... (two h d) -> ... two h d').
        for b in range(B):
            qkv_b = qkv[b * S:(b + 1) * S, :]
            for hd in range(H):
                q_h = qkv_b[:, hd * Dh:(hd + 1) * Dh] * scale         # (S, Dh)
                k_h = qkv_b[:, Dqk + hd * Dh:Dqk + (hd + 1) * Dh]     # (S, Dh)
                v_h = qkv_b[:, 2 * Dqk + hd * Dv:2 * Dqk + (hd + 1) * Dv]

                # q . k^T without materializing a transpose.
                scores = lax.dot_general(q_h, k_h, (((1,), (1,)), ((), ())),
                                         preferred_element_type=jnp.float32)
                scores = scores + causal_bias
                scores = scores - jnp.max(scores, axis=-1, keepdims=True)
                pexp = jnp.exp(scores)
                attn = pexp * pl.reciprocal(
                    jnp.sum(pexp, axis=-1, keepdims=True), approx=True)
                # Write head output directly into the ctx scratch slab.
                ctx_ref[b * S:(b + 1) * S, hd * Dv:(hd + 1) * Dv] = jnp.dot(
                    attn, v_h, preferred_element_type=jnp.float32)

        attn_out = (jnp.dot(ctx_ref[...], p("out_w", Dm, Dm),
                            preferred_element_type=jnp.float32)
                    + p("out_b", 1, Dm))
        xr = attn_out + skip                    # dropout = 0

        # MLP (assumed Linear -> GELU -> Linear); the block has a single
        # self.norm, so the same LN params are used for both normalizations
        # (this matches the reference TransformerBlock exactly).
        y = layer_norm(xr, ln_g, ln_b)
        y = jnp.dot(y, p("fc1_w", Dm, Dmlp),
                    preferred_element_type=jnp.float32) + p("fc1_b", 1, Dmlp)
        y = jax.nn.gelu(y)
        y = jnp.dot(y, p("fc2_w", Dmlp, Dm),
                    preferred_element_type=jnp.float32) + p("fc2_b", 1, Dm)
        h = xr + y

    # Final LayerNorm + decoder
    h = layer_norm(h, w("fin_g", 1, Dm), w("fin_b", 1, Dm))
    logits = (jnp.dot(h, w("dec_w", Dm, output_dim),
                      preferred_element_type=jnp.float32)
              + w("dec_b", 1, output_dim))

    # torch.softmax(x, dim=1): softmax over the sequence axis, per batch
    # element (static, sublane-aligned row slices).  Exact reciprocal here so
    # each column sums to 1 to float precision.
    for b in range(B):
        lb = logits[b * S:(b + 1) * S, :]
        m = jnp.max(lb, axis=0, keepdims=True)
        e = jnp.exp(lb - m)
        o_ref[b * S:(b + 1) * S, :] = (
            e * pl.reciprocal(jnp.sum(e, axis=0, keepdims=True), approx=False)
        ).astype(o_ref.dtype)


# ---------------------------------------------------------------------------
# Host-side parameter packing: one pre-padded (rows%8==0, 128-lane) f32 slab.
# ---------------------------------------------------------------------------

def _pack_params(params, cfg):
    entries = []

    def add(name, arr2d):
        entries.append((name, jnp.asarray(arr2d, jnp.float32)))

    add("enc_w", params["encoder"]["w"])
    add("enc_b", params["encoder"]["b"].reshape(1, -1))
    for l, bp in enumerate(params["blocks"]):
        wqkv = jnp.concatenate([bp["Wqk"]["w"], bp["Wv"]["w"]], axis=1)
        bqkv = jnp.concatenate([bp["Wqk"]["b"], bp["Wv"]["b"]]).reshape(1, -1)
        add("l{}_wqkv_w".format(l), wqkv)
        add("l{}_wqkv_b".format(l), bqkv)
        add("l{}_out_w".format(l), bp["out_proj"]["w"])
        add("l{}_out_b".format(l), bp["out_proj"]["b"].reshape(1, -1))
        add("l{}_fc1_w".format(l), bp["mlp_fc1"]["w"])
        add("l{}_fc1_b".format(l), bp["mlp_fc1"]["b"].reshape(1, -1))
        add("l{}_fc2_w".format(l), bp["mlp_fc2"]["w"])
        add("l{}_fc2_b".format(l), bp["mlp_fc2"]["b"].reshape(1, -1))
        add("l{}_ln_g".format(l), bp["ln_gamma"].reshape(1, -1))
        add("l{}_ln_b".format(l), bp["ln_beta"].reshape(1, -1))
        add("l{}_lambd".format(l), bp["lambd"].reshape(1, 1))
    add("fin_g", params["final_ln_gamma"].reshape(1, -1))
    add("fin_b", params["final_ln_beta"].reshape(1, -1))
    add("dec_w", params["decoder"]["w"])
    add("dec_b", params["decoder"]["b"].reshape(1, -1))

    layout = {}
    pieces = []
    off = 0
    for name, arr in entries:
        r, c = arr.shape
        assert c <= _LANES, "param {} too wide for 128-lane slab".format(name)
        r_pad = ((r + 7) // 8) * 8
        piece = jnp.zeros((r_pad, _LANES), jnp.float32).at[:r, :c].set(arr)
        layout[name] = off
        pieces.append(piece)
        off += r_pad
    slab = jnp.concatenate(pieces, axis=0)
    return slab, layout


def transformer_forward(params, x, cfg):
    B, S, In = x.shape
    Dm = cfg["hidden_dim"]
    Out = cfg["output_dim"]

    slab, layout = _pack_params(params, cfg)
    x2 = x.reshape(B * S, In).astype(jnp.float32)

    kernel = functools.partial(
        _transformer_kernel,
        layout=layout,
        num_layers=cfg["num_layers"],
        num_heads=cfg["num_heads"],
        d_qk=cfg["state_dim"],
        hidden_dim=Dm,
        mlp_dim=cfg["mlp_dim"],
        input_dim=In,
        output_dim=Out,
        batch=B,
        seqlen=S,
    )

    out2 = pl.pallas_call(
        kernel,
        out_shape=jax.ShapeDtypeStruct((B * S, Out), jnp.float32),
        in_specs=[
            pl.BlockSpec(memory_space=pltpu.MemorySpace.VMEM),   # x (whole)
            pl.BlockSpec(memory_space=pltpu.MemorySpace.VMEM),   # packed slab
        ],
        out_specs=pl.BlockSpec(memory_space=pltpu.MemorySpace.VMEM),
        scratch_shapes=[pltpu.VMEM((B * S, Dm), jnp.float32)],   # ctx buffer
    )(x2, slab)

    return out2.reshape(B, S, Out).astype(x.dtype)


# ---------------------------------------------------------------------------
# Parameter initialization (deterministic, mimics nn.Linear / nn.LayerNorm)
# ---------------------------------------------------------------------------

def init_linear_params(key, in_f, out_f):
    kw, kb = jax.random.split(key)
    bound = 1.0 / math.sqrt(in_f)
    w = jax.random.uniform(kw, (in_f, out_f), jnp.float32, -bound, bound)
    b = jax.random.uniform(kb, (out_f,), jnp.float32, -bound, bound)
    return {"w": w, "b": b}


def init_block_params(key, hidden_dim, d_qk, mlp_dim):
    ks = jax.random.split(key, 6)
    return {
        "Wqk": init_linear_params(ks[0], hidden_dim, 2 * d_qk),
        "Wv": init_linear_params(ks[1], hidden_dim, hidden_dim),
        "out_proj": init_linear_params(ks[2], hidden_dim, hidden_dim),
        "mlp_fc1": init_linear_params(ks[3], hidden_dim, mlp_dim),
        "mlp_fc2": init_linear_params(ks[4], mlp_dim, hidden_dim),
        "ln_gamma": jnp.ones((hidden_dim,), jnp.float32),
        "ln_beta": jnp.zeros((hidden_dim,), jnp.float32),
        "lambd": jnp.ones((1,), jnp.float32),
    }


def init_transformer_params(key, cfg):
    ks = jax.random.split(key, cfg["num_layers"] + 2)
    return {
        "encoder": init_linear_params(ks[0], cfg["input_dim"], cfg["hidden_dim"]),
        "blocks": [
            init_block_params(ks[1 + i], cfg["hidden_dim"], cfg["state_dim"],
                              cfg["mlp_dim"])
            for i in range(cfg["num_layers"])
        ],
        "decoder": init_linear_params(ks[-1], cfg["hidden_dim"], cfg["output_dim"]),
        "final_ln_gamma": jnp.ones((cfg["hidden_dim"],), jnp.float32),
        "final_ln_beta": jnp.zeros((cfg["hidden_dim"],), jnp.float32),
    }


# ---------------------------------------------------------------------------

if __name__ == "__main__":
    cfg = {
        "input_dim": 4,
        "output_dim": 4,
        "num_layers": 2,
        "hidden_dim": 32,
        "state_dim": 32,      # d_qk
        "num_heads": 2,
        "mlp_dim": 64,
        "attention_fn": "sm-attention",
        "norm": "layer",
        "dropout": 0.0,
        "att_dropout": 0.0,
    }

    key = jax.random.PRNGKey(0)
    k_params, k_x = jax.random.split(key)
    params = init_transformer_params(k_params, cfg)

    B, S = 2, 8
    x = jax.random.normal(k_x, (B, S, cfg["input_dim"]), jnp.float32)

    out = transformer_forward(params, x, cfg)
    out = jax.block_until_ready(out)

    assert out.shape == (B, S, cfg["output_dim"])
    # torch.softmax(x, dim=1): each (b, :, o) column sums to 1 over the sequence.
    assert jnp.allclose(jnp.sum(out, axis=1), 1.0, atol=1e-5)
    assert bool(jnp.all(jnp.isfinite(out)))
    print("KERNEL_OK")
</pallas_src>

<mosaic_0001>
module attributes {stable_mosaic.version = 11 : i64} {
  func.func @_transformer_kernel(%arg0: memref<16x4xf32, #tpu.memory_space<vmem>>, %arg1: memref<504x128xf32, #tpu.memory_space<vmem>>, %arg2: memref<16x4xf32, #tpu.memory_space<vmem>>, %arg3: memref<16x32xf32, #tpu.memory_space<vmem>>) attributes {dimension_semantics = [], scalar_prefetch = 0 : i64, scratch_operands = 1 : i64, tpu.core_type = #tpu.core_type<tc>} {
    %0 = tpu.iota {dimensions = array<i32: 0>} : vector<8x8xi32>
    %1 = tpu.iota {dimensions = array<i32: 1>} : vector<8x8xi32>
    %2 = arith.cmpi sgt, %1, %0 : vector<8x8xi32>
    %cst = arith.constant -1.000000e+04 : f32
    %cst_0 = arith.constant 0.000000e+00 : f32
    %3 = vector.broadcast %cst : f32 to vector<8x8xf32>
    %4 = vector.broadcast %cst_0 : f32 to vector<8x8xf32>
    %5 = arith.select %2, %3, %4 : vector<8x8xi1>, vector<8x8xf32>
    %c0 = arith.constant 0 : index
    %c0_1 = arith.constant 0 : index
    %6 = vector.load %arg0[%c0, %c0_1] : memref<16x4xf32, #tpu.memory_space<vmem>>, vector<16x4xf32>
    %c0_2 = arith.constant 0 : index
    %c0_3 = arith.constant 0 : index
    %7 = vector.load %arg1[%c0_2, %c0_3] : memref<504x128xf32, #tpu.memory_space<vmem>>, vector<4x32xf32>
    %cst_4 = arith.constant dense<0.000000e+00> : vector<16x32xf32>
    %8 = tpu.matmul %6, %7, %cst_4 {dimension_numbers = #tpu.dot_dimension_numbers<[1], [0], [0], [1], [0, 0, 1, 1], [], []>} : vector<16x4xf32>, vector<4x32xf32>, vector<16x32xf32> -> vector<16x32xf32>
    %c8 = arith.constant 8 : index
    %c0_5 = arith.constant 0 : index
    %9 = vector.load %arg1[%c8, %c0_5] : memref<504x128xf32, #tpu.memory_space<vmem>>, vector<1x32xf32>
    %10 = vector.broadcast %9 : vector<1x32xf32> to vector<16x32xf32>
    %11 = arith.addf %8, %10 : vector<16x32xf32>
    %c224 = arith.constant 224 : index
    %c0_6 = arith.constant 0 : index
    %12 = vector.load %arg1[%c224, %c0_6] : memref<504x128xf32, #tpu.memory_space<vmem>>, vector<1x1xf32>
    %c208 = arith.constant 208 : index
    %c0_7 = arith.constant 0 : index
    %13 = vector.load %arg1[%c208, %c0_7] : memref<504x128xf32, #tpu.memory_space<vmem>>, vector<1x32xf32>
    %c216 = arith.constant 216 : index
    %c0_8 = arith.constant 0 : index
    %14 = vector.load %arg1[%c216, %c0_8] : memref<504x128xf32, #tpu.memory_space<vmem>>, vector<1x32xf32>
    %15 = vector.broadcast %12 : vector<1x1xf32> to vector<16x32xf32>
    %16 = arith.mulf %15, %11 : vector<16x32xf32>
    %cst_9 = arith.constant dense<0.000000e+00> : vector<16xf32>
    %17 = vector.multi_reduction <add>, %11, %cst_9 [1] : vector<16x32xf32> to vector<16xf32>
    %18 = vector.shape_cast %17 : vector<16xf32> to vector<16x1xf32>
    %cst_10 = arith.constant 3.200000e+01 : f32
    %19 = vector.broadcast %cst_10 : f32 to vector<16x1xf32>
    %20 = arith.divf %18, %19 : vector<16x1xf32>
    %21 = vector.broadcast %20 : vector<16x1xf32> to vector<16x32xf32>
    %22 = arith.subf %11, %21 : vector<16x32xf32>
    %23 = arith.mulf %22, %22 : vector<16x32xf32>
    %cst_11 = arith.constant dense<0.000000e+00> : vector<16xf32>
    %24 = vector.multi_reduction <add>, %23, %cst_11 [1] : vector<16x32xf32> to vector<16xf32>
    %25 = vector.shape_cast %24 : vector<16xf32> to vector<16x1xf32>
    %cst_12 = arith.constant 3.200000e+01 : f32
    %26 = vector.broadcast %cst_12 : f32 to vector<16x1xf32>
    %27 = arith.divf %25, %26 : vector<16x1xf32>
    %28 = vector.broadcast %20 : vector<16x1xf32> to vector<16x32xf32>
    %29 = arith.subf %11, %28 : vector<16x32xf32>
    %cst_13 = arith.constant 9.99999974E-6 : f32
    %30 = vector.broadcast %cst_13 : f32 to vector<16x1xf32>
    %31 = arith.addf %27, %30 : vector<16x1xf32>
    %32 = math.rsqrt %31 : vector<16x1xf32>
    %33 = vector.broadcast %32 : vector<16x1xf32> to vector<16x32xf32>
    %34 = arith.mulf %29, %33 : vector<16x32xf32>
    %35 = vector.broadcast %13 : vector<1x32xf32> to vector<16x32xf32>
    %36 = arith.mulf %34, %35 : vector<16x32xf32>
    %37 = vector.broadcast %14 : vector<1x32xf32> to vector<16x32xf32>
    %38 = arith.addf %36, %37 : vector<16x32xf32>
    %c16 = arith.constant 16 : index
    %c0_14 = arith.constant 0 : index
    %39 = vector.load %arg1[%c16, %c0_14] : memref<504x128xf32, #tpu.memory_space<vmem>>, vector<32x96xf32>
    %cst_15 = arith.constant dense<0.000000e+00> : vector<16x96xf32>
    %40 = tpu.matmul %38, %39, %cst_15 {dimension_numbers = #tpu.dot_dimension_numbers<[1], [0], [0], [1], [0, 0, 1, 1], [], []>} : vector<16x32xf32>, vector<32x96xf32>, vector<16x96xf32> -> vector<16x96xf32>
    %c48 = arith.constant 48 : index
    %c0_16 = arith.constant 0 : index
    %41 = vector.load %arg1[%c48, %c0_16] : memref<504x128xf32, #tpu.memory_space<vmem>>, vector<1x96xf32>
    %42 = vector.broadcast %41 : vector<1x96xf32> to vector<16x96xf32>
    %43 = arith.addf %40, %42 : vector<16x96xf32>
    %44 = vector.extract_strided_slice %43 {offsets = [0, 0], sizes = [8, 96], strides = [1, 1]} : vector<16x96xf32> to vector<8x96xf32>
    %45 = vector.extract_strided_slice %44 {offsets = [0, 0], sizes = [8, 16], strides = [1, 1]} : vector<8x96xf32> to vector<8x16xf32>
    %cst_17 = arith.constant 2.500000e-01 : f32
    %46 = vector.broadcast %cst_17 : f32 to vector<8x16xf32>
    %47 = arith.mulf %45, %46 : vector<8x16xf32>
    %48 = vector.extract_strided_slice %44 {offsets = [0, 32], sizes = [8, 16], strides = [1, 1]} : vector<8x96xf32> to vector<8x16xf32>
    %49 = vector.extract_strided_slice %44 {offsets = [0, 64], sizes = [8, 16], strides = [1, 1]} : vector<8x96xf32> to vector<8x16xf32>
    %cst_18 = arith.constant dense<0.000000e+00> : vector<8x8xf32>
    %50 = tpu.matmul %47, %48, %cst_18 {dimension_numbers = #tpu.dot_dimension_numbers<[1], [1], [0], [0], [0, 0, 1, 0], [], []>} : vector<8x16xf32>, vector<8x16xf32>, vector<8x8xf32> -> vector<8x8xf32>
    %51 = arith.addf %50, %5 : vector<8x8xf32>
    %cst_19 = arith.constant dense<0xFF800000> : vector<8xf32>
    %52 = vector.multi_reduction <maximumf>, %51, %cst_19 [1] : vector<8x8xf32> to vector<8xf32>
    %53 = vector.shape_cast %52 : vector<8xf32> to vector<8x1xf32>
    %54 = vector.broadcast %53 : vector<8x1xf32> to vector<8x8xf32>
    %55 = arith.subf %51, %54 : vector<8x8xf32>
    %56 = math.exp %55 : vector<8x8xf32>
    %cst_20 = arith.constant dense<0.000000e+00> : vector<8xf32>
    %57 = vector.multi_reduction <add>, %56, %cst_20 [1] : vector<8x8xf32> to vector<8xf32>
    %58 = vector.shape_cast %57 : vector<8xf32> to vector<8x1xf32>
    %59 = tpu.reciprocal %58 {approx = true} : vector<8x1xf32> -> vector<8x1xf32>
    %60 = vector.broadcast %59 : vector<8x1xf32> to vector<8x8xf32>
    %61 = arith.mulf %56, %60 : vector<8x8xf32>
    %cst_21 = arith.constant dense<0.000000e+00> : vector<8x16xf32>
    %62 = tpu.matmul %61, %49, %cst_21 {dimension_numbers = #tpu.dot_dimension_numbers<[1], [0], [0], [1], [0, 0, 1, 1], [], []>} : vector<8x8xf32>, vector<8x16xf32>, vector<8x16xf32> -> vector<8x16xf32>
    %c0_22 = arith.constant 0 : index
    %c0_23 = arith.constant 0 : index
    %63 = vector.load %arg3[%c0_22, %c0_23] : memref<16x32xf32, #tpu.memory_space<vmem>>, vector<8x16xf32>
    tpu.vector_store %arg3[%c0_22, %c0_23], %62 {strides = array<i32>} : memref<16x32xf32, #tpu.memory_space<vmem>>, vector<8x16xf32>,
    %64 = vector.extract_strided_slice %44 {offsets = [0, 16], sizes = [8, 16], strides = [1, 1]} : vector<8x96xf32> to vector<8x16xf32>
    %cst_24 = arith.constant 2.500000e-01 : f32
    %65 = vector.broadcast %cst_24 : f32 to vector<8x16xf32>
    %66 = arith.mulf %64, %65 : vector<8x16xf32>
    %67 = vector.extract_strided_slice %44 {offsets = [0, 48], sizes = [8, 16], strides = [1, 1]} : vector<8x96xf32> to vector<8x16xf32>
    %68 = vector.extract_strided_slice %44 {offsets = [0, 80], sizes = [8, 16], strides = [1, 1]} : vector<8x96xf32> to vector<8x16xf32>
    %cst_25 = arith.constant dense<0.000000e+00> : vector<8x8xf32>
    %69 = tpu.matmul %66, %67, %cst_25 {dimension_numbers = #tpu.dot_dimension_numbers<[1], [1], [0], [0], [0, 0, 1, 0], [], []>} : vector<8x16xf32>, vector<8x16xf32>, vector<8x8xf32> -> vector<8x8xf32>
    %70 = arith.addf %69, %5 : vector<8x8xf32>
    %cst_26 = arith.constant dense<0xFF800000> : vector<8xf32>
    %71 = vector.multi_reduction <maximumf>, %70, %cst_26 [1] : vector<8x8xf32> to vector<8xf32>
    %72 = vector.shape_cast %71 : vector<8xf32> to vector<8x1xf32>
    %73 = vector.broadcast %72 : vector<8x1xf32> to vector<8x8xf32>
    %74 = arith.subf %70, %73 : vector<8x8xf32>
    %75 = math.exp %74 : vector<8x8xf32>
    %cst_27 = arith.constant dense<0.000000e+00> : vector<8xf32>
    %76 = vector.multi_reduction <add>, %75, %cst_27 [1] : vector<8x8xf32> to vector<8xf32>
    %77 = vector.shape_cast %76 : vector<8xf32> to vector<8x1xf32>
    %78 = tpu.reciprocal %77 {approx = true} : vector<8x1xf32> -> vector<8x1xf32>
    %79 = vector.broadcast %78 : vector<8x1xf32> to vector<8x8xf32>
    %80 = arith.mulf %75, %79 : vector<8x8xf32>
    %cst_28 = arith.constant dense<0.000000e+00> : vector<8x16xf32>
    %81 = tpu.matmul %80, %68, %cst_28 {dimension_numbers = #tpu.dot_dimension_numbers<[1], [0], [0], [1], [0, 0, 1, 1], [], []>} : vector<8x8xf32>, vector<8x16xf32>, vector<8x16xf32> -> vector<8x16xf32>
    %c0_29 = arith.constant 0 : index
    %c16_30 = arith.constant 16 : index
    %82 = vector.load %arg3[%c0_29, %c16_30] : memref<16x32xf32, #tpu.memory_space<vmem>>, vector<8x16xf32>
    tpu.vector_store %arg3[%c0_29, %c16_30], %81 {strides = array<i32>} : memref<16x32xf32, #tpu.memory_space<vmem>>, vector<8x16xf32>,
    %83 = vector.extract_strided_slice %43 {offsets = [8, 0], sizes = [8, 96], strides = [1, 1]} : vector<16x96xf32> to vector<8x96xf32>
    %84 = vector.extract_strided_slice %83 {offsets = [0, 0], sizes = [8, 16], strides = [1, 1]} : vector<8x96xf32> to vector<8x16xf32>
    %cst_31 = arith.constant 2.500000e-01 : f32
    %85 = vector.broadcast %cst_31 : f32 to vector<8x16xf32>
    %86 = arith.mulf %84, %85 : vector<8x16xf32>
    %87 = vector.extract_strided_slice %83 {offsets = [0, 32], sizes = [8, 16], strides = [1, 1]} : vector<8x96xf32> to vector<8x16xf32>
    %88 = vector.extract_strided_slice %83 {offsets = [0, 64], sizes = [8, 16], strides = [1, 1]} : vector<8x96xf32> to vector<8x16xf32>
    %cst_32 = arith.constant dense<0.000000e+00> : vector<8x8xf32>
    %89 = tpu.matmul %86, %87, %cst_32 {dimension_numbers = #tpu.dot_dimension_numbers<[1], [1], [0], [0], [0, 0, 1, 0], [], []>} : vector<8x16xf32>, vector<8x16xf32>, vector<8x8xf32> -> vector<8x8xf32>
    %90 = arith.addf %89, %5 : vector<8x8xf32>
    %cst_33 = arith.constant dense<0xFF800000> : vector<8xf32>
    %91 = vector.multi_reduction <maximumf>, %90, %cst_33 [1] : vector<8x8xf32> to vector<8xf32>
    %92 = vector.shape_cast %91 : vector<8xf32> to vector<8x1xf32>
    %93 = vector.broadcast %92 : vector<8x1xf32> to vector<8x8xf32>
    %94 = arith.subf %90, %93 : vector<8x8xf32>
    %95 = math.exp %94 : vector<8x8xf32>
    %cst_34 = arith.constant dense<0.000000e+00> : vector<8xf32>
    %96 = vector.multi_reduction <add>, %95, %cst_34 [1] : vector<8x8xf32> to vector<8xf32>
    %97 = vector.shape_cast %96 : vector<8xf32> to vector<8x1xf32>
    %98 = tpu.reciprocal %97 {approx = true} : vector<8x1xf32> -> vector<8x1xf32>
    %99 = vector.broadcast %98 : vector<8x1xf32> to vector<8x8xf32>
    %100 = arith.mulf %95, %99 : vector<8x8xf32>
    %cst_35 = arith.constant dense<0.000000e+00> : vector<8x16xf32>
    %101 = tpu.matmul %100, %88, %cst_35 {dimension_numbers = #tpu.dot_dimension_numbers<[1], [0], [0], [1], [0, 0, 1, 1], [], []>} : vector<8x8xf32>, vector<8x16xf32>, vector<8x16xf32> -> vector<8x16xf32>
    %c8_36 = arith.constant 8 : index
    %c0_37 = arith.constant 0 : index
    %102 = vector.load %arg3[%c8_36, %c0_37] : memref<16x32xf32, #tpu.memory_space<vmem>>, vector<8x16xf32>
    tpu.vector_store %arg3[%c8_36, %c0_37], %101 {strides = array<i32>} : memref<16x32xf32, #tpu.memory_space<vmem>>, vector<8x16xf32>,
    %103 = vector.extract_strided_slice %83 {offsets = [0, 16], sizes = [8, 16], strides = [1, 1]} : vector<8x96xf32> to vector<8x16xf32>
    %cst_38 = arith.constant 2.500000e-01 : f32
    %104 = vector.broadcast %cst_38 : f32 to vector<8x16xf32>
    %105 = arith.mulf %103, %104 : vector<8x16xf32>
    %106 = vector.extract_strided_slice %83 {offsets = [0, 48], sizes = [8, 16], strides = [1, 1]} : vector<8x96xf32> to vector<8x16xf32>
    %107 = vector.extract_strided_slice %83 {offsets = [0, 80], sizes = [8, 16], strides = [1, 1]} : vector<8x96xf32> to vector<8x16xf32>
    %cst_39 = arith.constant dense<0.000000e+00> : vector<8x8xf32>
    %108 = tpu.matmul %105, %106, %cst_39 {dimension_numbers = #tpu.dot_dimension_numbers<[1], [1], [0], [0], [0, 0, 1, 0], [], []>} : vector<8x16xf32>, vector<8x16xf32>, vector<8x8xf32> -> vector<8x8xf32>
    %109 = arith.addf %108, %5 : vector<8x8xf32>
    %cst_40 = arith.constant dense<0xFF800000> : vector<8xf32>
    %110 = vector.multi_reduction <maximumf>, %109, %cst_40 [1] : vector<8x8xf32> to vector<8xf32>
    %111 = vector.shape_cast %110 : vector<8xf32> to vector<8x1xf32>
    %112 = vector.broadcast %111 : vector<8x1xf32> to vector<8x8xf32>
    %113 = arith.subf %109, %112 : vector<8x8xf32>
    %114 = math.exp %113 : vector<8x8xf32>
    %cst_41 = arith.constant dense<0.000000e+00> : vector<8xf32>
    %115 = vector.multi_reduction <add>, %114, %cst_41 [1] : vector<8x8xf32> to vector<8xf32>
    %116 = vector.shape_cast %115 : vector<8xf32> to vector<8x1xf32>
    %117 = tpu.reciprocal %116 {approx = true} : vector<8x1xf32> -> vector<8x1xf32>
    %118 = vector.broadcast %117 : vector<8x1xf32> to vector<8x8xf32>
    %119 = arith.mulf %114, %118 : vector<8x8xf32>
    %cst_42 = arith.constant dense<0.000000e+00> : vector<8x16xf32>
    %120 = tpu.matmul %119, %107, %cst_42 {dimension_numbers = #tpu.dot_dimension_numbers<[1], [0], [0], [1], [0, 0, 1, 1], [], []>} : vector<8x8xf32>, vector<8x16xf32>, vector<8x16xf32> -> vector<8x16xf32>
    %c8_43 = arith.constant 8 : index
    %c16_44 = arith.constant 16 : index
    %121 = vector.load %arg3[%c8_43, %c16_44] : memref<16x32xf32, #tpu.memory_space<vmem>>, vector<8x16xf32>
    tpu.vector_store %arg3[%c8_43, %c16_44], %120 {strides = array<i32>} : memref<16x32xf32, #tpu.memory_space<vmem>>, vector<8x16xf32>,
    %c0_45 = arith.constant 0 : index
    %c0_46 = arith.constant 0 : index
    %122 = vector.load %arg3[%c0_45, %c0_46] : memref<16x32xf32, #tpu.memory_space<vmem>>, vector<16x32xf32>
    %c56 = arith.constant 56 : index
    %c0_47 = arith.constant 0 : index
    %123 = vector.load %arg1[%c56, %c0_47] : memref<504x128xf32, #tpu.memory_space<vmem>>, vector<32x32xf32>
    %cst_48 = arith.constant dense<0.000000e+00> : vector<16x32xf32>
    %124 = tpu.matmul %122, %123, %cst_48 {dimension_numbers = #tpu.dot_dimension_numbers<[1], [0], [0], [1], [0, 0, 1, 1], [], []>} : vector<16x32xf32>, vector<32x32xf32>, vector<16x32xf32> -> vector<16x32xf32>
    %c88 = arith.constant 88 : index
    %c0_49 = arith.constant 0 : index
    %125 = vector.load %arg1[%c88, %c0_49] : memref<504x128xf32, #tpu.memory_space<vmem>>, vector<1x32xf32>
    %126 = vector.broadcast %125 : vector<1x32xf32> to vector<16x32xf32>
    %127 = arith.addf %124, %126 : vector<16x32xf32>
    %128 = arith.addf %127, %16 : vector<16x32xf32>
    %cst_50 = arith.constant dense<0.000000e+00> : vector<16xf32>
    %129 = vector.multi_reduction <add>, %128, %cst_50 [1] : vector<16x32xf32> to vector<16xf32>
    %130 = vector.shape_cast %129 : vector<16xf32> to vector<16x1xf32>
    %cst_51 = arith.constant 3.200000e+01 : f32
    %131 = vector.broadcast %cst_51 : f32 to vector<16x1xf32>
    %132 = arith.divf %130, %131 : vector<16x1xf32>
    %133 = vector.broadcast %132 : vector<16x1xf32> to vector<16x32xf32>
    %134 = arith.subf %128, %133 : vector<16x32xf32>
    %135 = arith.mulf %134, %134 : vector<16x32xf32>
    %cst_52 = arith.constant dense<0.000000e+00> : vector<16xf32>
    %136 = vector.multi_reduction <add>, %135, %cst_52 [1] : vector<16x32xf32> to vector<16xf32>
    %137 = vector.shape_cast %136 : vector<16xf32> to vector<16x1xf32>
    %cst_53 = arith.constant 3.200000e+01 : f32
    %138 = vector.broadcast %cst_53 : f32 to vector<16x1xf32>
    %139 = arith.divf %137, %138 : vector<16x1xf32>
    %140 = vector.broadcast %132 : vector<16x1xf32> to vector<16x32xf32>
    %141 = arith.subf %128, %140 : vector<16x32xf32>
    %cst_54 = arith.constant 9.99999974E-6 : f32
    %142 = vector.broadcast %cst_54 : f32 to vector<16x1xf32>
    %143 = arith.addf %139, %142 : vector<16x1xf32>
    %144 = math.rsqrt %143 : vector<16x1xf32>
    %145 = vector.broadcast %144 : vector<16x1xf32> to vector<16x32xf32>
    %146 = arith.mulf %141, %145 : vector<16x32xf32>
    %147 = vector.broadcast %13 : vector<1x32xf32> to vector<16x32xf32>
    %148 = arith.mulf %146, %147 : vector<16x32xf32>
    %149 = vector.broadcast %14 : vector<1x32xf32> to vector<16x32xf32>
    %150 = arith.addf %148, %149 : vector<16x32xf32>
    %c96 = arith.constant 96 : index
    %c0_55 = arith.constant 0 : index
    %151 = vector.load %arg1[%c96, %c0_55] : memref<504x128xf32, #tpu.memory_space<vmem>>, vector<32x64xf32>
    %cst_56 = arith.constant dense<0.000000e+00> : vector<16x64xf32>
    %152 = tpu.matmul %150, %151, %cst_56 {dimension_numbers = #tpu.dot_dimension_numbers<[1], [0], [0], [1], [0, 0, 1, 1], [], []>} : vector<16x32xf32>, vector<32x64xf32>, vector<16x64xf32> -> vector<16x64xf32>
    %c128 = arith.constant 128 : index
    %c0_57 = arith.constant 0 : index
    %153 = vector.load %arg1[%c128, %c0_57] : memref<504x128xf32, #tpu.memory_space<vmem>>, vector<1x64xf32>
    %154 = vector.broadcast %153 : vector<1x64xf32> to vector<16x64xf32>
    %155 = arith.addf %152, %154 : vector<16x64xf32>
    %156 = arith.mulf %155, %155 : vector<16x64xf32>
    %157 = arith.mulf %155, %156 : vector<16x64xf32>
    %cst_58 = arith.constant 4.471500e-02 : f32
    %158 = vector.broadcast %cst_58 : f32 to vector<16x64xf32>
    %159 = arith.mulf %158, %157 : vector<16x64xf32>
    %160 = arith.addf %155, %159 : vector<16x64xf32>
    %cst_59 = arith.constant 0.797884583 : f32
    %161 = vector.broadcast %cst_59 : f32 to vector<16x64xf32>
    %162 = arith.mulf %161, %160 : vector<16x64xf32>
    %163 = math.tanh %162 : vector<16x64xf32>
    %cst_60 = arith.constant 1.000000e+00 : f32
    %164 = vector.broadcast %cst_60 : f32 to vector<16x64xf32>
    %165 = arith.addf %164, %163 : vector<16x64xf32>
    %cst_61 = arith.constant 5.000000e-01 : f32
    %166 = vector.broadcast %cst_61 : f32 to vector<16x64xf32>
    %167 = arith.mulf %166, %165 : vector<16x64xf32>
    %168 = arith.mulf %155, %167 : vector<16x64xf32>
    %c136 = arith.constant 136 : index
    %c0_62 = arith.constant 0 : index
    %169 = vector.load %arg1[%c136, %c0_62] : memref<504x128xf32, #tpu.memory_space<vmem>>, vector<64x32xf32>
    %cst_63 = arith.constant dense<0.000000e+00> : vector<16x32xf32>
    %170 = tpu.matmul %168, %169, %cst_63 {dimension_numbers = #tpu.dot_dimension_numbers<[1], [0], [0], [1], [0, 0, 1, 1], [], []>} : vector<16x64xf32>, vector<64x32xf32>, vector<16x32xf32> -> vector<16x32xf32>
    %c200 = arith.constant 200 : index
    %c0_64 = arith.constant 0 : index
    %171 = vector.load %arg1[%c200, %c0_64] : memref<504x128xf32, #tpu.memory_space<vmem>>, vector<1x32xf32>
    %172 = vector.broadcast %171 : vector<1x32xf32> to vector<16x32xf32>
    %173 = arith.addf %170, %172 : vector<16x32xf32>
    %174 = arith.addf %128, %173 : vector<16x32xf32>
    %c440 = arith.constant 440 : index
    %c0_65 = arith.constant 0 : index
    %175 = vector.load %arg1[%c440, %c0_65] : memref<504x128xf32, #tpu.memory_space<vmem>>, vector<1x1xf32>
    %c424 = arith.constant 424 : index
    %c0_66 = arith.constant 0 : index
    %176 = vector.load %arg1[%c424, %c0_66] : memref<504x128xf32, #tpu.memory_space<vmem>>, vector<1x32xf32>
    %c432 = arith.constant 432 : index
    %c0_67 = arith.constant 0 : index
    %177 = vector.load %arg1[%c432, %c0_67] : memref<504x128xf32, #tpu.memory_space<vmem>>, vector<1x32xf32>
    %178 = vector.broadcast %175 : vector<1x1xf32> to vector<16x32xf32>
    %179 = arith.mulf %178, %174 : vector<16x32xf32>
    %cst_68 = arith.constant dense<0.000000e+00> : vector<16xf32>
    %180 = vector.multi_reduction <add>, %174, %cst_68 [1] : vector<16x32xf32> to vector<16xf32>
    %181 = vector.shape_cast %180 : vector<16xf32> to vector<16x1xf32>
    %cst_69 = arith.constant 3.200000e+01 : f32
    %182 = vector.broadcast %cst_69 : f32 to vector<16x1xf32>
    %183 = arith.divf %181, %182 : vector<16x1xf32>
    %184 = vector.broadcast %183 : vector<16x1xf32> to vector<16x32xf32>
    %185 = arith.subf %174, %184 : vector<16x32xf32>
    %186 = arith.mulf %185, %185 : vector<16x32xf32>
    %cst_70 = arith.constant dense<0.000000e+00> : vector<16xf32>
    %187 = vector.multi_reduction <add>, %186, %cst_70 [1] : vector<16x32xf32> to vector<16xf32>
    %188 = vector.shape_cast %187 : vector<16xf32> to vector<16x1xf32>
    %cst_71 = arith.constant 3.200000e+01 : f32
    %189 = vector.broadcast %cst_71 : f32 to vector<16x1xf32>
    %190 = arith.divf %188, %189 : vector<16x1xf32>
    %191 = vector.broadcast %183 : vector<16x1xf32> to vector<16x32xf32>
    %192 = arith.subf %174, %191 : vector<16x32xf32>
    %cst_72 = arith.constant 9.99999974E-6 : f32
    %193 = vector.broadcast %cst_72 : f32 to vector<16x1xf32>
    %194 = arith.addf %190, %193 : vector<16x1xf32>
    %195 = math.rsqrt %194 : vector<16x1xf32>
    %196 = vector.broadcast %195 : vector<16x1xf32> to vector<16x32xf32>
    %197 = arith.mulf %192, %196 : vector<16x32xf32>
    %198 = vector.broadcast %176 : vector<1x32xf32> to vector<16x32xf32>
    %199 = arith.mulf %197, %198 : vector<16x32xf32>
    %200 = vector.broadcast %177 : vector<1x32xf32> to vector<16x32xf32>
    %201 = arith.addf %199, %200 : vector<16x32xf32>
    %c232 = arith.constant 232 : index
    %c0_73 = arith.constant 0 : index
    %202 = vector.load %arg1[%c232, %c0_73] : memref<504x128xf32, #tpu.memory_space<vmem>>, vector<32x96xf32>
    %cst_74 = arith.constant dense<0.000000e+00> : vector<16x96xf32>
    %203 = tpu.matmul %201, %202, %cst_74 {dimension_numbers = #tpu.dot_dimension_numbers<[1], [0], [0], [1], [0, 0, 1, 1], [], []>} : vector<16x32xf32>, vector<32x96xf32>, vector<16x96xf32> -> vector<16x96xf32>
    %c264 = arith.constant 264 : index
    %c0_75 = arith.constant 0 : index
    %204 = vector.load %arg1[%c264, %c0_75] : memref<504x128xf32, #tpu.memory_space<vmem>>, vector<1x96xf32>
    %205 = vector.broadcast %204 : vector<1x96xf32> to vector<16x96xf32>
    %206 = arith.addf %203, %205 : vector<16x96xf32>
    %207 = vector.extract_strided_slice %206 {offsets = [0, 0], sizes = [8, 96], strides = [1, 1]} : vector<16x96xf32> to vector<8x96xf32>
    %208 = vector.extract_strided_slice %207 {offsets = [0, 0], sizes = [8, 16], strides = [1, 1]} : vector<8x96xf32> to vector<8x16xf32>
    %cst_76 = arith.constant 2.500000e-01 : f32
    %209 = vector.broadcast %cst_76 : f32 to vector<8x16xf32>
    %210 = arith.mulf %208, %209 : vector<8x16xf32>
    %211 = vector.extract_strided_slice %207 {offsets = [0, 32], sizes = [8, 16], strides = [1, 1]} : vector<8x96xf32> to vector<8x16xf32>
    %212 = vector.extract_strided_slice %207 {offsets = [0, 64], sizes = [8, 16], strides = [1, 1]} : vector<8x96xf32> to vector<8x16xf32>
    %cst_77 = arith.constant dense<0.000000e+00> : vector<8x8xf32>
    %213 = tpu.matmul %210, %211, %cst_77 {dimension_numbers = #tpu.dot_dimension_numbers<[1], [1], [0], [0], [0, 0, 1, 0], [], []>} : vector<8x16xf32>, vector<8x16xf32>, vector<8x8xf32> -> vector<8x8xf32>
    %214 = arith.addf %213, %5 : vector<8x8xf32>
    %cst_78 = arith.constant dense<0xFF800000> : vector<8xf32>
    %215 = vector.multi_reduction <maximumf>, %214, %cst_78 [1] : vector<8x8xf32> to vector<8xf32>
    %216 = vector.shape_cast %215 : vector<8xf32> to vector<8x1xf32>
    %217 = vector.broadcast %216 : vector<8x1xf32> to vector<8x8xf32>
    %218 = arith.subf %214, %217 : vector<8x8xf32>
    %219 = math.exp %218 : vector<8x8xf32>
    %cst_79 = arith.constant dense<0.000000e+00> : vector<8xf32>
    %220 = vector.multi_reduction <add>, %219, %cst_79 [1] : vector<8x8xf32> to vector<8xf32>
    %221 = vector.shape_cast %220 : vector<8xf32> to vector<8x1xf32>
    %222 = tpu.reciprocal %221 {approx = true} : vector<8x1xf32> -> vector<8x1xf32>
    %223 = vector.broadcast %222 : vector<8x1xf32> to vector<8x8xf32>
    %224 = arith.mulf %219, %223 : vector<8x8xf32>
    %cst_80 = arith.constant dense<0.000000e+00> : vector<8x16xf32>
    %225 = tpu.matmul %224, %212, %cst_80 {dimension_numbers = #tpu.dot_dimension_numbers<[1], [0], [0], [1], [0, 0, 1, 1], [], []>} : vector<8x8xf32>, vector<8x16xf32>, vector<8x16xf32> -> vector<8x16xf32>
    %c0_81 = arith.constant 0 : index
    %c0_82 = arith.constant 0 : index
    %226 = vector.load %arg3[%c0_81, %c0_82] : memref<16x32xf32, #tpu.memory_space<vmem>>, vector<8x16xf32>
    tpu.vector_store %arg3[%c0_81, %c0_82], %225 {strides = array<i32>} : memref<16x32xf32, #tpu.memory_space<vmem>>, vector<8x16xf32>,
    %227 = vector.extract_strided_slice %207 {offsets = [0, 16], sizes = [8, 16], strides = [1, 1]} : vector<8x96xf32> to vector<8x16xf32>
    %cst_83 = arith.constant 2.500000e-01 : f32
    %228 = vector.broadcast %cst_83 : f32 to vector<8x16xf32>
    %229 = arith.mulf %227, %228 : vector<8x16xf32>
    %230 = vector.extract_strided_slice %207 {offsets = [0, 48], sizes = [8, 16], strides = [1, 1]} : vector<8x96xf32> to vector<8x16xf32>
    %231 = vector.extract_strided_slice %207 {offsets = [0, 80], sizes = [8, 16], strides = [1, 1]} : vector<8x96xf32> to vector<8x16xf32>
    %cst_84 = arith.constant dense<0.000000e+00> : vector<8x8xf32>
    %232 = tpu.matmul %229, %230, %cst_84 {dimension_numbers = #tpu.dot_dimension_numbers<[1], [1], [0], [0], [0, 0, 1, 0], [], []>} : vector<8x16xf32>, vector<8x16xf32>, vector<8x8xf32> -> vector<8x8xf32>
    %233 = arith.addf %232, %5 : vector<8x8xf32>
    %cst_85 = arith.constant dense<0xFF800000> : vector<8xf32>
    %234 = vector.multi_reduction <maximumf>, %233, %cst_85 [1] : vector<8x8xf32> to vector<8xf32>
    %235 = vector.shape_cast %234 : vector<8xf32> to vector<8x1xf32>
    %236 = vector.broadcast %235 : vector<8x1xf32> to vector<8x8xf32>
    %237 = arith.subf %233, %236 : vector<8x8xf32>
    %238 = math.exp %237 : vector<8x8xf32>
    %cst_86 = arith.constant dense<0.000000e+00> : vector<8xf32>
    %239 = vector.multi_reduction <add>, %238, %cst_86 [1] : vector<8x8xf32> to vector<8xf32>
    %240 = vector.shape_cast %239 : vector<8xf32> to vector<8x1xf32>
    %241 = tpu.reciprocal %240 {approx = true} : vector<8x1xf32> -> vector<8x1xf32>
    %242 = vector.broadcast %241 : vector<8x1xf32> to vector<8x8xf32>
    %243 = arith.mulf %238, %242 : vector<8x8xf32>
    %cst_87 = arith.constant dense<0.000000e+00> : vector<8x16xf32>
    %244 = tpu.matmul %243, %231, %cst_87 {dimension_numbers = #tpu.dot_dimension_numbers<[1], [0], [0], [1], [0, 0, 1, 1], [], []>} : vector<8x8xf32>, vector<8x16xf32>, vector<8x16xf32> -> vector<8x16xf32>
    %c0_88 = arith.constant 0 : index
    %c16_89 = arith.constant 16 : index
    %245 = vector.load %arg3[%c0_88, %c16_89] : memref<16x32xf32, #tpu.memory_space<vmem>>, vector<8x16xf32>
    tpu.vector_store %arg3[%c0_88, %c16_89], %244 {strides = array<i32>} : memref<16x32xf32, #tpu.memory_space<vmem>>, vector<8x16xf32>,
    %246 = vector.extract_strided_slice %206 {offsets = [8, 0], sizes = [8, 96], strides = [1, 1]} : vector<16x96xf32> to vector<8x96xf32>
    %247 = vector.extract_strided_slice %246 {offsets = [0, 0], sizes = [8, 16], strides = [1, 1]} : vector<8x96xf32> to vector<8x16xf32>
    %cst_90 = arith.constant 2.500000e-01 : f32
    %248 = vector.broadcast %cst_90 : f32 to vector<8x16xf32>
    %249 = arith.mulf %247, %248 : vector<8x16xf32>
    %250 = vector.extract_strided_slice %246 {offsets = [0, 32], sizes = [8, 16], strides = [1, 1]} : vector<8x96xf32> to vector<8x16xf32>
    %251 = vector.extract_strided_slice %246 {offsets = [0, 64], sizes = [8, 16], strides = [1, 1]} : vector<8x96xf32> to vector<8x16xf32>
    %cst_91 = arith.constant dense<0.000000e+00> : vector<8x8xf32>
    %252 = tpu.matmul %249, %250, %cst_91 {dimension_numbers = #tpu.dot_dimension_numbers<[1], [1], [0], [0], [0, 0, 1, 0], [], []>} : vector<8x16xf32>, vector<8x16xf32>, vector<8x8xf32> -> vector<8x8xf32>
    %253 = arith.addf %252, %5 : vector<8x8xf32>
    %cst_92 = arith.constant dense<0xFF800000> : vector<8xf32>
    %254 = vector.multi_reduction <maximumf>, %253, %cst_92 [1] : vector<8x8xf32> to vector<8xf32>
    %255 = vector.shape_cast %254 : vector<8xf32> to vector<8x1xf32>
    %256 = vector.broadcast %255 : vector<8x1xf32> to vector<8x8xf32>
    %257 = arith.subf %253, %256 : vector<8x8xf32>
    %258 = math.exp %257 : vector<8x8xf32>
    %cst_93 = arith.constant dense<0.000000e+00> : vector<8xf32>
    %259 = vector.multi_reduction <add>, %258, %cst_93 [1] : vector<8x8xf32> to vector<8xf32>
    %260 = vector.shape_cast %259 : vector<8xf32> to vector<8x1xf32>
    %261 = tpu.reciprocal %260 {approx = true} : vector<8x1xf32> -> vector<8x1xf32>
    %262 = vector.broadcast %261 : vector<8x1xf32> to vector<8x8xf32>
    %263 = arith.mulf %258, %262 : vector<8x8xf32>
    %cst_94 = arith.constant dense<0.000000e+00> : vector<8x16xf32>
    %264 = tpu.matmul %263, %251, %cst_94 {dimension_numbers = #tpu.dot_dimension_numbers<[1], [0], [0], [1], [0, 0, 1, 1], [], []>} : vector<8x8xf32>, vector<8x16xf32>, vector<8x16xf32> -> vector<8x16xf32>
    %c8_95 = arith.constant 8 : index
    %c0_96 = arith.constant 0 : index
    %265 = vector.load %arg3[%c8_95, %c0_96] : memref<16x32xf32, #tpu.memory_space<vmem>>, vector<8x16xf32>
    tpu.vector_store %arg3[%c8_95, %c0_96], %264 {strides = array<i32>} : memref<16x32xf32, #tpu.memory_space<vmem>>, vector<8x16xf32>,
    %266 = vector.extract_strided_slice %246 {offsets = [0, 16], sizes = [8, 16], strides = [1, 1]} : vector<8x96xf32> to vector<8x16xf32>
    %cst_97 = arith.constant 2.500000e-01 : f32
    %267 = vector.broadcast %cst_97 : f32 to vector<8x16xf32>
    %268 = arith.mulf %266, %267 : vector<8x16xf32>
    %269 = vector.extract_strided_slice %246 {offsets = [0, 48], sizes = [8, 16], strides = [1, 1]} : vector<8x96xf32> to vector<8x16xf32>
    %270 = vector.extract_strided_slice %246 {offsets = [0, 80], sizes = [8, 16], strides = [1, 1]} : vector<8x96xf32> to vector<8x16xf32>
    %cst_98 = arith.constant dense<0.000000e+00> : vector<8x8xf32>
    %271 = tpu.matmul %268, %269, %cst_98 {dimension_numbers = #tpu.dot_dimension_numbers<[1], [1], [0], [0], [0, 0, 1, 0], [], []>} : vector<8x16xf32>, vector<8x16xf32>, vector<8x8xf32> -> vector<8x8xf32>
    %272 = arith.addf %271, %5 : vector<8x8xf32>
    %cst_99 = arith.constant dense<0xFF800000> : vector<8xf32>
    %273 = vector.multi_reduction <maximumf>, %272, %cst_99 [1] : vector<8x8xf32> to vector<8xf32>
    %274 = vector.shape_cast %273 : vector<8xf32> to vector<8x1xf32>
    %275 = vector.broadcast %274 : vector<8x1xf32> to vector<8x8xf32>
    %276 = arith.subf %272, %275 : vector<8x8xf32>
    %277 = math.exp %276 : vector<8x8xf32>
    %cst_100 = arith.constant dense<0.000000e+00> : vector<8xf32>
    %278 = vector.multi_reduction <add>, %277, %cst_100 [1] : vector<8x8xf32> to vector<8xf32>
    %279 = vector.shape_cast %278 : vector<8xf32> to vector<8x1xf32>
    %280 = tpu.reciprocal %279 {approx = true} : vector<8x1xf32> -> vector<8x1xf32>
    %281 = vector.broadcast %280 : vector<8x1xf32> to vector<8x8xf32>
    %282 = arith.mulf %277, %281 : vector<8x8xf32>
    %cst_101 = arith.constant dense<0.000000e+00> : vector<8x16xf32>
    %283 = tpu.matmul %282, %270, %cst_101 {dimension_numbers = #tpu.dot_dimension_numbers<[1], [0], [0], [1], [0, 0, 1, 1], [], []>} : vector<8x8xf32>, vector<8x16xf32>, vector<8x16xf32> -> vector<8x16xf32>
    %c8_102 = arith.constant 8 : index
    %c16_103 = arith.constant 16 : index
    %284 = vector.load %arg3[%c8_102, %c16_103] : memref<16x32xf32, #tpu.memory_space<vmem>>, vector<8x16xf32>
    tpu.vector_store %arg3[%c8_102, %c16_103], %283 {strides = array<i32>} : memref<16x32xf32, #tpu.memory_space<vmem>>, vector<8x16xf32>,
    %c0_104 = arith.constant 0 : index
    %c0_105 = arith.constant 0 : index
    %285 = vector.load %arg3[%c0_104, %c0_105] : memref<16x32xf32, #tpu.memory_space<vmem>>, vector<16x32xf32>
    %c272 = arith.constant 272 : index
    %c0_106 = arith.constant 0 : index
    %286 = vector.load %arg1[%c272, %c0_106] : memref<504x128xf32, #tpu.memory_space<vmem>>, vector<32x32xf32>
    %cst_107 = arith.constant dense<0.000000e+00> : vector<16x32xf32>
    %287 = tpu.matmul %285, %286, %cst_107 {dimension_numbers = #tpu.dot_dimension_numbers<[1], [0], [0], [1], [0, 0, 1, 1], [], []>} : vector<16x32xf32>, vector<32x32xf32>, vector<16x32xf32> -> vector<16x32xf32>
    %c304 = arith.constant 304 : index
    %c0_108 = arith.constant 0 : index
    %288 = vector.load %arg1[%c304, %c0_108] : memref<504x128xf32, #tpu.memory_space<vmem>>, vector<1x32xf32>
    %289 = vector.broadcast %288 : vector<1x32xf32> to vector<16x32xf32>
    %290 = arith.addf %287, %289 : vector<16x32xf32>
    %291 = arith.addf %290, %179 : vector<16x32xf32>
    %cst_109 = arith.constant dense<0.000000e+00> : vector<16xf32>
    %292 = vector.multi_reduction <add>, %291, %cst_109 [1] : vector<16x32xf32> to vector<16xf32>
    %293 = vector.shape_cast %292 : vector<16xf32> to vector<16x1xf32>
    %cst_110 = arith.constant 3.200000e+01 : f32
    %294 = vector.broadcast %cst_110 : f32 to vector<16x1xf32>
    %295 = arith.divf %293, %294 : vector<16x1xf32>
    %296 = vector.broadcast %295 : vector<16x1xf32> to vector<16x32xf32>
    %297 = arith.subf %291, %296 : vector<16x32xf32>
    %298 = arith.mulf %297, %297 : vector<16x32xf32>
    %cst_111 = arith.constant dense<0.000000e+00> : vector<16xf32>
    %299 = vector.multi_reduction <add>, %298, %cst_111 [1] : vector<16x32xf32> to vector<16xf32>
    %300 = vector.shape_cast %299 : vector<16xf32> to vector<16x1xf32>
    %cst_112 = arith.constant 3.200000e+01 : f32
    %301 = vector.broadcast %cst_112 : f32 to vector<16x1xf32>
    %302 = arith.divf %300, %301 : vector<16x1xf32>
    %303 = vector.broadcast %295 : vector<16x1xf32> to vector<16x32xf32>
    %304 = arith.subf %291, %303 : vector<16x32xf32>
    %cst_113 = arith.constant 9.99999974E-6 : f32
    %305 = vector.broadcast %cst_113 : f32 to vector<16x1xf32>
    %306 = arith.addf %302, %305 : vector<16x1xf32>
    %307 = math.rsqrt %306 : vector<16x1xf32>
    %308 = vector.broadcast %307 : vector<16x1xf32> to vector<16x32xf32>
    %309 = arith.mulf %304, %308 : vector<16x32xf32>
    %310 = vector.broadcast %176 : vector<1x32xf32> to vector<16x32xf32>
    %311 = arith.mulf %309, %310 : vector<16x32xf32>
    %312 = vector.broadcast %177 : vector<1x32xf32> to vector<16x32xf32>
    %313 = arith.addf %311, %312 : vector<16x32xf32>
    %c312 = arith.constant 312 : index
    %c0_114 = arith.constant 0 : index
    %314 = vector.load %arg1[%c312, %c0_114] : memref<504x128xf32, #tpu.memory_space<vmem>>, vector<32x64xf32>
    %cst_115 = arith.constant dense<0.000000e+00> : vector<16x64xf32>
    %315 = tpu.matmul %313, %314, %cst_115 {dimension_numbers = #tpu.dot_dimension_numbers<[1], [0], [0], [1], [0, 0, 1, 1], [], []>} : vector<16x32xf32>, vector<32x64xf32>, vector<16x64xf32> -> vector<16x64xf32>
    %c344 = arith.constant 344 : index
    %c0_116 = arith.constant 0 : index
    %316 = vector.load %arg1[%c344, %c0_116] : memref<504x128xf32, #tpu.memory_space<vmem>>, vector<1x64xf32>
    %317 = vector.broadcast %316 : vector<1x64xf32> to vector<16x64xf32>
    %318 = arith.addf %315, %317 : vector<16x64xf32>
    %319 = arith.mulf %318, %318 : vector<16x64xf32>
    %320 = arith.mulf %318, %319 : vector<16x64xf32>
    %cst_117 = arith.constant 4.471500e-02 : f32
    %321 = vector.broadcast %cst_117 : f32 to vector<16x64xf32>
    %322 = arith.mulf %321, %320 : vector<16x64xf32>
    %323 = arith.addf %318, %322 : vector<16x64xf32>
    %cst_118 = arith.constant 0.797884583 : f32
    %324 = vector.broadcast %cst_118 : f32 to vector<16x64xf32>
    %325 = arith.mulf %324, %323 : vector<16x64xf32>
    %326 = math.tanh %325 : vector<16x64xf32>
    %cst_119 = arith.constant 1.000000e+00 : f32
    %327 = vector.broadcast %cst_119 : f32 to vector<16x64xf32>
    %328 = arith.addf %327, %326 : vector<16x64xf32>
    %cst_120 = arith.constant 5.000000e-01 : f32
    %329 = vector.broadcast %cst_120 : f32 to vector<16x64xf32>
    %330 = arith.mulf %329, %328 : vector<16x64xf32>
    %331 = arith.mulf %318, %330 : vector<16x64xf32>
    %c352 = arith.constant 352 : index
    %c0_121 = arith.constant 0 : index
    %332 = vector.load %arg1[%c352, %c0_121] : memref<504x128xf32, #tpu.memory_space<vmem>>, vector<64x32xf32>
    %cst_122 = arith.constant dense<0.000000e+00> : vector<16x32xf32>
    %333 = tpu.matmul %331, %332, %cst_122 {dimension_numbers = #tpu.dot_dimension_numbers<[1], [0], [0], [1], [0, 0, 1, 1], [], []>} : vector<16x64xf32>, vector<64x32xf32>, vector<16x32xf32> -> vector<16x32xf32>
    %c416 = arith.constant 416 : index
    %c0_123 = arith.constant 0 : index
    %334 = vector.load %arg1[%c416, %c0_123] : memref<504x128xf32, #tpu.memory_space<vmem>>, vector<1x32xf32>
    %335 = vector.broadcast %334 : vector<1x32xf32> to vector<16x32xf32>
    %336 = arith.addf %333, %335 : vector<16x32xf32>
    %337 = arith.addf %291, %336 : vector<16x32xf32>
    %c448 = arith.constant 448 : index
    %c0_124 = arith.constant 0 : index
    %338 = vector.load %arg1[%c448, %c0_124] : memref<504x128xf32, #tpu.memory_space<vmem>>, vector<1x32xf32>
    %c456 = arith.constant 456 : index
    %c0_125 = arith.constant 0 : index
    %339 = vector.load %arg1[%c456, %c0_125] : memref<504x128xf32, #tpu.memory_space<vmem>>, vector<1x32xf32>
    %cst_126 = arith.constant dense<0.000000e+00> : vector<16xf32>
    %340 = vector.multi_reduction <add>, %337, %cst_126 [1] : vector<16x32xf32> to vector<16xf32>
    %341 = vector.shape_cast %340 : vector<16xf32> to vector<16x1xf32>
    %cst_127 = arith.constant 3.200000e+01 : f32
    %342 = vector.broadcast %cst_127 : f32 to vector<16x1xf32>
    %343 = arith.divf %341, %342 : vector<16x1xf32>
    %344 = vector.broadcast %343 : vector<16x1xf32> to vector<16x32xf32>
    %345 = arith.subf %337, %344 : vector<16x32xf32>
    %346 = arith.mulf %345, %345 : vector<16x32xf32>
    %cst_128 = arith.constant dense<0.000000e+00> : vector<16xf32>
    %347 = vector.multi_reduction <add>, %346, %cst_128 [1] : vector<16x32xf32> to vector<16xf32>
    %348 = vector.shape_cast %347 : vector<16xf32> to vector<16x1xf32>
    %cst_129 = arith.constant 3.200000e+01 : f32
    %349 = vector.broadcast %cst_129 : f32 to vector<16x1xf32>
    %350 = arith.divf %348, %349 : vector<16x1xf32>
    %351 = vector.broadcast %343 : vector<16x1xf32> to vector<16x32xf32>
    %352 = arith.subf %337, %351 : vector<16x32xf32>
    %cst_130 = arith.constant 9.99999974E-6 : f32
    %353 = vector.broadcast %cst_130 : f32 to vector<16x1xf32>
    %354 = arith.addf %350, %353 : vector<16x1xf32>
    %355 = math.rsqrt %354 : vector<16x1xf32>
    %356 = vector.broadcast %355 : vector<16x1xf32> to vector<16x32xf32>
    %357 = arith.mulf %352, %356 : vector<16x32xf32>
    %358 = vector.broadcast %338 : vector<1x32xf32> to vector<16x32xf32>
    %359 = arith.mulf %357, %358 : vector<16x32xf32>
    %360 = vector.broadcast %339 : vector<1x32xf32> to vector<16x32xf32>
    %361 = arith.addf %359, %360 : vector<16x32xf32>
    %c464 = arith.constant 464 : index
    %c0_131 = arith.constant 0 : index
    %362 = vector.load %arg1[%c464, %c0_131] : memref<504x128xf32, #tpu.memory_space<vmem>>, vector<32x4xf32>
    %cst_132 = arith.constant dense<0.000000e+00> : vector<16x4xf32>
    %363 = tpu.matmul %361, %362, %cst_132 {dimension_numbers = #tpu.dot_dimension_numbers<[1], [0], [0], [1], [0, 0, 1, 1], [], []>} : vector<16x32xf32>, vector<32x4xf32>, vector<16x4xf32> -> vector<16x4xf32>
    %c496 = arith.constant 496 : index
    %c0_133 = arith.constant 0 : index
    %364 = vector.load %arg1[%c496, %c0_133] : memref<504x128xf32, #tpu.memory_space<vmem>>, vector<1x4xf32>
    %365 = vector.broadcast %364 : vector<1x4xf32> to vector<16x4xf32>
    %366 = arith.addf %363, %365 : vector<16x4xf32>
    %367 = vector.extract_strided_slice %366 {offsets = [0, 0], sizes = [8, 4], strides = [1, 1]} : vector<16x4xf32> to vector<8x4xf32>
    %cst_134 = arith.constant dense<0xFF800000> : vector<4xf32>
    %368 = vector.multi_reduction <maximumf>, %367, %cst_134 [0] : vector<8x4xf32> to vector<4xf32>
    %369 = vector.shape_cast %368 : vector<4xf32> to vector<1x4xf32>
    %370 = vector.broadcast %369 : vector<1x4xf32> to vector<8x4xf32>
    %371 = arith.subf %367, %370 : vector<8x4xf32>
    %372 = math.exp %371 : vector<8x4xf32>
    %cst_135 = arith.constant dense<0.000000e+00> : vector<4xf32>
    %373 = vector.multi_reduction <add>, %372, %cst_135 [0] : vector<8x4xf32> to vector<4xf32>
    %374 = vector.shape_cast %373 : vector<4xf32> to vector<1x4xf32>
    %375 = tpu.reciprocal %374 : vector<1x4xf32> -> vector<1x4xf32>
    %376 = vector.broadcast %375 : vector<1x4xf32> to vector<8x4xf32>
    %377 = arith.mulf %372, %376 : vector<8x4xf32>
    %c0_136 = arith.constant 0 : index
    %c0_137 = arith.constant 0 : index
    %378 = vector.load %arg2[%c0_136, %c0_137] : memref<16x4xf32, #tpu.memory_space<vmem>>, vector<8x4xf32>
    tpu.vector_store %arg2[%c0_136, %c0_137], %377 {strides = array<i32>} : memref<16x4xf32, #tpu.memory_space<vmem>>, vector<8x4xf32>,
    %379 = vector.extract_strided_slice %366 {offsets = [8, 0], sizes = [8, 4], strides = [1, 1]} : vector<16x4xf32> to vector<8x4xf32>
    %cst_138 = arith.constant dense<0xFF800000> : vector<4xf32>
    %380 = vector.multi_reduction <maximumf>, %379, %cst_138 [0] : vector<8x4xf32> to vector<4xf32>
    %381 = vector.shape_cast %380 : vector<4xf32> to vector<1x4xf32>
    %382 = vector.broadcast %381 : vector<1x4xf32> to vector<8x4xf32>
    %383 = arith.subf %379, %382 : vector<8x4xf32>
    %384 = math.exp %383 : vector<8x4xf32>
    %cst_139 = arith.constant dense<0.000000e+00> : vector<4xf32>
    %385 = vector.multi_reduction <add>, %384, %cst_139 [0] : vector<8x4xf32> to vector<4xf32>
    %386 = vector.shape_cast %385 : vector<4xf32> to vector<1x4xf32>
    %387 = tpu.reciprocal %386 : vector<1x4xf32> -> vector<1x4xf32>
    %388 = vector.broadcast %387 : vector<1x4xf32> to vector<8x4xf32>
    %389 = arith.mulf %384, %388 : vector<8x4xf32>
    %c8_140 = arith.constant 8 : index
    %c0_141 = arith.constant 0 : index
    %390 = vector.load %arg2[%c8_140, %c0_141] : memref<16x4xf32, #tpu.memory_space<vmem>>, vector<8x4xf32>
    tpu.vector_store %arg2[%c8_140, %c0_141], %389 {strides = array<i32>} : memref<16x4xf32, #tpu.memory_space<vmem>>, vector<8x4xf32>,
    return
  }
}

</mosaic_0001>

<llo_original>
// kernel: tpu_custom_call.1
$region0: #{tpu_custom_call.1}
  #allocation0 [shape = 'u32[]', space=smem, size = 0x4, offset = 0x4, fixed_abs, tag = 'smem constant byte address 0x4 - core index']
  #allocation1 [shape = 'u32[144,128]{1,0:T(1,128)}', space=vmem, size = 0x12000, scoped, tag = 'internal scratch']
  #allocation2 [shape = 'f32[16,32]{1,0:T(8,128)}', space=vmem, size = 0x2000, scoped, tag = 'scratch operand']
  %s0 = inlined_call_operand.vmem [shape: f32[16,4], index: 0, kind: input, shape index: {}]
  %s1 = inlined_call_operand.hbm [shape: f32[504,128], index: 1, kind: input, shape index: {}]
  %s2 = inlined_call_operand.vmem [shape: f32[16,4], index: 2, kind: output, shape index: {}]
  %s3 = sld [smem:[#allocation0]]
  $region22: #{tpu_custom_call.1} parent=0
    _
  %s5 = ssub.s32 1, %s3
  %s6 = scalar_select 0, %s5, %s3
  $region1: #{tpu_custom_call.1} parent=0
    #allocation3 [shape = 'u8[258048]{0}', space=vmem, size = 0x3f000, scoped, tag = 'input window, operand 1, single buffered']
    #allocation4 [shape = 's32[1]{0}', space=sflag, size = 0x4, scoped, tag = 'scoped memory for tpu_custom_call.1']
    %7 = vsyncpa [#allocation4], 0
    // Predicated region
    $region2: #{tpu_custom_call.1} parent=1 // pred_check
      _
    $region3: #{tpu_custom_call.1} parent=1 // pred_check_branch
      %9 = sbr.rel (0) target = $region5
    $region4: #{tpu_custom_call.1} parent=1 // pred_region
      _
    $region5: #{tpu_custom_call.1} parent=1 // pred_fallthru
      _
    // Predicated region
    $region6: #{tpu_custom_call.1} parent=1 // pred_check
      _
    $region7: #{tpu_custom_call.1} parent=1 // pred_check_branch
      %11 = sbr.rel (0) target = $region9
    $region8: #{tpu_custom_call.1} parent=1 // pred_region
      %s13 = ssub.s32 8064, 8064
      %14 = vsyncadd [#allocation4], %s13
      %s15 = sshll.u32 [#allocation3], 4
      %s16 = int_to_ptr.vmem [resolvable:$true] %s15
      %21 = dma.hbm_to_vmem [thread:$0]  %s1, 8064, %s16, [#allocation4], 128, 128, 8
    $region9: #{tpu_custom_call.1} parent=1 // pred_fallthru
      _
    // Predicated region
    $region10: #{tpu_custom_call.1} parent=1 // pred_check
      _
    $region11: #{tpu_custom_call.1} parent=1 // pred_check_branch
      %23 = sbr.rel (0) target = $region13
    $region12: #{tpu_custom_call.1} parent=1 // pred_region
      %24 = dma.done [#allocation4], 8064
    $region13: #{tpu_custom_call.1} parent=1 // pred_fallthru
      _
    %v25 = vlaneseq
    %v26 = vshrl.u32 %v25, 7
    %v27 = vlaneseq
    %v28 = vand.u32 %v27, 127
    %vm29 = vcmp.gt.s32.totalorder %v28, %v26
    %v30 = vsel %vm29, -10000.0, 0.0
    %v31 = vld [vmem:[%s0] sm:$0xff]
    %v32 = vld [vmem:[%s0 + $0x8] sm:$0xff]
    %v33 = vld [vmem:[#allocation3] sm:$0xf]
    %v34 = vld [vmem:[#allocation3 + $0x8] sm:$0x1]
    %v35 = vlaneseq
    %v36 = vshrl.u32 %v35, 7
    %v37 = vsub.s32 0, %v36
    %v38 = vrot.slane %v34, %v37
    %vm39 = vcmask 31744
    %v41 = vsel %vm39, %v31, 0
    %v44 = vsel %vm39, %v32, 0
    %vm46 = vcmask 1043456
    %v48 = vsel %vm46, %v33, 0
    %50 = vmatprep.subr.mxu0 0.0
    %51 = vmatpush1.msra.mxu0 %v48
    %52 = vmatprep.subr.mxu0 0.0
    %53 = vmatpush1.msra.mxu0 0.0
    %54 = vmatprep.subr.mxu0 0.0
    %55 = vmatpush1.msra.mxu0 0.0
    %56 = vmatprep.subr.mxu0 0.0
    %57 = vmatpush1.msra.mxu0 0.0
    %58 = vmatprep.subr.mxu0 0.0
    %59 = vmatpush1.msra.mxu0 0.0
    %60 = vmatprep.subr.mxu0 0.0
    %61 = vmatpush1.msra.mxu0 0.0
    %62 = vmatprep.subr.mxu0 0.0
    %63 = vmatpush1.msra.mxu0 0.0
    %64 = vmatprep.subr.mxu0 0.0
    %65 = vmatpush1.msra.mxu0 0.0
    %66 = vmatprep.subr.mxu0 0.0
    %67 = vmatpush1.msra.mxu0 0.0
    %68 = vmatprep.subr.mxu0 0.0
    %69 = vmatpush1.msra.mxu0 0.0
    %70 = vmatprep.subr.mxu0 0.0
    %71 = vmatpush1.msra.mxu0 0.0
    %72 = vmatprep.subr.mxu0 0.0
    %73 = vmatpush1.msra.mxu0 0.0
    %74 = vmatprep.subr.mxu0 0.0
    %75 = vmatpush1.msra.mxu0 0.0
    %76 = vmatprep.subr.mxu0 0.0
    %77 = vmatpush1.msra.mxu0 0.0
    %78 = vmatprep.subr.mxu0 0.0
    %79 = vmatpush1.msra.mxu0 0.0
    %80 = vmatprep.subr.mxu0 0.0
    %81 = vmatpush1.msra.mxu0 0.0
    %82 = vmatprep.subr.mxu0 0.0
    %83 = vmatpush1.msra.mxu0 0.0
    %84 = vmatprep.subr.mxu0 0.0
    %85 = vmatpush1.msra.mxu0 0.0
    %86 = vmatprep.subr.mxu0 0.0
    %87 = vmatpush1.msra.mxu0 0.0
    %88 = vmatprep.subr.mxu0 0.0
    %89 = vmatpush1.msra.mxu0 0.0
    %90 = vmatprep.subr.mxu0 0.0
    %91 = vmatpush1.msra.mxu0 0.0
    %92 = vmatprep.subr.mxu0 0.0
    %93 = vmatpush1.msra.mxu0 0.0
    %94 = vmatprep.subr.mxu0 0.0
    %95 = vmatpush1.msra.mxu0 0.0
    %96 = vmatprep.subr.mxu0 0.0
    %97 = vmatpush1.msra.mxu0 0.0
    %98 = vmatprep.subr.mxu0 0.0
    %99 = vmatpush1.msra.mxu0 0.0
    %100 = vmatprep.subr.mxu0 0.0
    %101 = vmatpush1.msra.mxu0 0.0
    %102 = vmatprep.subr.mxu0 0.0
    %103 = vmatpush1.msra.mxu0 0.0
    %104 = vmatprep.subr.mxu0 0.0
    %105 = vmatpush1.msra.mxu0 0.0
    %106 = vmatprep.subr.mxu0 0.0
    %107 = vmatpush1.msra.mxu0 0.0
    %108 = vmatprep.subr.mxu0 0.0
    %109 = vmatpush1.msra.mxu0 0.0
    %110 = vmatprep.subr.mxu0 0.0
    %111 = vmatpush1.msra.mxu0 0.0
    %112 = vmatprep.subr.mxu0 0.0
    %113 = vmatpush1.msra.mxu0 0.0
    %114 = vmatprep.mubr.f32.mxu0 0.0
    %115 = vmatmul.mubr.f32.gmra.mrb[0].mxu0 %v41
    %v116 = vpop.f32.mrb[0].mxu0
    %v117 = vadd.f32 %v38, %v116
    %v118 = vpop.f32.mrb[0].mxu0
    %119 = vmatprep.mubr.f32.mxu0 0.0
    %120 = vmatmul.mubr.f32.gmra.mrb[0].mxu0 %v44
    %v121 = vpop.f32.mrb[0].mxu0
    %v122 = vadd.f32 %v38, %v121
    %v123 = vpop.f32.mrb[0].mxu0
    %124 = vdwg.mxu0
    %v125 = vld [vmem:[#allocation3 + $0xe0] sm:$0x1]
    %v126 = vld [vmem:[#allocation3 + $0xd0] sm:$0x1]
    %v127 = vld [vmem:[#allocation3 + $0xd8] sm:$0x1]
    %s129 = vtos %v125
    %v130 = vstv %s129
    %v132 = vmul.f32 %v130, %v117
    %v133 = vmul.f32 %v130, %v122
    %vm134 = vcmask 261120
    %v135 = vsel %vm134, %v117, 0.0
    %136 = vadd.xlane.f32.xlu0 %v135
    %v137 = vpop.xlane.xlu0 %136
    %v138 = vsel %vm134, %v122, 0.0
    %139 = vadd.xlane.f32.xlu0 %v138
    %v140 = vpop.xlane.xlu0 %139
    %v141 = vrcp.pop 32.0
    %v142 = vmul.f32 %v137, %v141
    %v143 = vmul.f32 %v140, %v141
    %v144 = vsub.f32 %v117, %v142
    %v145 = vsub.f32 %v122, %v143
    %v146 = vmul.f32 %v144, %v144
    %v147 = vmul.f32 %v145, %v145
    %v148 = vsel %vm134, %v146, 0.0
    %149 = vadd.xlane.f32.xlu0 %v148
    %v150 = vpop.xlane.xlu0 %149
    %v151 = vsel %vm134, %v147, 0.0
    %152 = vadd.xlane.f32.xlu0 %v151
    %v153 = vpop.xlane.xlu0 %152
    %v154 = vmul.f32 %v150, %v141
    %v155 = vmul.f32 %v153, %v141
    %v156 = vadd.f32 %v154, 1e-05
    %v157 = vadd.f32 %v155, 1e-05
    %v158 = vrsqrt.pop %v156
    %v159 = vrsqrt.pop %v157
    %v160 = vmul.f32 %v144, %v158
    %v161 = vmul.f32 %v145, %v159
    %v162 = vlaneseq
    %v163 = vshrl.u32 %v162, 7
    %v164 = vsub.s32 0, %v163
    %v165 = vrot.slane %v126, %v164
    %v166 = vmul.f32 %v160, %v165
    %v167 = vmul.f32 %v161, %v165
    %v168 = vlaneseq
    %v169 = vshrl.u32 %v168, 7
    %v170 = vsub.s32 0, %v169
    %v171 = vrot.slane %v127, %v170
    %v172 = vadd.f32 %v166, %v171
    %v173 = vadd.f32 %v167, %v171
    %v174 = vld [vmem:[#allocation3 + $0x10] sm:$0xff]
    %v175 = vld [vmem:[#allocation3 + $0x18] sm:$0xff]
    %v176 = vld [vmem:[#allocation3 + $0x20] sm:$0xff]
    %v177 = vld [vmem:[#allocation3 + $0x28] sm:$0xff]
    %v178 = vld [vmem:[#allocation3 + $0x30] sm:$0x1]
    %v179 = vlaneseq
    %v180 = vshrl.u32 %v179, 7
    %v181 = vsub.s32 0, %v180
    %v182 = vrot.slane %v178, %v181
    %v184 = vsel %vm134, %v172, 0
    %v187 = vsel %vm134, %v173, 0
    %189 = vmatprep.subr.mxu0 0.0
    %190 = vmatpush1.msra.mxu0 %v174
    %191 = vmatprep.subr.mxu0 0.0
    %192 = vmatpush1.msra.mxu0 %v175
    %193 = vmatprep.subr.mxu0 0.0
    %194 = vmatpush1.msra.mxu0 %v176
    %195 = vmatprep.subr.mxu0 0.0
    %196 = vmatpush1.msra.mxu0 %v177
    %197 = vmatprep.subr.mxu0 0.0
    %198 = vmatpush1.msra.mxu0 0.0
    %199 = vmatprep.subr.mxu0 0.0
    %200 = vmatpush1.msra.mxu0 0.0
    %201 = vmatprep.subr.mxu0 0.0
    %202 = vmatpush1.msra.mxu0 0.0
    %203 = vmatprep.subr.mxu0 0.0
    %204 = vmatpush1.msra.mxu0 0.0
    %205 = vmatprep.subr.mxu0 0.0
    %206 = vmatpush1.msra.mxu0 0.0
    %207 = vmatprep.subr.mxu0 0.0
    %208 = vmatpush1.msra.mxu0 0.0
    %209 = vmatprep.subr.mxu0 0.0
    %210 = vmatpush1.msra.mxu0 0.0
    %211 = vmatprep.subr.mxu0 0.0
    %212 = vmatpush1.msra.mxu0 0.0
    %213 = vmatprep.subr.mxu0 0.0
    %214 = vmatpush1.msra.mxu0 0.0
    %215 = vmatprep.subr.mxu0 0.0
    %216 = vmatpush1.msra.mxu0 0.0
    %217 = vmatprep.subr.mxu0 0.0
    %218 = vmatpush1.msra.mxu0 0.0
    %219 = vmatprep.subr.mxu0 0.0
    %220 = vmatpush1.msra.mxu0 0.0
    %221 = vmatprep.subr.mxu0 0.0
    %222 = vmatpush1.msra.mxu0 0.0
    %223 = vmatprep.subr.mxu0 0.0
    %224 = vmatpush1.msra.mxu0 0.0
    %225 = vmatprep.subr.mxu0 0.0
    %226 = vmatpush1.msra.mxu0 0.0
    %227 = vmatprep.subr.mxu0 0.0
    %228 = vmatpush1.msra.mxu0 0.0
    %229 = vmatprep.subr.mxu0 0.0
    %230 = vmatpush1.msra.mxu0 0.0
    %231 = vmatprep.subr.mxu0 0.0
    %232 = vmatpush1.msra.mxu0 0.0
    %233 = vmatprep.subr.mxu0 0.0
    %234 = vmatpush1.msra.mxu0 0.0
    %235 = vmatprep.subr.mxu0 0.0
    %236 = vmatpush1.msra.mxu0 0.0
    %237 = vmatprep.subr.mxu0 0.0
    %238 = vmatpush1.msra.mxu0 0.0
    %239 = vmatprep.subr.mxu0 0.0
    %240 = vmatpush1.msra.mxu0 0.0
    %241 = vmatprep.subr.mxu0 0.0
    %242 = vmatpush1.msra.mxu0 0.0
    %243 = vmatprep.subr.mxu0 0.0
    %244 = vmatpush1.msra.mxu0 0.0
    %245 = vmatprep.subr.mxu0 0.0
    %246 = vmatpush1.msra.mxu0 0.0
    %247 = vmatprep.subr.mxu0 0.0
    %248 = vmatpush1.msra.mxu0 0.0
    %249 = vmatprep.subr.mxu0 0.0
    %250 = vmatpush1.msra.mxu0 0.0
    %251 = vmatprep.subr.mxu0 0.0
    %252 = vmatpush1.msra.mxu0 0.0
    %253 = vmatprep.mubr.f32.mxu0 0.0
    %254 = vmatmul.mubr.f32.gmra.mrb[0].mxu0 %v184
    %v255 = vpop.f32.mrb[0].mxu0
    %v256 = vadd.f32 %v182, %v255
    %v257 = vpop.f32.mrb[0].mxu0
    %258 = vmatprep.mubr.f32.mxu0 0.0
    %259 = vmatmul.mubr.f32.gmra.mrb[0].mxu0 %v187
    %v260 = vpop.f32.mrb[0].mxu0
    %v261 = vadd.f32 %v182, %v260
    %v262 = vpop.f32.mrb[0].mxu0
    %263 = vdwg.mxu0
    %v264 = vmul.f32 %v256, 0.25
    %266 = vrot.lane.b32.xlu0 %v256, 96
    %v267 = vpop.permute.xlu0 %266
    %vm268 = vcmask 130048
    %v270 = vsel %vm268, %v264, 0
    %v272 = vsel %vm268, %v267, 0
    %274 = vmatprep.subr.mxu0 0.0
    %275 = vmatpush1.xpose.msra.mxu0 %v272
    %276 = vmatprep.subr.mxu0 0.0
    %277 = vmatpush1.xpose.msra.mxu0 0.0
    %278 = vmatprep.subr.mxu0 0.0
    %279 = vmatpush1.xpose.msra.mxu0 0.0
    %280 = vmatprep.subr.mxu0 0.0
    %281 = vmatpush1.xpose.msra.mxu0 0.0
    %282 = vmatprep.subr.mxu0 0.0
    %283 = vmatpush1.xpose.msra.mxu0 0.0
    %284 = vmatprep.subr.mxu0 0.0
    %285 = vmatpush1.xpose.msra.mxu0 0.0
    %286 = vmatprep.subr.mxu0 0.0
    %287 = vmatpush1.xpose.msra.mxu0 0.0
    %288 = vmatprep.subr.mxu0 0.0
    %289 = vmatpush1.xpose.msra.mxu0 0.0
    %290 = vmatprep.subr.mxu0 0.0
    %291 = vmatpush1.xpose.msra.mxu0 0.0
    %292 = vmatprep.subr.mxu0 0.0
    %293 = vmatpush1.xpose.msra.mxu0 0.0
    %294 = vmatprep.subr.mxu0 0.0
    %295 = vmatpush1.xpose.msra.mxu0 0.0
    %296 = vmatprep.subr.mxu0 0.0
    %297 = vmatpush1.xpose.msra.mxu0 0.0
    %298 = vmatprep.subr.mxu0 0.0
    %299 = vmatpush1.xpose.msra.mxu0 0.0
    %300 = vmatprep.subr.mxu0 0.0
    %301 = vmatpush1.xpose.msra.mxu0 0.0
    %302 = vmatprep.subr.mxu0 0.0
    %303 = vmatpush1.xpose.msra.mxu0 0.0
    %304 = vmatprep.subr.mxu0 0.0
    %305 = vmatpush1.xpose.msra.mxu0 0.0
    %306 = vmatprep.subr.mxu0 0.0
    %307 = vmatpush1.xpose.msra.mxu0 0.0
    %308 = vmatprep.subr.mxu0 0.0
    %309 = vmatpush1.xpose.msra.mxu0 0.0
    %310 = vmatprep.subr.mxu0 0.0
    %311 = vmatpush1.xpose.msra.mxu0 0.0
    %312 = vmatprep.subr.mxu0 0.0
    %313 = vmatpush1.xpose.msra.mxu0 0.0
    %314 = vmatprep.subr.mxu0 0.0
    %315 = vmatpush1.xpose.msra.mxu0 0.0
    %316 = vmatprep.subr.mxu0 0.0
    %317 = vmatpush1.xpose.msra.mxu0 0.0
    %318 = vmatprep.subr.mxu0 0.0
    %319 = vmatpush1.xpose.msra.mxu0 0.0
    %320 = vmatprep.subr.mxu0 0.0
    %321 = vmatpush1.xpose.msra.mxu0 0.0
    %322 = vmatprep.subr.mxu0 0.0
    %323 = vmatpush1.xpose.msra.mxu0 0.0
    %324 = vmatprep.subr.mxu0 0.0
    %325 = vmatpush1.xpose.msra.mxu0 0.0
    %326 = vmatprep.subr.mxu0 0.0
    %327 = vmatpush1.xpose.msra.mxu0 0.0
    %328 = vmatprep.subr.mxu0 0.0
    %329 = vmatpush1.xpose.msra.mxu0 0.0
    %330 = vmatprep.subr.mxu0 0.0
    %331 = vmatpush1.xpose.msra.mxu0 0.0
    %332 = vmatprep.subr.mxu0 0.0
    %333 = vmatpush1.xpose.msra.mxu0 0.0
    %334 = vmatprep.subr.mxu0 0.0
    %335 = vmatpush1.xpose.msra.mxu0 0.0
    %336 = vmatprep.subr.mxu0 0.0
    %337 = vmatpush1.xpose.msra.mxu0 0.0
    %338 = vmatprep.mubr.f32.mxu0 0.0
    %339 = vmatmul.mubr.f32.gmra.mrb[0].mxu0 %v270
    %v340 = vpop.f32.mrb[0].mxu0
    %v341 = vadd.f32 %v30, %v340
    %v342 = vpop.f32.mrb[0].mxu0
    %343 = vdwg.mxu0
    %vm344 = vcmask 64512
    %v345 = vsel %vm344, %v341, -inf
    %346 = vmax.xlane.f32.xlu0 %v345
    %v347 = vpop.xlane.xlu0 %346
    %v348 = vsub.f32 %v341, %v347
    %v349 = vmul.f32 %v348, 1.442695
    %v350 = vpow.pop %v349
    %v351 = vsel %vm344, %v350, 0.0
    %352 = vadd.xlane.f32.xlu0 %v351
    %v353 = vpop.xlane.xlu0 %352
    %v354 = vrcp.pop %v353
    %v355 = vmul.f32 %v350, %v354
    %356 = vrot.lane.b32.xlu0 %v256, 64
    %v357 = vpop.permute.xlu0 %356
    %v360 = vsel %vm344, %v355, 0
    %362 = vmatprep.subr.mxu0 0.0
    %363 = vmatpush1.msra.mxu0 %v357
    %364 = vmatprep.subr.mxu0 0.0
    %365 = vmatpush1.msra.mxu0 0.0
    %366 = vmatprep.subr.mxu0 0.0
    %367 = vmatpush1.msra.mxu0 0.0
    %368 = vmatprep.subr.mxu0 0.0
    %369 = vmatpush1.msra.mxu0 0.0
    %370 = vmatprep.subr.mxu0 0.0
    %371 = vmatpush1.msra.mxu0 0.0
    %372 = vmatprep.subr.mxu0 0.0
    %373 = vmatpush1.msra.mxu0 0.0
    %374 = vmatprep.subr.mxu0 0.0
    %375 = vmatpush1.msra.mxu0 0.0
    %376 = vmatprep.subr.mxu0 0.0
    %377 = vmatpush1.msra.mxu0 0.0
    %378 = vmatprep.subr.mxu0 0.0
    %379 = vmatpush1.msra.mxu0 0.0
    %380 = vmatprep.subr.mxu0 0.0
    %381 = vmatpush1.msra.mxu0 0.0
    %382 = vmatprep.subr.mxu0 0.0
    %383 = vmatpush1.msra.mxu0 0.0
    %384 = vmatprep.subr.mxu0 0.0
    %385 = vmatpush1.msra.mxu0 0.0
    %386 = vmatprep.subr.mxu0 0.0
    %387 = vmatpush1.msra.mxu0 0.0
    %388 = vmatprep.subr.mxu0 0.0
    %389 = vmatpush1.msra.mxu0 0.0
    %390 = vmatprep.subr.mxu0 0.0
    %391 = vmatpush1.msra.mxu0 0.0
    %392 = vmatprep.subr.mxu0 0.0
    %393 = vmatpush1.msra.mxu0 0.0
    %394 = vmatprep.subr.mxu0 0.0
    %395 = vmatpush1.msra.mxu0 0.0
    %396 = vmatprep.subr.mxu0 0.0
    %397 = vmatpush1.msra.mxu0 0.0
    %398 = vmatprep.subr.mxu0 0.0
    %399 = vmatpush1.msra.mxu0 0.0
    %400 = vmatprep.subr.mxu0 0.0
    %401 = vmatpush1.msra.mxu0 0.0
    %402 = vmatprep.subr.mxu0 0.0
    %403 = vmatpush1.msra.mxu0 0.0
    %404 = vmatprep.subr.mxu0 0.0
    %405 = vmatpush1.msra.mxu0 0.0
    %406 = vmatprep.subr.mxu0 0.0
    %407 = vmatpush1.msra.mxu0 0.0
    %408 = vmatprep.subr.mxu0 0.0
    %409 = vmatpush1.msra.mxu0 0.0
    %410 = vmatprep.subr.mxu0 0.0
    %411 = vmatpush1.msra.mxu0 0.0
    %412 = vmatprep.subr.mxu0 0.0
    %413 = vmatpush1.msra.mxu0 0.0
    %414 = vmatprep.subr.mxu0 0.0
    %415 = vmatpush1.msra.mxu0 0.0
    %416 = vmatprep.subr.mxu0 0.0
    %417 = vmatpush1.msra.mxu0 0.0
    %418 = vmatprep.subr.mxu0 0.0
    %419 = vmatpush1.msra.mxu0 0.0
    %420 = vmatprep.subr.mxu0 0.0
    %421 = vmatpush1.msra.mxu0 0.0
    %422 = vmatprep.subr.mxu0 0.0
    %423 = vmatpush1.msra.mxu0 0.0
    %424 = vmatprep.subr.mxu0 0.0
    %425 = vmatpush1.msra.mxu0 0.0
    %426 = vmatprep.mubr.f32.mxu0 0.0
    %427 = vmatmul.mubr.f32.gmra.mrb[0].mxu0 %v360
    %v428 = vpop.f32.mrb[0].mxu0
    %v429 = vadd.f32 0.0, %v428
    %v430 = vpop.f32.mrb[0].mxu0
    %431 = vdwg.mxu0
    %432 = vst.msk [vmem:[#allocation2] sm:$0xff] %vm268, %v429
    %433 = vrot.lane.b32.xlu0 %v264, 112
    %v434 = vpop.permute.xlu0 %433
    %435 = vrot.lane.b32.xlu0 %v256, 80
    %v436 = vpop.permute.xlu0 %435
    %v437 = vsel %vm268, %v434, 0
    %v439 = vsel %vm268, %v436, 0
    %441 = vmatprep.subr.mxu0 0.0
    %442 = vmatpush1.xpose.msra.mxu0 %v439
    %443 = vmatprep.subr.mxu0 0.0
    %444 = vmatpush1.xpose.msra.mxu0 0.0
    %445 = vmatprep.subr.mxu0 0.0
    %446 = vmatpush1.xpose.msra.mxu0 0.0
    %447 = vmatprep.subr.mxu0 0.0
    %448 = vmatpush1.xpose.msra.mxu0 0.0
    %449 = vmatprep.subr.mxu0 0.0
    %450 = vmatpush1.xpose.msra.mxu0 0.0
    %451 = vmatprep.subr.mxu0 0.0
    %452 = vmatpush1.xpose.msra.mxu0 0.0
    %453 = vmatprep.subr.mxu0 0.0
    %454 = vmatpush1.xpose.msra.mxu0 0.0
    %455 = vmatprep.subr.mxu0 0.0
    %456 = vmatpush1.xpose.msra.mxu0 0.0
    %457 = vmatprep.subr.mxu0 0.0
    %458 = vmatpush1.xpose.msra.mxu0 0.0
    %459 = vmatprep.subr.mxu0 0.0
    %460 = vmatpush1.xpose.msra.mxu0 0.0
    %461 = vmatprep.subr.mxu0 0.0
    %462 = vmatpush1.xpose.msra.mxu0 0.0
    %463 = vmatprep.subr.mxu0 0.0
    %464 = vmatpush1.xpose.msra.mxu0 0.0
    %465 = vmatprep.subr.mxu0 0.0
    %466 = vmatpush1.xpose.msra.mxu0 0.0
    %467 = vmatprep.subr.mxu0 0.0
    %468 = vmatpush1.xpose.msra.mxu0 0.0
    %469 = vmatprep.subr.mxu0 0.0
    %470 = vmatpush1.xpose.msra.mxu0 0.0
    %471 = vmatprep.subr.mxu0 0.0
    %472 = vmatpush1.xpose.msra.mxu0 0.0
    %473 = vmatprep.subr.mxu0 0.0
    %474 = vmatpush1.xpose.msra.mxu0 0.0
    %475 = vmatprep.subr.mxu0 0.0
    %476 = vmatpush1.xpose.msra.mxu0 0.0
    %477 = vmatprep.subr.mxu0 0.0
    %478 = vmatpush1.xpose.msra.mxu0 0.0
    %479 = vmatprep.subr.mxu0 0.0
    %480 = vmatpush1.xpose.msra.mxu0 0.0
    %481 = vmatprep.subr.mxu0 0.0
    %482 = vmatpush1.xpose.msra.mxu0 0.0
    %483 = vmatprep.subr.mxu0 0.0
    %484 = vmatpush1.xpose.msra.mxu0 0.0
    %485 = vmatprep.subr.mxu0 0.0
    %486 = vmatpush1.xpose.msra.mxu0 0.0
    %487 = vmatprep.subr.mxu0 0.0
    %488 = vmatpush1.xpose.msra.mxu0 0.0
    %489 = vmatprep.subr.mxu0 0.0
    %490 = vmatpush1.xpose.msra.mxu0 0.0
    %491 = vmatprep.subr.mxu0 0.0
    %492 = vmatpush1.xpose.msra.mxu0 0.0
    %493 = vmatprep.subr.mxu0 0.0
    %494 = vmatpush1.xpose.msra.mxu0 0.0
    %495 = vmatprep.subr.mxu0 0.0
    %496 = vmatpush1.xpose.msra.mxu0 0.0
    %497 = vmatprep.subr.mxu0 0.0
    %498 = vmatpush1.xpose.msra.mxu0 0.0
    %499 = vmatprep.subr.mxu0 0.0
    %500 = vmatpush1.xpose.msra.mxu0 0.0
    %501 = vmatprep.subr.mxu0 0.0
    %502 = vmatpush1.xpose.msra.mxu0 0.0
    %503 = vmatprep.subr.mxu0 0.0
    %504 = vmatpush1.xpose.msra.mxu0 0.0
    %505 = vmatprep.mubr.f32.mxu0 0.0
    %506 = vmatmul.mubr.f32.gmra.mrb[0].mxu0 %v437
    %v507 = vpop.f32.mrb[0].mxu0
    %v508 = vadd.f32 %v30, %v507
    %v509 = vpop.f32.mrb[0].mxu0
    %510 = vdwg.mxu0
    %v511 = vsel %vm344, %v508, -inf
    %512 = vmax.xlane.f32.xlu0 %v511
    %v513 = vpop.xlane.xlu0 %512
    %v514 = vsub.f32 %v508, %v513
    %v515 = vmul.f32 %v514, 1.442695
    %v516 = vpow.pop %v515
    %v517 = vsel %vm344, %v516, 0.0
    %518 = vadd.xlane.f32.xlu0 %v517
    %v519 = vpop.xlane.xlu0 %518
    %v520 = vrcp.pop %v519
    %v521 = vmul.f32 %v516, %v520
    %522 = vrot.lane.b32.xlu0 %v256, 48
    %v523 = vpop.permute.xlu0 %522
    %v526 = vsel %vm344, %v521, 0
    %528 = vmatprep.subr.mxu0 0.0
    %529 = vmatpush1.msra.mxu0 %v523
    %530 = vmatprep.subr.mxu0 0.0
    %531 = vmatpush1.msra.mxu0 0.0
    %532 = vmatprep.subr.mxu0 0.0
    %533 = vmatpush1.msra.mxu0 0.0
    %534 = vmatprep.subr.mxu0 0.0
    %535 = vmatpush1.msra.mxu0 0.0
    %536 = vmatprep.subr.mxu0 0.0
    %537 = vmatpush1.msra.mxu0 0.0
    %538 = vmatprep.subr.mxu0 0.0
    %539 = vmatpush1.msra.mxu0 0.0
    %540 = vmatprep.subr.mxu0 0.0
    %541 = vmatpush1.msra.mxu0 0.0
    %542 = vmatprep.subr.mxu0 0.0
    %543 = vmatpush1.msra.mxu0 0.0
    %544 = vmatprep.subr.mxu0 0.0
    %545 = vmatpush1.msra.mxu0 0.0
    %546 = vmatprep.subr.mxu0 0.0
    %547 = vmatpush1.msra.mxu0 0.0
    %548 = vmatprep.subr.mxu0 0.0
    %549 = vmatpush1.msra.mxu0 0.0
    %550 = vmatprep.subr.mxu0 0.0
    %551 = vmatpush1.msra.mxu0 0.0
    %552 = vmatprep.subr.mxu0 0.0
    %553 = vmatpush1.msra.mxu0 0.0
    %554 = vmatprep.subr.mxu0 0.0
    %555 = vmatpush1.msra.mxu0 0.0
    %556 = vmatprep.subr.mxu0 0.0
    %557 = vmatpush1.msra.mxu0 0.0
    %558 = vmatprep.subr.mxu0 0.0
    %559 = vmatpush1.msra.mxu0 0.0
    %560 = vmatprep.subr.mxu0 0.0
    %561 = vmatpush1.msra.mxu0 0.0
    %562 = vmatprep.subr.mxu0 0.0
    %563 = vmatpush1.msra.mxu0 0.0
    %564 = vmatprep.subr.mxu0 0.0
    %565 = vmatpush1.msra.mxu0 0.0
    %566 = vmatprep.subr.mxu0 0.0
    %567 = vmatpush1.msra.mxu0 0.0
    %568 = vmatprep.subr.mxu0 0.0
    %569 = vmatpush1.msra.mxu0 0.0
    %570 = vmatprep.subr.mxu0 0.0
    %571 = vmatpush1.msra.mxu0 0.0
    %572 = vmatprep.subr.mxu0 0.0
    %573 = vmatpush1.msra.mxu0 0.0
    %574 = vmatprep.subr.mxu0 0.0
    %575 = vmatpush1.msra.mxu0 0.0
    %576 = vmatprep.subr.mxu0 0.0
    %577 = vmatpush1.msra.mxu0 0.0
    %578 = vmatprep.subr.mxu0 0.0
    %579 = vmatpush1.msra.mxu0 0.0
    %580 = vmatprep.subr.mxu0 0.0
    %581 = vmatpush1.msra.mxu0 0.0
    %582 = vmatprep.subr.mxu0 0.0
    %583 = vmatpush1.msra.mxu0 0.0
    %584 = vmatprep.subr.mxu0 0.0
    %585 = vmatpush1.msra.mxu0 0.0
    %586 = vmatprep.subr.mxu0 0.0
    %587 = vmatpush1.msra.mxu0 0.0
    %588 = vmatprep.subr.mxu0 0.0
    %589 = vmatpush1.msra.mxu0 0.0
    %590 = vmatprep.subr.mxu0 0.0
    %591 = vmatpush1.msra.mxu0 0.0
    %592 = vmatprep.mubr.f32.mxu0 0.0
    %593 = vmatmul.mubr.f32.gmra.mrb[0].mxu0 %v526
    %v594 = vpop.f32.mrb[0].mxu0
    %v595 = vadd.f32 0.0, %v594
    %v596 = vpop.f32.mrb[0].mxu0
    %597 = vdwg.mxu0
    %599 = vrot.lane.b32.xlu0 %v595, 16
    %v600 = vpop.permute.xlu0 %599
    %vm602 = vcmask 261248
    %603 = vst.msk [vmem:[#allocation2] sm:$0xff] %vm602, %v600
    %v604 = vmul.f32 %v261, 0.25
    %606 = vrot.lane.b32.xlu0 %v261, 96
    %v607 = vpop.permute.xlu0 %606
    %v609 = vsel %vm268, %v604, 0
    %v611 = vsel %vm268, %v607, 0
    %613 = vmatprep.subr.mxu0 0.0
    %614 = vmatpush1.xpose.msra.mxu0 %v611
    %615 = vmatprep.subr.mxu0 0.0
    %616 = vmatpush1.xpose.msra.mxu0 0.0
    %617 = vmatprep.subr.mxu0 0.0
    %618 = vmatpush1.xpose.msra.mxu0 0.0
    %619 = vmatprep.subr.mxu0 0.0
    %620 = vmatpush1.xpose.msra.mxu0 0.0
    %621 = vmatprep.subr.mxu0 0.0
    %622 = vmatpush1.xpose.msra.mxu0 0.0
    %623 = vmatprep.subr.mxu0 0.0
    %624 = vmatpush1.xpose.msra.mxu0 0.0
    %625 = vmatprep.subr.mxu0 0.0
    %626 = vmatpush1.xpose.msra.mxu0 0.0
    %627 = vmatprep.subr.mxu0 0.0
    %628 = vmatpush1.xpose.msra.mxu0 0.0
    %629 = vmatprep.subr.mxu0 0.0
    %630 = vmatpush1.xpose.msra.mxu0 0.0
    %631 = vmatprep.subr.mxu0 0.0
    %632 = vmatpush1.xpose.msra.mxu0 0.0
    %633 = vmatprep.subr.mxu0 0.0
    %634 = vmatpush1.xpose.msra.mxu0 0.0
    %635 = vmatprep.subr.mxu0 0.0
    %636 = vmatpush1.xpose.msra.mxu0 0.0
    %637 = vmatprep.subr.mxu0 0.0
    %638 = vmatpush1.xpose.msra.mxu0 0.0
    %639 = vmatprep.subr.mxu0 0.0
    %640 = vmatpush1.xpose.msra.mxu0 0.0
    %641 = vmatprep.subr.mxu0 0.0
    %642 = vmatpush1.xpose.msra.mxu0 0.0
    %643 = vmatprep.subr.mxu0 0.0
    %644 = vmatpush1.xpose.msra.mxu0 0.0
    %645 = vmatprep.subr.mxu0 0.0
    %646 = vmatpush1.xpose.msra.mxu0 0.0
    %647 = vmatprep.subr.mxu0 0.0
    %648 = vmatpush1.xpose.msra.mxu0 0.0
    %649 = vmatprep.subr.mxu0 0.0
    %650 = vmatpush1.xpose.msra.mxu0 0.0
    %651 = vmatprep.subr.mxu0 0.0
    %652 = vmatpush1.xpose.msra.mxu0 0.0
    %653 = vmatprep.subr.mxu0 0.0
    %654 = vmatpush1.xpose.msra.mxu0 0.0
    %655 = vmatprep.subr.mxu0 0.0
    %656 = vmatpush1.xpose.msra.mxu0 0.0
    %657 = vmatprep.subr.mxu0 0.0
    %658 = vmatpush1.xpose.msra.mxu0 0.0
    %659 = vmatprep.subr.mxu0 0.0
    %660 = vmatpush1.xpose.msra.mxu0 0.0
    %661 = vmatprep.subr.mxu0 0.0
    %662 = vmatpush1.xpose.msra.mxu0 0.0
    %663 = vmatprep.subr.mxu0 0.0
    %664 = vmatpush1.xpose.msra.mxu0 0.0
    %665 = vmatprep.subr.mxu0 0.0
    %666 = vmatpush1.xpose.msra.mxu0 0.0
    %667 = vmatprep.subr.mxu0 0.0
    %668 = vmatpush1.xpose.msra.mxu0 0.0
    %669 = vmatprep.subr.mxu0 0.0
    %670 = vmatpush1.xpose.msra.mxu0 0.0
    %671 = vmatprep.subr.mxu0 0.0
    %672 = vmatpush1.xpose.msra.mxu0 0.0
    %673 = vmatprep.subr.mxu0 0.0
    %674 = vmatpush1.xpose.msra.mxu0 0.0
    %675 = vmatprep.subr.mxu0 0.0
    %676 = vmatpush1.xpose.msra.mxu0 0.0
    %677 = vmatprep.mubr.f32.mxu0 0.0
    %678 = vmatmul.mubr.f32.gmra.mrb[0].mxu0 %v609
    %v679 = vpop.f32.mrb[0].mxu0
    %v680 = vadd.f32 %v30, %v679
    %v681 = vpop.f32.mrb[0].mxu0
    %682 = vdwg.mxu0
    %v683 = vsel %vm344, %v680, -inf
    %684 = vmax.xlane.f32.xlu0 %v683
    %v685 = vpop.xlane.xlu0 %684
    %v686 = vsub.f32 %v680, %v685
    %v687 = vmul.f32 %v686, 1.442695
    %v688 = vpow.pop %v687
    %v689 = vsel %vm344, %v688, 0.0
    %690 = vadd.xlane.f32.xlu0 %v689
    %v691 = vpop.xlane.xlu0 %690
    %v692 = vrcp.pop %v691
    %v693 = vmul.f32 %v688, %v692
    %694 = vrot.lane.b32.xlu0 %v261, 64
    %v695 = vpop.permute.xlu0 %694
    %v698 = vsel %vm344, %v693, 0
    %700 = vmatprep.subr.mxu0 0.0
    %701 = vmatpush1.msra.mxu0 %v695
    %702 = vmatprep.subr.mxu0 0.0
    %703 = vmatpush1.msra.mxu0 0.0
    %704 = vmatprep.subr.mxu0 0.0
    %705 = vmatpush1.msra.mxu0 0.0
    %706 = vmatprep.subr.mxu0 0.0
    %707 = vmatpush1.msra.mxu0 0.0
    %708 = vmatprep.subr.mxu0 0.0
    %709 = vmatpush1.msra.mxu0 0.0
    %710 = vmatprep.subr.mxu0 0.0
    %711 = vmatpush1.msra.mxu0 0.0
    %712 = vmatprep.subr.mxu0 0.0
    %713 = vmatpush1.msra.mxu0 0.0
    %714 = vmatprep.subr.mxu0 0.0
    %715 = vmatpush1.msra.mxu0 0.0
    %716 = vmatprep.subr.mxu0 0.0
    %717 = vmatpush1.msra.mxu0 0.0
    %718 = vmatprep.subr.mxu0 0.0
    %719 = vmatpush1.msra.mxu0 0.0
    %720 = vmatprep.subr.mxu0 0.0
    %721 = vmatpush1.msra.mxu0 0.0
    %722 = vmatprep.subr.mxu0 0.0
    %723 = vmatpush1.msra.mxu0 0.0
    %724 = vmatprep.subr.mxu0 0.0
    %725 = vmatpush1.msra.mxu0 0.0
    %726 = vmatprep.subr.mxu0 0.0
    %727 = vmatpush1.msra.mxu0 0.0
    %728 = vmatprep.subr.mxu0 0.0
    %729 = vmatpush1.msra.mxu0 0.0
    %730 = vmatprep.subr.mxu0 0.0
    %731 = vmatpush1.msra.mxu0 0.0
    %732 = vmatprep.subr.mxu0 0.0
    %733 = vmatpush1.msra.mxu0 0.0
    %734 = vmatprep.subr.mxu0 0.0
    %735 = vmatpush1.msra.mxu0 0.0
    %736 = vmatprep.subr.mxu0 0.0
    %737 = vmatpush1.msra.mxu0 0.0
    %738 = vmatprep.subr.mxu0 0.0
    %739 = vmatpush1.msra.mxu0 0.0
    %740 = vmatprep.subr.mxu0 0.0
    %741 = vmatpush1.msra.mxu0 0.0
    %742 = vmatprep.subr.mxu0 0.0
    %743 = vmatpush1.msra.mxu0 0.0
    %744 = vmatprep.subr.mxu0 0.0
    %745 = vmatpush1.msra.mxu0 0.0
    %746 = vmatprep.subr.mxu0 0.0
    %747 = vmatpush1.msra.mxu0 0.0
    %748 = vmatprep.subr.mxu0 0.0
    %749 = vmatpush1.msra.mxu0 0.0
    %750 = vmatprep.subr.mxu0 0.0
    %751 = vmatpush1.msra.mxu0 0.0
    %752 = vmatprep.subr.mxu0 0.0
    %753 = vmatpush1.msra.mxu0 0.0
    %754 = vmatprep.subr.mxu0 0.0
    %755 = vmatpush1.msra.mxu0 0.0
    %756 = vmatprep.subr.mxu0 0.0
    %757 = vmatpush1.msra.mxu0 0.0
    %758 = vmatprep.subr.mxu0 0.0
    %759 = vmatpush1.msra.mxu0 0.0
    %760 = vmatprep.subr.mxu0 0.0
    %761 = vmatpush1.msra.mxu0 0.0
    %762 = vmatprep.subr.mxu0 0.0
    %763 = vmatpush1.msra.mxu0 0.0
    %764 = vmatprep.mubr.f32.mxu0 0.0
    %765 = vmatmul.mubr.f32.gmra.mrb[0].mxu0 %v698
    %v766 = vpop.f32.mrb[0].mxu0
    %v767 = vadd.f32 0.0, %v766
    %v768 = vpop.f32.mrb[0].mxu0
    %769 = vdwg.mxu0
    %770 = vst.msk [vmem:[#allocation2 + $0x8] sm:$0xff] %vm268, %v767
    %771 = vrot.lane.b32.xlu0 %v604, 112
    %v772 = vpop.permute.xlu0 %771
    %773 = vrot.lane.b32.xlu0 %v261, 80
    %v774 = vpop.permute.xlu0 %773
    %v775 = vsel %vm268, %v772, 0
    %v777 = vsel %vm268, %v774, 0
    %779 = vmatprep.subr.mxu0 0.0
    %780 = vmatpush1.xpose.msra.mxu0 %v777
    %781 = vmatprep.subr.mxu0 0.0
    %782 = vmatpush1.xpose.msra.mxu0 0.0
    %783 = vmatprep.subr.mxu0 0.0
    %784 = vmatpush1.xpose.msra.mxu0 0.0
    %785 = vmatprep.subr.mxu0 0.0
    %786 = vmatpush1.xpose.msra.mxu0 0.0
    %787 = vmatprep.subr.mxu0 0.0
    %788 = vmatpush1.xpose.msra.mxu0 0.0
    %789 = vmatprep.subr.mxu0 0.0
    %790 = vmatpush1.xpose.msra.mxu0 0.0
    %791 = vmatprep.subr.mxu0 0.0
    %792 = vmatpush1.xpose.msra.mxu0 0.0
    %793 = vmatprep.subr.mxu0 0.0
    %794 = vmatpush1.xpose.msra.mxu0 0.0
    %795 = vmatprep.subr.mxu0 0.0
    %796 = vmatpush1.xpose.msra.mxu0 0.0
    %797 = vmatprep.subr.mxu0 0.0
    %798 = vmatpush1.xpose.msra.mxu0 0.0
    %799 = vmatprep.subr.mxu0 0.0
    %800 = vmatpush1.xpose.msra.mxu0 0.0
    %801 = vmatprep.subr.mxu0 0.0
    %802 = vmatpush1.xpose.msra.mxu0 0.0
    %803 = vmatprep.subr.mxu0 0.0
    %804 = vmatpush1.xpose.msra.mxu0 0.0
    %805 = vmatprep.subr.mxu0 0.0
    %806 = vmatpush1.xpose.msra.mxu0 0.0
    %807 = vmatprep.subr.mxu0 0.0
    %808 = vmatpush1.xpose.msra.mxu0 0.0
    %809 = vmatprep.subr.mxu0 0.0
    %810 = vmatpush1.xpose.msra.mxu0 0.0
    %811 = vmatprep.subr.mxu0 0.0
    %812 = vmatpush1.xpose.msra.mxu0 0.0
    %813 = vmatprep.subr.mxu0 0.0
    %814 = vmatpush1.xpose.msra.mxu0 0.0
    %815 = vmatprep.subr.mxu0 0.0
    %816 = vmatpush1.xpose.msra.mxu0 0.0
    %817 = vmatprep.subr.mxu0 0.0
    %818 = vmatpush1.xpose.msra.mxu0 0.0
    %819 = vmatprep.subr.mxu0 0.0
    %820 = vmatpush1.xpose.msra.mxu0 0.0
    %821 = vmatprep.subr.mxu0 0.0
    %822 = vmatpush1.xpose.msra.mxu0 0.0
    %823 = vmatprep.subr.mxu0 0.0
    %824 = vmatpush1.xpose.msra.mxu0 0.0
    %825 = vmatprep.subr.mxu0 0.0
    %826 = vmatpush1.xpose.msra.mxu0 0.0
    %827 = vmatprep.subr.mxu0 0.0
    %828 = vmatpush1.xpose.msra.mxu0 0.0
    %829 = vmatprep.subr.mxu0 0.0
    %830 = vmatpush1.xpose.msra.mxu0 0.0
    %831 = vmatprep.subr.mxu0 0.0
    %832 = vmatpush1.xpose.msra.mxu0 0.0
    %833 = vmatprep.subr.mxu0 0.0
    %834 = vmatpush1.xpose.msra.mxu0 0.0
    %835 = vmatprep.subr.mxu0 0.0
    %836 = vmatpush1.xpose.msra.mxu0 0.0
    %837 = vmatprep.subr.mxu0 0.0
    %838 = vmatpush1.xpose.msra.mxu0 0.0
    %839 = vmatprep.subr.mxu0 0.0
    %840 = vmatpush1.xpose.msra.mxu0 0.0
    %841 = vmatprep.subr.mxu0 0.0
    %842 = vmatpush1.xpose.msra.mxu0 0.0
    %843 = vmatprep.mubr.f32.mxu0 0.0
    %844 = vmatmul.mubr.f32.gmra.mrb[0].mxu0 %v775
    %v845 = vpop.f32.mrb[0].mxu0
    %v846 = vadd.f32 %v30, %v845
    %v847 = vpop.f32.mrb[0].mxu0
    %848 = vdwg.mxu0
    %v849 = vsel %vm344, %v846, -inf
    %850 = vmax.xlane.f32.xlu0 %v849
    %v851 = vpop.xlane.xlu0 %850
    %v852 = vsub.f32 %v846, %v851
    %v853 = vmul.f32 %v852, 1.442695
    %v854 = vpow.pop %v853
    %v855 = vsel %vm344, %v854, 0.0
    %856 = vadd.xlane.f32.xlu0 %v855
    %v857 = vpop.xlane.xlu0 %856
    %v858 = vrcp.pop %v857
    %v859 = vmul.f32 %v854, %v858
    %860 = vrot.lane.b32.xlu0 %v261, 48
    %v861 = vpop.permute.xlu0 %860
    %v864 = vsel %vm344, %v859, 0
    %866 = vmatprep.subr.mxu0 0.0
    %867 = vmatpush1.msra.mxu0 %v861
    %868 = vmatprep.subr.mxu0 0.0
    %869 = vmatpush1.msra.mxu0 0.0
    %870 = vmatprep.subr.mxu0 0.0
    %871 = vmatpush1.msra.mxu0 0.0
    %872 = vmatprep.subr.mxu0 0.0
    %873 = vmatpush1.msra.mxu0 0.0
    %874 = vmatprep.subr.mxu0 0.0
    %875 = vmatpush1.msra.mxu0 0.0
    %876 = vmatprep.subr.mxu0 0.0
    %877 = vmatpush1.msra.mxu0 0.0
    %878 = vmatprep.subr.mxu0 0.0
    %879 = vmatpush1.msra.mxu0 0.0
    %880 = vmatprep.subr.mxu0 0.0
    %881 = vmatpush1.msra.mxu0 0.0
    %882 = vmatprep.subr.mxu0 0.0
    %883 = vmatpush1.msra.mxu0 0.0
    %884 = vmatprep.subr.mxu0 0.0
    %885 = vmatpush1.msra.mxu0 0.0
    %886 = vmatprep.subr.mxu0 0.0
    %887 = vmatpush1.msra.mxu0 0.0
    %888 = vmatprep.subr.mxu0 0.0
    %889 = vmatpush1.msra.mxu0 0.0
    %890 = vmatprep.subr.mxu0 0.0
    %891 = vmatpush1.msra.mxu0 0.0
    %892 = vmatprep.subr.mxu0 0.0
    %893 = vmatpush1.msra.mxu0 0.0
    %894 = vmatprep.subr.mxu0 0.0
    %895 = vmatpush1.msra.mxu0 0.0
    %896 = vmatprep.subr.mxu0 0.0
    %897 = vmatpush1.msra.mxu0 0.0
    %898 = vmatprep.subr.mxu0 0.0
    %899 = vmatpush1.msra.mxu0 0.0
    %900 = vmatprep.subr.mxu0 0.0
    %901 = vmatpush1.msra.mxu0 0.0
    %902 = vmatprep.subr.mxu0 0.0
    %903 = vmatpush1.msra.mxu0 0.0
    %904 = vmatprep.subr.mxu0 0.0
    %905 = vmatpush1.msra.mxu0 0.0
    %906 = vmatprep.subr.mxu0 0.0
    %907 = vmatpush1.msra.mxu0 0.0
    %908 = vmatprep.subr.mxu0 0.0
    %909 = vmatpush1.msra.mxu0 0.0
    %910 = vmatprep.subr.mxu0 0.0
    %911 = vmatpush1.msra.mxu0 0.0
    %912 = vmatprep.subr.mxu0 0.0
    %913 = vmatpush1.msra.mxu0 0.0
    %914 = vmatprep.subr.mxu0 0.0
    %915 = vmatpush1.msra.mxu0 0.0
    %916 = vmatprep.subr.mxu0 0.0
    %917 = vmatpush1.msra.mxu0 0.0
    %918 = vmatprep.subr.mxu0 0.0
    %919 = vmatpush1.msra.mxu0 0.0
    %920 = vmatprep.subr.mxu0 0.0
    %921 = vmatpush1.msra.mxu0 0.0
    %922 = vmatprep.subr.mxu0 0.0
    %923 = vmatpush1.msra.mxu0 0.0
    %924 = vmatprep.subr.mxu0 0.0
    %925 = vmatpush1.msra.mxu0 0.0
    %926 = vmatprep.subr.mxu0 0.0
    %927 = vmatpush1.msra.mxu0 0.0
    %928 = vmatprep.subr.mxu0 0.0
    %929 = vmatpush1.msra.mxu0 0.0
    %930 = vmatprep.mubr.f32.mxu0 0.0
    %931 = vmatmul.mubr.f32.gmra.mrb[0].mxu0 %v864
    %v932 = vpop.f32.mrb[0].mxu0
    %v933 = vadd.f32 0.0, %v932
    %v934 = vpop.f32.mrb[0].mxu0
    %935 = vdwg.mxu0
    %937 = vrot.lane.b32.xlu0 %v933, 16
    %v938 = vpop.permute.xlu0 %937
    %940 = vst.msk [vmem:[#allocation2 + $0x8] sm:$0xff] %vm602, %v938
    %v941 = vld [vmem:[#allocation2] sm:$0xff]
    %v942 = vld [vmem:[#allocation2 + $0x8] sm:$0xff]
    %v943 = vld [vmem:[#allocation3 + $0x38] sm:$0xff]
    %v944 = vld [vmem:[#allocation3 + $0x40] sm:$0xff]
    %v945 = vld [vmem:[#allocation3 + $0x48] sm:$0xff]
    %v946 = vld [vmem:[#allocation3 + $0x50] sm:$0xff]
    %v947 = vld [vmem:[#allocation3 + $0x58] sm:$0x1]
    %v948 = vlaneseq
    %v949 = vshrl.u32 %v948, 7
    %v950 = vsub.s32 0, %v949
    %v951 = vrot.slane %v947, %v950
    %v953 = vsel %vm134, %v941, 0
    %v956 = vsel %vm134, %v942, 0
    %958 = vmatprep.subr.mxu0 0.0
    %959 = vmatpush1.msra.mxu0 %v943
    %960 = vmatprep.subr.mxu0 0.0
    %961 = vmatpush1.msra.mxu0 %v944
    %962 = vmatprep.subr.mxu0 0.0
    %963 = vmatpush1.msra.mxu0 %v945
    %964 = vmatprep.subr.mxu0 0.0
    %965 = vmatpush1.msra.mxu0 %v946
    %966 = vmatprep.subr.mxu0 0.0
    %967 = vmatpush1.msra.mxu0 0.0
    %968 = vmatprep.subr.mxu0 0.0
    %969 = vmatpush1.msra.mxu0 0.0
    %970 = vmatprep.subr.mxu0 0.0
    %971 = vmatpush1.msra.mxu0 0.0
    %972 = vmatprep.subr.mxu0 0.0
    %973 = vmatpush1.msra.mxu0 0.0
    %974 = vmatprep.subr.mxu0 0.0
    %975 = vmatpush1.msra.mxu0 0.0
    %976 = vmatprep.subr.mxu0 0.0
    %977 = vmatpush1.msra.mxu0 0.0
    %978 = vmatprep.subr.mxu0 0.0
    %979 = vmatpush1.msra.mxu0 0.0
    %980 = vmatprep.subr.mxu0 0.0
    %981 = vmatpush1.msra.mxu0 0.0
    %982 = vmatprep.subr.mxu0 0.0
    %983 = vmatpush1.msra.mxu0 0.0
    %984 = vmatprep.subr.mxu0 0.0
    %985 = vmatpush1.msra.mxu0 0.0
    %986 = vmatprep.subr.mxu0 0.0
    %987 = vmatpush1.msra.mxu0 0.0
    %988 = vmatprep.subr.mxu0 0.0
    %989 = vmatpush1.msra.mxu0 0.0
    %990 = vmatprep.subr.mxu0 0.0
    %991 = vmatpush1.msra.mxu0 0.0
    %992 = vmatprep.subr.mxu0 0.0
    %993 = vmatpush1.msra.mxu0 0.0
    %994 = vmatprep.subr.mxu0 0.0
    %995 = vmatpush1.msra.mxu0 0.0
    %996 = vmatprep.subr.mxu0 0.0
    %997 = vmatpush1.msra.mxu0 0.0
    %998 = vmatprep.subr.mxu0 0.0
    %999 = vmatpush1.msra.mxu0 0.0
    %1000 = vmatprep.subr.mxu0 0.0
    %1001 = vmatpush1.msra.mxu0 0.0
    %1002 = vmatprep.subr.mxu0 0.0
    %1003 = vmatpush1.msra.mxu0 0.0
    %1004 = vmatprep.subr.mxu0 0.0
    %1005 = vmatpush1.msra.mxu0 0.0
    %1006 = vmatprep.subr.mxu0 0.0
    %1007 = vmatpush1.msra.mxu0 0.0
    %1008 = vmatprep.subr.mxu0 0.0
    %1009 = vmatpush1.msra.mxu0 0.0
    %1010 = vmatprep.subr.mxu0 0.0
    %1011 = vmatpush1.msra.mxu0 0.0
    %1012 = vmatprep.subr.mxu0 0.0
    %1013 = vmatpush1.msra.mxu0 0.0
    %1014 = vmatprep.subr.mxu0 0.0
    %1015 = vmatpush1.msra.mxu0 0.0
    %1016 = vmatprep.subr.mxu0 0.0
    %1017 = vmatpush1.msra.mxu0 0.0
    %1018 = vmatprep.subr.mxu0 0.0
    %1019 = vmatpush1.msra.mxu0 0.0
    %1020 = vmatprep.subr.mxu0 0.0
    %1021 = vmatpush1.msra.mxu0 0.0
    %1022 = vmatprep.mubr.f32.mxu0 0.0
    %1023 = vmatmul.mubr.f32.gmra.mrb[0].mxu0 %v953
    %v1024 = vpop.f32.mrb[0].mxu0
    %v1025 = vadd.f32 %v951, %v1024
    %v1026 = vpop.f32.mrb[0].mxu0
    %1027 = vmatprep.mubr.f32.mxu0 0.0
    %1028 = vmatmul.mubr.f32.gmra.mrb[0].mxu0 %v956
    %v1029 = vpop.f32.mrb[0].mxu0
    %v1030 = vadd.f32 %v951, %v1029
    %v1031 = vpop.f32.mrb[0].mxu0
    %1032 = vdwg.mxu0
    %v1033 = vadd.f32 %v1025, %v132
    %v1034 = vadd.f32 %v1030, %v133
    %v1035 = vsel %vm134, %v1033, 0.0
    %1036 = vadd.xlane.f32.xlu0 %v1035
    %v1037 = vpop.xlane.xlu0 %1036
    %v1038 = vsel %vm134, %v1034, 0.0
    %1039 = vadd.xlane.f32.xlu0 %v1038
    %v1040 = vpop.xlane.xlu0 %1039
    %v1041 = vmul.f32 %v1037, %v141
    %v1042 = vmul.f32 %v1040, %v141
    %v1043 = vsub.f32 %v1033, %v1041
    %v1044 = vsub.f32 %v1034, %v1042
    %v1045 = vmul.f32 %v1043, %v1043
    %v1046 = vmul.f32 %v1044, %v1044
    %v1047 = vsel %vm134, %v1045, 0.0
    %1048 = vadd.xlane.f32.xlu0 %v1047
    %v1049 = vpop.xlane.xlu0 %1048
    %v1050 = vsel %vm134, %v1046, 0.0
    %1051 = vadd.xlane.f32.xlu0 %v1050
    %v1052 = vpop.xlane.xlu0 %1051
    %v1053 = vmul.f32 %v1049, %v141
    %v1054 = vmul.f32 %v1052, %v141
    %v1055 = vadd.f32 %v1053, 1e-05
    %v1056 = vadd.f32 %v1054, 1e-05
    %v1057 = vrsqrt.pop %v1055
    %v1058 = vrsqrt.pop %v1056
    %v1059 = vmul.f32 %v1043, %v1057
    %v1060 = vmul.f32 %v1044, %v1058
    %v1061 = vmul.f32 %v1059, %v165
    %v1062 = vmul.f32 %v1060, %v165
    %v1063 = vadd.f32 %v1061, %v171
    %v1064 = vadd.f32 %v1062, %v171
    %v1065 = vld [vmem:[#allocation3 + $0x60] sm:$0xff]
    %v1066 = vld [vmem:[#allocation3 + $0x68] sm:$0xff]
    %v1067 = vld [vmem:[#allocation3 + $0x70] sm:$0xff]
    %v1068 = vld [vmem:[#allocation3 + $0x78] sm:$0xff]
    %v1069 = vld [vmem:[#allocation3 + $0x80] sm:$0x1]
    %v1070 = vlaneseq
    %v1071 = vshrl.u32 %v1070, 7
    %v1072 = vsub.s32 0, %v1071
    %v1073 = vrot.slane %v1069, %v1072
    %v1075 = vsel %vm134, %v1063, 0
    %v1078 = vsel %vm134, %v1064, 0
    %1080 = vmatprep.subr.mxu0 0.0
    %1081 = vmatpush1.msra.mxu0 %v1065
    %1082 = vmatprep.subr.mxu0 0.0
    %1083 = vmatpush1.msra.mxu0 %v1066
    %1084 = vmatprep.subr.mxu0 0.0
    %1085 = vmatpush1.msra.mxu0 %v1067
    %1086 = vmatprep.subr.mxu0 0.0
    %1087 = vmatpush1.msra.mxu0 %v1068
    %1088 = vmatprep.subr.mxu0 0.0
    %1089 = vmatpush1.msra.mxu0 0.0
    %1090 = vmatprep.subr.mxu0 0.0
    %1091 = vmatpush1.msra.mxu0 0.0
    %1092 = vmatprep.subr.mxu0 0.0
    %1093 = vmatpush1.msra.mxu0 0.0
    %1094 = vmatprep.subr.mxu0 0.0
    %1095 = vmatpush1.msra.mxu0 0.0
    %1096 = vmatprep.subr.mxu0 0.0
    %1097 = vmatpush1.msra.mxu0 0.0
    %1098 = vmatprep.subr.mxu0 0.0
    %1099 = vmatpush1.msra.mxu0 0.0
    %1100 = vmatprep.subr.mxu0 0.0
    %1101 = vmatpush1.msra.mxu0 0.0
    %1102 = vmatprep.subr.mxu0 0.0
    %1103 = vmatpush1.msra.mxu0 0.0
    %1104 = vmatprep.subr.mxu0 0.0
    %1105 = vmatpush1.msra.mxu0 0.0
    %1106 = vmatprep.subr.mxu0 0.0
    %1107 = vmatpush1.msra.mxu0 0.0
    %1108 = vmatprep.subr.mxu0 0.0
    %1109 = vmatpush1.msra.mxu0 0.0
    %1110 = vmatprep.subr.mxu0 0.0
    %1111 = vmatpush1.msra.mxu0 0.0
    %1112 = vmatprep.subr.mxu0 0.0
    %1113 = vmatpush1.msra.mxu0 0.0
    %1114 = vmatprep.subr.mxu0 0.0
    %1115 = vmatpush1.msra.mxu0 0.0
    %1116 = vmatprep.subr.mxu0 0.0
    %1117 = vmatpush1.msra.mxu0 0.0
    %1118 = vmatprep.subr.mxu0 0.0
    %1119 = vmatpush1.msra.mxu0 0.0
    %1120 = vmatprep.subr.mxu0 0.0
    %1121 = vmatpush1.msra.mxu0 0.0
    %1122 = vmatprep.subr.mxu0 0.0
    %1123 = vmatpush1.msra.mxu0 0.0
    %1124 = vmatprep.subr.mxu0 0.0
    %1125 = vmatpush1.msra.mxu0 0.0
    %1126 = vmatprep.subr.mxu0 0.0
    %1127 = vmatpush1.msra.mxu0 0.0
    %1128 = vmatprep.subr.mxu0 0.0
    %1129 = vmatpush1.msra.mxu0 0.0
    %1130 = vmatprep.subr.mxu0 0.0
    %1131 = vmatpush1.msra.mxu0 0.0
    %1132 = vmatprep.subr.mxu0 0.0
    %1133 = vmatpush1.msra.mxu0 0.0
    %1134 = vmatprep.subr.mxu0 0.0
    %1135 = vmatpush1.msra.mxu0 0.0
    %1136 = vmatprep.subr.mxu0 0.0
    %1137 = vmatpush1.msra.mxu0 0.0
    %1138 = vmatprep.subr.mxu0 0.0
    %1139 = vmatpush1.msra.mxu0 0.0
    %1140 = vmatprep.subr.mxu0 0.0
    %1141 = vmatpush1.msra.mxu0 0.0
    %1142 = vmatprep.subr.mxu0 0.0
    %1143 = vmatpush1.msra.mxu0 0.0
    %1144 = vmatprep.mubr.f32.mxu0 0.0
    %1145 = vmatmul.mubr.f32.gmra.mrb[0].mxu0 %v1075
    %v1146 = vpop.f32.mrb[0].mxu0
    %v1147 = vadd.f32 %v1073, %v1146
    %v1148 = vpop.f32.mrb[0].mxu0
    %1149 = vmatprep.mubr.f32.mxu0 0.0
    %1150 = vmatmul.mubr.f32.gmra.mrb[0].mxu0 %v1078
    %v1151 = vpop.f32.mrb[0].mxu0
    %v1152 = vadd.f32 %v1073, %v1151
    %v1153 = vpop.f32.mrb[0].mxu0
    %1154 = vdwg.mxu0
    %v1155 = vmul.f32 %v1147, %v1147
    %v1156 = vmul.f32 %v1152, %v1152
    %v1157 = vmul.f32 %v1147, %v1155
    %v1158 = vmul.f32 %v1152, %v1156
    %v1159 = vmul.f32 %v1157, 0.044715
    %v1160 = vmul.f32 %v1158, 0.044715
    %v1161 = vadd.f32 %v1147, %v1159
    %v1162 = vadd.f32 %v1152, %v1160
    %v1163 = vmul.f32 %v1161, 0.7978846
    %v1164 = vmul.f32 %v1162, 0.7978846
    %v1165 = vtanh.pop %v1163
    %v1166 = vtanh.pop %v1164
    %v1167 = vadd.f32 %v1165, 1.0
    %v1168 = vadd.f32 %v1166, 1.0
    %v1169 = vmul.f32 %v1167, 0.5
    %v1170 = vmul.f32 %v1168, 0.5
    %v1171 = vmul.f32 %v1147, %v1169
    %v1172 = vmul.f32 %v1152, %v1170
    %v1173 = vld [vmem:[#allocation3 + $0x88] sm:$0xff]
    %v1174 = vld [vmem:[#allocation3 + $0x90] sm:$0xff]
    %v1175 = vld [vmem:[#allocation3 + $0x98] sm:$0xff]
    %v1176 = vld [vmem:[#allocation3 + $0xa0] sm:$0xff]
    %v1177 = vld [vmem:[#allocation3 + $0xa8] sm:$0xff]
    %v1178 = vld [vmem:[#allocation3 + $0xb0] sm:$0xff]
    %v1179 = vld [vmem:[#allocation3 + $0xb8] sm:$0xff]
    %v1180 = vld [vmem:[#allocation3 + $0xc0] sm:$0xff]
    %v1181 = vld [vmem:[#allocation3 + $0xc8] sm:$0x1]
    %v1182 = vlaneseq
    %v1183 = vshrl.u32 %v1182, 7
    %v1184 = vsub.s32 0, %v1183
    %v1185 = vrot.slane %v1181, %v1184
    %vm1186 = vcmask 523264
    %v1188 = vsel %vm1186, %v1171, 0
    %v1191 = vsel %vm1186, %v1172, 0
    %1193 = vmatprep.subr.mxu0 0.0
    %1194 = vmatpush1.msra.mxu0 %v1173
    %1195 = vmatprep.subr.mxu0 0.0
    %1196 = vmatpush1.msra.mxu0 %v1174
    %1197 = vmatprep.subr.mxu0 0.0
    %1198 = vmatpush1.msra.mxu0 %v1175
    %1199 = vmatprep.subr.mxu0 0.0
    %1200 = vmatpush1.msra.mxu0 %v1176
    %1201 = vmatprep.subr.mxu0 0.0
    %1202 = vmatpush1.msra.mxu0 %v1177
    %1203 = vmatprep.subr.mxu0 0.0
    %1204 = vmatpush1.msra.mxu0 %v1178
    %1205 = vmatprep.subr.mxu0 0.0
    %1206 = vmatpush1.msra.mxu0 %v1179
    %1207 = vmatprep.subr.mxu0 0.0
    %1208 = vmatpush1.msra.mxu0 %v1180
    %1209 = vmatprep.subr.mxu0 0.0
    %1210 = vmatpush1.msra.mxu0 0.0
    %1211 = vmatprep.subr.mxu0 0.0
    %1212 = vmatpush1.msra.mxu0 0.0
    %1213 = vmatprep.subr.mxu0 0.0
    %1214 = vmatpush1.msra.mxu0 0.0
    %1215 = vmatprep.subr.mxu0 0.0
    %1216 = vmatpush1.msra.mxu0 0.0
    %1217 = vmatprep.subr.mxu0 0.0
    %1218 = vmatpush1.msra.mxu0 0.0
    %1219 = vmatprep.subr.mxu0 0.0
    %1220 = vmatpush1.msra.mxu0 0.0
    %1221 = vmatprep.subr.mxu0 0.0
    %1222 = vmatpush1.msra.mxu0 0.0
    %1223 = vmatprep.subr.mxu0 0.0
    %1224 = vmatpush1.msra.mxu0 0.0
    %1225 = vmatprep.subr.mxu0 0.0
    %1226 = vmatpush1.msra.mxu0 0.0
    %1227 = vmatprep.subr.mxu0 0.0
    %1228 = vmatpush1.msra.mxu0 0.0
    %1229 = vmatprep.subr.mxu0 0.0
    %1230 = vmatpush1.msra.mxu0 0.0
    %1231 = vmatprep.subr.mxu0 0.0
    %1232 = vmatpush1.msra.mxu0 0.0
    %1233 = vmatprep.subr.mxu0 0.0
    %1234 = vmatpush1.msra.mxu0 0.0
    %1235 = vmatprep.subr.mxu0 0.0
    %1236 = vmatpush1.msra.mxu0 0.0
    %1237 = vmatprep.subr.mxu0 0.0
    %1238 = vmatpush1.msra.mxu0 0.0
    %1239 = vmatprep.subr.mxu0 0.0
    %1240 = vmatpush1.msra.mxu0 0.0
    %1241 = vmatprep.subr.mxu0 0.0
    %1242 = vmatpush1.msra.mxu0 0.0
    %1243 = vmatprep.subr.mxu0 0.0
    %1244 = vmatpush1.msra.mxu0 0.0
    %1245 = vmatprep.subr.mxu0 0.0
    %1246 = vmatpush1.msra.mxu0 0.0
    %1247 = vmatprep.subr.mxu0 0.0
    %1248 = vmatpush1.msra.mxu0 0.0
    %1249 = vmatprep.subr.mxu0 0.0
    %1250 = vmatpush1.msra.mxu0 0.0
    %1251 = vmatprep.subr.mxu0 0.0
    %1252 = vmatpush1.msra.mxu0 0.0
    %1253 = vmatprep.subr.mxu0 0.0
    %1254 = vmatpush1.msra.mxu0 0.0
    %1255 = vmatprep.subr.mxu0 0.0
    %1256 = vmatpush1.msra.mxu0 0.0
    %1257 = vmatprep.mubr.f32.mxu0 0.0
    %1258 = vmatmul.mubr.f32.gmra.mrb[0].mxu0 %v1188
    %v1259 = vpop.f32.mrb[0].mxu0
    %v1260 = vadd.f32 %v1185, %v1259
    %v1261 = vpop.f32.mrb[0].mxu0
    %1262 = vmatprep.mubr.f32.mxu0 0.0
    %1263 = vmatmul.mubr.f32.gmra.mrb[0].mxu0 %v1191
    %v1264 = vpop.f32.mrb[0].mxu0
    %v1265 = vadd.f32 %v1185, %v1264
    %v1266 = vpop.f32.mrb[0].mxu0
    %1267 = vdwg.mxu0
    %v1268 = vadd.f32 %v1033, %v1260
    %v1269 = vadd.f32 %v1034, %v1265
    %v1270 = vld [vmem:[#allocation3 + $0x1b8] sm:$0x1]
    %v1271 = vld [vmem:[#allocation3 + $0x1a8] sm:$0x1]
    %v1272 = vld [vmem:[#allocation3 + $0x1b0] sm:$0x1]
    %s1274 = vtos %v1270
    %v1275 = vstv %s1274
    %v1277 = vmul.f32 %v1275, %v1268
    %v1278 = vmul.f32 %v1275, %v1269
    %v1279 = vsel %vm134, %v1268, 0.0
    %1280 = vadd.xlane.f32.xlu0 %v1279
    %v1281 = vpop.xlane.xlu0 %1280
    %v1282 = vsel %vm134, %v1269, 0.0
    %1283 = vadd.xlane.f32.xlu0 %v1282
    %v1284 = vpop.xlane.xlu0 %1283
    %v1285 = vmul.f32 %v1281, %v141
    %v1286 = vmul.f32 %v1284, %v141
    %v1287 = vsub.f32 %v1268, %v1285
    %v1288 = vsub.f32 %v1269, %v1286
    %v1289 = vmul.f32 %v1287, %v1287
    %v1290 = vmul.f32 %v1288, %v1288
    %v1291 = vsel %vm134, %v1289, 0.0
    %1292 = vadd.xlane.f32.xlu0 %v1291
    %v1293 = vpop.xlane.xlu0 %1292
    %v1294 = vsel %vm134, %v1290, 0.0
    %1295 = vadd.xlane.f32.xlu0 %v1294
    %v1296 = vpop.xlane.xlu0 %1295
    %v1297 = vmul.f32 %v1293, %v141
    %v1298 = vmul.f32 %v1296, %v141
    %v1299 = vadd.f32 %v1297, 1e-05
    %v1300 = vadd.f32 %v1298, 1e-05
    %v1301 = vrsqrt.pop %v1299
    %v1302 = vrsqrt.pop %v1300
    %v1303 = vmul.f32 %v1287, %v1301
    %v1304 = vmul.f32 %v1288, %v1302
    %v1305 = vlaneseq
    %v1306 = vshrl.u32 %v1305, 7
    %v1307 = vsub.s32 0, %v1306
    %v1308 = vrot.slane %v1271, %v1307
    %v1309 = vmul.f32 %v1303, %v1308
    %v1310 = vmul.f32 %v1304, %v1308
    %v1311 = vlaneseq
    %v1312 = vshrl.u32 %v1311, 7
    %v1313 = vsub.s32 0, %v1312
    %v1314 = vrot.slane %v1272, %v1313
    %v1315 = vadd.f32 %v1309, %v1314
    %v1316 = vadd.f32 %v1310, %v1314
    %v1317 = vld [vmem:[#allocation3 + $0xe8] sm:$0xff]
    %v1318 = vld [vmem:[#allocation3 + $0xf0] sm:$0xff]
    %v1319 = vld [vmem:[#allocation3 + $0xf8] sm:$0xff]
    %v1320 = vld [vmem:[#allocation3 + $0x100] sm:$0xff]
    %v1321 = vld [vmem:[#allocation3 + $0x108] sm:$0x1]
    %v1322 = vlaneseq
    %v1323 = vshrl.u32 %v1322, 7
    %v1324 = vsub.s32 0, %v1323
    %v1325 = vrot.slane %v1321, %v1324
    %v1327 = vsel %vm134, %v1315, 0
    %v1330 = vsel %vm134, %v1316, 0
    %1332 = vmatprep.subr.mxu0 0.0
    %1333 = vmatpush1.msra.mxu0 %v1317
    %1334 = vmatprep.subr.mxu0 0.0
    %1335 = vmatpush1.msra.mxu0 %v1318
    %1336 = vmatprep.subr.mxu0 0.0
    %1337 = vmatpush1.msra.mxu0 %v1319
    %1338 = vmatprep.subr.mxu0 0.0
    %1339 = vmatpush1.msra.mxu0 %v1320
    %1340 = vmatprep.subr.mxu0 0.0
    %1341 = vmatpush1.msra.mxu0 0.0
    %1342 = vmatprep.subr.mxu0 0.0
    %1343 = vmatpush1.msra.mxu0 0.0
    %1344 = vmatprep.subr.mxu0 0.0
    %1345 = vmatpush1.msra.mxu0 0.0
    %1346 = vmatprep.subr.mxu0 0.0
    %1347 = vmatpush1.msra.mxu0 0.0
    %1348 = vmatprep.subr.mxu0 0.0
    %1349 = vmatpush1.msra.mxu0 0.0
    %1350 = vmatprep.subr.mxu0 0.0
    %1351 = vmatpush1.msra.mxu0 0.0
    %1352 = vmatprep.subr.mxu0 0.0
    %1353 = vmatpush1.msra.mxu0 0.0
    %1354 = vmatprep.subr.mxu0 0.0
    %1355 = vmatpush1.msra.mxu0 0.0
    %1356 = vmatprep.subr.mxu0 0.0
    %1357 = vmatpush1.msra.mxu0 0.0
    %1358 = vmatprep.subr.mxu0 0.0
    %1359 = vmatpush1.msra.mxu0 0.0
    %1360 = vmatprep.subr.mxu0 0.0
    %1361 = vmatpush1.msra.mxu0 0.0
    %1362 = vmatprep.subr.mxu0 0.0
    %1363 = vmatpush1.msra.mxu0 0.0
    %1364 = vmatprep.subr.mxu0 0.0
    %1365 = vmatpush1.msra.mxu0 0.0
    %1366 = vmatprep.subr.mxu0 0.0
    %1367 = vmatpush1.msra.mxu0 0.0
    %1368 = vmatprep.subr.mxu0 0.0
    %1369 = vmatpush1.msra.mxu0 0.0
    %1370 = vmatprep.subr.mxu0 0.0
    %1371 = vmatpush1.msra.mxu0 0.0
    %1372 = vmatprep.subr.mxu0 0.0
    %1373 = vmatpush1.msra.mxu0 0.0
    %1374 = vmatprep.subr.mxu0 0.0
    %1375 = vmatpush1.msra.mxu0 0.0
    %1376 = vmatprep.subr.mxu0 0.0
    %1377 = vmatpush1.msra.mxu0 0.0
    %1378 = vmatprep.subr.mxu0 0.0
    %1379 = vmatpush1.msra.mxu0 0.0
    %1380 = vmatprep.subr.mxu0 0.0
    %1381 = vmatpush1.msra.mxu0 0.0
    %1382 = vmatprep.subr.mxu0 0.0
    %1383 = vmatpush1.msra.mxu0 0.0
    %1384 = vmatprep.subr.mxu0 0.0
    %1385 = vmatpush1.msra.mxu0 0.0
    %1386 = vmatprep.subr.mxu0 0.0
    %1387 = vmatpush1.msra.mxu0 0.0
    %1388 = vmatprep.subr.mxu0 0.0
    %1389 = vmatpush1.msra.mxu0 0.0
    %1390 = vmatprep.subr.mxu0 0.0
    %1391 = vmatpush1.msra.mxu0 0.0
    %1392 = vmatprep.subr.mxu0 0.0
    %1393 = vmatpush1.msra.mxu0 0.0
    %1394 = vmatprep.subr.mxu0 0.0
    %1395 = vmatpush1.msra.mxu0 0.0
    %1396 = vmatprep.mubr.f32.mxu0 0.0
    %1397 = vmatmul.mubr.f32.gmra.mrb[0].mxu0 %v1327
    %v1398 = vpop.f32.mrb[0].mxu0
    %v1399 = vadd.f32 %v1325, %v1398
    %v1400 = vpop.f32.mrb[0].mxu0
    %1401 = vmatprep.mubr.f32.mxu0 0.0
    %1402 = vmatmul.mubr.f32.gmra.mrb[0].mxu0 %v1330
    %v1403 = vpop.f32.mrb[0].mxu0
    %v1404 = vadd.f32 %v1325, %v1403
    %v1405 = vpop.f32.mrb[0].mxu0
    %1406 = vdwg.mxu0
    %v1407 = vmul.f32 %v1399, 0.25
    %1409 = vrot.lane.b32.xlu0 %v1399, 96
    %v1410 = vpop.permute.xlu0 %1409
    %v1412 = vsel %vm268, %v1407, 0
    %v1414 = vsel %vm268, %v1410, 0
    %1416 = vmatprep.subr.mxu0 0.0
    %1417 = vmatpush1.xpose.msra.mxu0 %v1414
    %1418 = vmatprep.subr.mxu0 0.0
    %1419 = vmatpush1.xpose.msra.mxu0 0.0
    %1420 = vmatprep.subr.mxu0 0.0
    %1421 = vmatpush1.xpose.msra.mxu0 0.0
    %1422 = vmatprep.subr.mxu0 0.0
    %1423 = vmatpush1.xpose.msra.mxu0 0.0
    %1424 = vmatprep.subr.mxu0 0.0
    %1425 = vmatpush1.xpose.msra.mxu0 0.0
    %1426 = vmatprep.subr.mxu0 0.0
    %1427 = vmatpush1.xpose.msra.mxu0 0.0
    %1428 = vmatprep.subr.mxu0 0.0
    %1429 = vmatpush1.xpose.msra.mxu0 0.0
    %1430 = vmatprep.subr.mxu0 0.0
    %1431 = vmatpush1.xpose.msra.mxu0 0.0
    %1432 = vmatprep.subr.mxu0 0.0
    %1433 = vmatpush1.xpose.msra.mxu0 0.0
    %1434 = vmatprep.subr.mxu0 0.0
    %1435 = vmatpush1.xpose.msra.mxu0 0.0
    %1436 = vmatprep.subr.mxu0 0.0
    %1437 = vmatpush1.xpose.msra.mxu0 0.0
    %1438 = vmatprep.subr.mxu0 0.0
    %1439 = vmatpush1.xpose.msra.mxu0 0.0
    %1440 = vmatprep.subr.mxu0 0.0
    %1441 = vmatpush1.xpose.msra.mxu0 0.0
    %1442 = vmatprep.subr.mxu0 0.0
    %1443 = vmatpush1.xpose.msra.mxu0 0.0
    %1444 = vmatprep.subr.mxu0 0.0
    %1445 = vmatpush1.xpose.msra.mxu0 0.0
    %1446 = vmatprep.subr.mxu0 0.0
    %1447 = vmatpush1.xpose.msra.mxu0 0.0
    %1448 = vmatprep.subr.mxu0 0.0
    %1449 = vmatpush1.xpose.msra.mxu0 0.0
    %1450 = vmatprep.subr.mxu0 0.0
    %1451 = vmatpush1.xpose.msra.mxu0 0.0
    %1452 = vmatprep.subr.mxu0 0.0
    %1453 = vmatpush1.xpose.msra.mxu0 0.0
    %1454 = vmatprep.subr.mxu0 0.0
    %1455 = vmatpush1.xpose.msra.mxu0 0.0
    %1456 = vmatprep.subr.mxu0 0.0
    %1457 = vmatpush1.xpose.msra.mxu0 0.0
    %1458 = vmatprep.subr.mxu0 0.0
    %1459 = vmatpush1.xpose.msra.mxu0 0.0
    %1460 = vmatprep.subr.mxu0 0.0
    %1461 = vmatpush1.xpose.msra.mxu0 0.0
    %1462 = vmatprep.subr.mxu0 0.0
    %1463 = vmatpush1.xpose.msra.mxu0 0.0
    %1464 = vmatprep.subr.mxu0 0.0
    %1465 = vmatpush1.xpose.msra.mxu0 0.0
    %1466 = vmatprep.subr.mxu0 0.0
    %1467 = vmatpush1.xpose.msra.mxu0 0.0
    %1468 = vmatprep.subr.mxu0 0.0
    %1469 = vmatpush1.xpose.msra.mxu0 0.0
    %1470 = vmatprep.subr.mxu0 0.0
    %1471 = vmatpush1.xpose.msra.mxu0 0.0
    %1472 = vmatprep.subr.mxu0 0.0
    %1473 = vmatpush1.xpose.msra.mxu0 0.0
    %1474 = vmatprep.subr.mxu0 0.0
    %1475 = vmatpush1.xpose.msra.mxu0 0.0
    %1476 = vmatprep.subr.mxu0 0.0
    %1477 = vmatpush1.xpose.msra.mxu0 0.0
    %1478 = vmatprep.subr.mxu0 0.0
    %1479 = vmatpush1.xpose.msra.mxu0 0.0
    %1480 = vmatprep.mubr.f32.mxu0 0.0
    %1481 = vmatmul.mubr.f32.gmra.mrb[0].mxu0 %v1412
    %v1482 = vpop.f32.mrb[0].mxu0
    %v1483 = vadd.f32 %v30, %v1482
    %v1484 = vpop.f32.mrb[0].mxu0
    %1485 = vdwg.mxu0
    %v1486 = vsel %vm344, %v1483, -inf
    %1487 = vmax.xlane.f32.xlu0 %v1486
    %v1488 = vpop.xlane.xlu0 %1487
    %v1489 = vsub.f32 %v1483, %v1488
    %v1490 = vmul.f32 %v1489, 1.442695
    %v1491 = vpow.pop %v1490
    %v1492 = vsel %vm344, %v1491, 0.0
    %1493 = vadd.xlane.f32.xlu0 %v1492
    %v1494 = vpop.xlane.xlu0 %1493
    %v1495 = vrcp.pop %v1494
    %v1496 = vmul.f32 %v1491, %v1495
    %1497 = vrot.lane.b32.xlu0 %v1399, 64
    %v1498 = vpop.permute.xlu0 %1497
    %v1501 = vsel %vm344, %v1496, 0
    %1503 = vmatprep.subr.mxu0 0.0
    %1504 = vmatpush1.msra.mxu0 %v1498
    %1505 = vmatprep.subr.mxu0 0.0
    %1506 = vmatpush1.msra.mxu0 0.0
    %1507 = vmatprep.subr.mxu0 0.0
    %1508 = vmatpush1.msra.mxu0 0.0
    %1509 = vmatprep.subr.mxu0 0.0
    %1510 = vmatpush1.msra.mxu0 0.0
    %1511 = vmatprep.subr.mxu0 0.0
    %1512 = vmatpush1.msra.mxu0 0.0
    %1513 = vmatprep.subr.mxu0 0.0
    %1514 = vmatpush1.msra.mxu0 0.0
    %1515 = vmatprep.subr.mxu0 0.0
    %1516 = vmatpush1.msra.mxu0 0.0
    %1517 = vmatprep.subr.mxu0 0.0
    %1518 = vmatpush1.msra.mxu0 0.0
    %1519 = vmatprep.subr.mxu0 0.0
    %1520 = vmatpush1.msra.mxu0 0.0
    %1521 = vmatprep.subr.mxu0 0.0
    %1522 = vmatpush1.msra.mxu0 0.0
    %1523 = vmatprep.subr.mxu0 0.0
    %1524 = vmatpush1.msra.mxu0 0.0
    %1525 = vmatprep.subr.mxu0 0.0
    %1526 = vmatpush1.msra.mxu0 0.0
    %1527 = vmatprep.subr.mxu0 0.0
    %1528 = vmatpush1.msra.mxu0 0.0
    %1529 = vmatprep.subr.mxu0 0.0
    %1530 = vmatpush1.msra.mxu0 0.0
    %1531 = vmatprep.subr.mxu0 0.0
    %1532 = vmatpush1.msra.mxu0 0.0
    %1533 = vmatprep.subr.mxu0 0.0
    %1534 = vmatpush1.msra.mxu0 0.0
    %1535 = vmatprep.subr.mxu0 0.0
    %1536 = vmatpush1.msra.mxu0 0.0
    %1537 = vmatprep.subr.mxu0 0.0
    %1538 = vmatpush1.msra.mxu0 0.0
    %1539 = vmatprep.subr.mxu0 0.0
    %1540 = vmatpush1.msra.mxu0 0.0
    %1541 = vmatprep.subr.mxu0 0.0
    %1542 = vmatpush1.msra.mxu0 0.0
    %1543 = vmatprep.subr.mxu0 0.0
    %1544 = vmatpush1.msra.mxu0 0.0
    %1545 = vmatprep.subr.mxu0 0.0
    %1546 = vmatpush1.msra.mxu0 0.0
    %1547 = vmatprep.subr.mxu0 0.0
    %1548 = vmatpush1.msra.mxu0 0.0
    %1549 = vmatprep.subr.mxu0 0.0
    %1550 = vmatpush1.msra.mxu0 0.0
    %1551 = vmatprep.subr.mxu0 0.0
    %1552 = vmatpush1.msra.mxu0 0.0
    %1553 = vmatprep.subr.mxu0 0.0
    %1554 = vmatpush1.msra.mxu0 0.0
    %1555 = vmatprep.subr.mxu0 0.0
    %1556 = vmatpush1.msra.mxu0 0.0
    %1557 = vmatprep.subr.mxu0 0.0
    %1558 = vmatpush1.msra.mxu0 0.0
    %1559 = vmatprep.subr.mxu0 0.0
    %1560 = vmatpush1.msra.mxu0 0.0
    %1561 = vmatprep.subr.mxu0 0.0
    %1562 = vmatpush1.msra.mxu0 0.0
    %1563 = vmatprep.subr.mxu0 0.0
    %1564 = vmatpush1.msra.mxu0 0.0
    %1565 = vmatprep.subr.mxu0 0.0
    %1566 = vmatpush1.msra.mxu0 0.0
    %1567 = vmatprep.mubr.f32.mxu0 0.0
    %1568 = vmatmul.mubr.f32.gmra.mrb[0].mxu0 %v1501
    %v1569 = vpop.f32.mrb[0].mxu0
    %v1570 = vadd.f32 0.0, %v1569
    %v1571 = vpop.f32.mrb[0].mxu0
    %1572 = vdwg.mxu0
    %1573 = vst.msk [vmem:[#allocation2] sm:$0xff] %vm268, %v1570
    %1574 = vrot.lane.b32.xlu0 %v1407, 112
    %v1575 = vpop.permute.xlu0 %1574
    %1576 = vrot.lane.b32.xlu0 %v1399, 80
    %v1577 = vpop.permute.xlu0 %1576
    %v1578 = vsel %vm268, %v1575, 0
    %v1580 = vsel %vm268, %v1577, 0
    %1582 = vmatprep.subr.mxu0 0.0
    %1583 = vmatpush1.xpose.msra.mxu0 %v1580
    %1584 = vmatprep.subr.mxu0 0.0
    %1585 = vmatpush1.xpose.msra.mxu0 0.0
    %1586 = vmatprep.subr.mxu0 0.0
    %1587 = vmatpush1.xpose.msra.mxu0 0.0
    %1588 = vmatprep.subr.mxu0 0.0
    %1589 = vmatpush1.xpose.msra.mxu0 0.0
    %1590 = vmatprep.subr.mxu0 0.0
    %1591 = vmatpush1.xpose.msra.mxu0 0.0
    %1592 = vmatprep.subr.mxu0 0.0
    %1593 = vmatpush1.xpose.msra.mxu0 0.0
    %1594 = vmatprep.subr.mxu0 0.0
    %1595 = vmatpush1.xpose.msra.mxu0 0.0
    %1596 = vmatprep.subr.mxu0 0.0
    %1597 = vmatpush1.xpose.msra.mxu0 0.0
    %1598 = vmatprep.subr.mxu0 0.0
    %1599 = vmatpush1.xpose.msra.mxu0 0.0
    %1600 = vmatprep.subr.mxu0 0.0
    %1601 = vmatpush1.xpose.msra.mxu0 0.0
    %1602 = vmatprep.subr.mxu0 0.0
    %1603 = vmatpush1.xpose.msra.mxu0 0.0
    %1604 = vmatprep.subr.mxu0 0.0
    %1605 = vmatpush1.xpose.msra.mxu0 0.0
    %1606 = vmatprep.subr.mxu0 0.0
    %1607 = vmatpush1.xpose.msra.mxu0 0.0
    %1608 = vmatprep.subr.mxu0 0.0
    %1609 = vmatpush1.xpose.msra.mxu0 0.0
    %1610 = vmatprep.subr.mxu0 0.0
    %1611 = vmatpush1.xpose.msra.mxu0 0.0
    %1612 = vmatprep.subr.mxu0 0.0
    %1613 = vmatpush1.xpose.msra.mxu0 0.0
    %1614 = vmatprep.subr.mxu0 0.0
    %1615 = vmatpush1.xpose.msra.mxu0 0.0
    %1616 = vmatprep.subr.mxu0 0.0
    %1617 = vmatpush1.xpose.msra.mxu0 0.0
    %1618 = vmatprep.subr.mxu0 0.0
    %1619 = vmatpush1.xpose.msra.mxu0 0.0
    %1620 = vmatprep.subr.mxu0 0.0
    %1621 = vmatpush1.xpose.msra.mxu0 0.0
    %1622 = vmatprep.subr.mxu0 0.0
    %1623 = vmatpush1.xpose.msra.mxu0 0.0
    %1624 = vmatprep.subr.mxu0 0.0
    %1625 = vmatpush1.xpose.msra.mxu0 0.0
    %1626 = vmatprep.subr.mxu0 0.0
    %1627 = vmatpush1.xpose.msra.mxu0 0.0
    %1628 = vmatprep.subr.mxu0 0.0
    %1629 = vmatpush1.xpose.msra.mxu0 0.0
    %1630 = vmatprep.subr.mxu0 0.0
    %1631 = vmatpush1.xpose.msra.mxu0 0.0
    %1632 = vmatprep.subr.mxu0 0.0
    %1633 = vmatpush1.xpose.msra.mxu0 0.0
    %1634 = vmatprep.subr.mxu0 0.0
    %1635 = vmatpush1.xpose.msra.mxu0 0.0
    %1636 = vmatprep.subr.mxu0 0.0
    %1637 = vmatpush1.xpose.msra.mxu0 0.0
    %1638 = vmatprep.subr.mxu0 0.0
    %1639 = vmatpush1.xpose.msra.mxu0 0.0
    %1640 = vmatprep.subr.mxu0 0.0
    %1641 = vmatpush1.xpose.msra.mxu0 0.0
    %1642 = vmatprep.subr.mxu0 0.0
    %1643 = vmatpush1.xpose.msra.mxu0 0.0
    %1644 = vmatprep.subr.mxu0 0.0
    %1645 = vmatpush1.xpose.msra.mxu0 0.0
    %1646 = vmatprep.mubr.f32.mxu0 0.0
    %1647 = vmatmul.mubr.f32.gmra.mrb[0].mxu0 %v1578
    %v1648 = vpop.f32.mrb[0].mxu0
    %v1649 = vadd.f32 %v30, %v1648
    %v1650 = vpop.f32.mrb[0].mxu0
    %1651 = vdwg.mxu0
    %v1652 = vsel %vm344, %v1649, -inf
    %1653 = vmax.xlane.f32.xlu0 %v1652
    %v1654 = vpop.xlane.xlu0 %1653
    %v1655 = vsub.f32 %v1649, %v1654
    %v1656 = vmul.f32 %v1655, 1.442695
    %v1657 = vpow.pop %v1656
    %v1658 = vsel %vm344, %v1657, 0.0
    %1659 = vadd.xlane.f32.xlu0 %v1658
    %v1660 = vpop.xlane.xlu0 %1659
    %v1661 = vrcp.pop %v1660
    %v1662 = vmul.f32 %v1657, %v1661
    %1663 = vrot.lane.b32.xlu0 %v1399, 48
    %v1664 = vpop.permute.xlu0 %1663
    %v1667 = vsel %vm344, %v1662, 0
    %1669 = vmatprep.subr.mxu0 0.0
    %1670 = vmatpush1.msra.mxu0 %v1664
    %1671 = vmatprep.subr.mxu0 0.0
    %1672 = vmatpush1.msra.mxu0 0.0
    %1673 = vmatprep.subr.mxu0 0.0
    %1674 = vmatpush1.msra.mxu0 0.0
    %1675 = vmatprep.subr.mxu0 0.0
    %1676 = vmatpush1.msra.mxu0 0.0
    %1677 = vmatprep.subr.mxu0 0.0
    %1678 = vmatpush1.msra.mxu0 0.0
    %1679 = vmatprep.subr.mxu0 0.0
    %1680 = vmatpush1.msra.mxu0 0.0
    %1681 = vmatprep.subr.mxu0 0.0
    %1682 = vmatpush1.msra.mxu0 0.0
    %1683 = vmatprep.subr.mxu0 0.0
    %1684 = vmatpush1.msra.mxu0 0.0
    %1685 = vmatprep.subr.mxu0 0.0
    %1686 = vmatpush1.msra.mxu0 0.0
    %1687 = vmatprep.subr.mxu0 0.0
    %1688 = vmatpush1.msra.mxu0 0.0
    %1689 = vmatprep.subr.mxu0 0.0
    %1690 = vmatpush1.msra.mxu0 0.0
    %1691 = vmatprep.subr.mxu0 0.0
    %1692 = vmatpush1.msra.mxu0 0.0
    %1693 = vmatprep.subr.mxu0 0.0
    %1694 = vmatpush1.msra.mxu0 0.0
    %1695 = vmatprep.subr.mxu0 0.0
    %1696 = vmatpush1.msra.mxu0 0.0
    %1697 = vmatprep.subr.mxu0 0.0
    %1698 = vmatpush1.msra.mxu0 0.0
    %1699 = vmatprep.subr.mxu0 0.0
    %1700 = vmatpush1.msra.mxu0 0.0
    %1701 = vmatprep.subr.mxu0 0.0
    %1702 = vmatpush1.msra.mxu0 0.0
    %1703 = vmatprep.subr.mxu0 0.0
    %1704 = vmatpush1.msra.mxu0 0.0
    %1705 = vmatprep.subr.mxu0 0.0
    %1706 = vmatpush1.msra.mxu0 0.0
    %1707 = vmatprep.subr.mxu0 0.0
    %1708 = vmatpush1.msra.mxu0 0.0
    %1709 = vmatprep.subr.mxu0 0.0
    %1710 = vmatpush1.msra.mxu0 0.0
    %1711 = vmatprep.subr.mxu0 0.0
    %1712 = vmatpush1.msra.mxu0 0.0
    %1713 = vmatprep.subr.mxu0 0.0
    %1714 = vmatpush1.msra.mxu0 0.0
    %1715 = vmatprep.subr.mxu0 0.0
    %1716 = vmatpush1.msra.mxu0 0.0
    %1717 = vmatprep.subr.mxu0 0.0
    %1718 = vmatpush1.msra.mxu0 0.0
    %1719 = vmatprep.subr.mxu0 0.0
    %1720 = vmatpush1.msra.mxu0 0.0
    %1721 = vmatprep.subr.mxu0 0.0
    %1722 = vmatpush1.msra.mxu0 0.0
    %1723 = vmatprep.subr.mxu0 0.0
    %1724 = vmatpush1.msra.mxu0 0.0
    %1725 = vmatprep.subr.mxu0 0.0
    %1726 = vmatpush1.msra.mxu0 0.0
    %1727 = vmatprep.subr.mxu0 0.0
    %1728 = vmatpush1.msra.mxu0 0.0
    %1729 = vmatprep.subr.mxu0 0.0
    %1730 = vmatpush1.msra.mxu0 0.0
    %1731 = vmatprep.subr.mxu0 0.0
    %1732 = vmatpush1.msra.mxu0 0.0
    %1733 = vmatprep.mubr.f32.mxu0 0.0
    %1734 = vmatmul.mubr.f32.gmra.mrb[0].mxu0 %v1667
    %v1735 = vpop.f32.mrb[0].mxu0
    %v1736 = vadd.f32 0.0, %v1735
    %v1737 = vpop.f32.mrb[0].mxu0
    %1738 = vdwg.mxu0
    %1740 = vrot.lane.b32.xlu0 %v1736, 16
    %v1741 = vpop.permute.xlu0 %1740
    %1743 = vst.msk [vmem:[#allocation2] sm:$0xff] %vm602, %v1741
    %v1744 = vmul.f32 %v1404, 0.25
    %1746 = vrot.lane.b32.xlu0 %v1404, 96
    %v1747 = vpop.permute.xlu0 %1746
    %v1749 = vsel %vm268, %v1744, 0
    %v1751 = vsel %vm268, %v1747, 0
    %1753 = vmatprep.subr.mxu0 0.0
    %1754 = vmatpush1.xpose.msra.mxu0 %v1751
    %1755 = vmatprep.subr.mxu0 0.0
    %1756 = vmatpush1.xpose.msra.mxu0 0.0
    %1757 = vmatprep.subr.mxu0 0.0
    %1758 = vmatpush1.xpose.msra.mxu0 0.0
    %1759 = vmatprep.subr.mxu0 0.0
    %1760 = vmatpush1.xpose.msra.mxu0 0.0
    %1761 = vmatprep.subr.mxu0 0.0
    %1762 = vmatpush1.xpose.msra.mxu0 0.0
    %1763 = vmatprep.subr.mxu0 0.0
    %1764 = vmatpush1.xpose.msra.mxu0 0.0
    %1765 = vmatprep.subr.mxu0 0.0
    %1766 = vmatpush1.xpose.msra.mxu0 0.0
    %1767 = vmatprep.subr.mxu0 0.0
    %1768 = vmatpush1.xpose.msra.mxu0 0.0
    %1769 = vmatprep.subr.mxu0 0.0
    %1770 = vmatpush1.xpose.msra.mxu0 0.0
    %1771 = vmatprep.subr.mxu0 0.0
    %1772 = vmatpush1.xpose.msra.mxu0 0.0
    %1773 = vmatprep.subr.mxu0 0.0
    %1774 = vmatpush1.xpose.msra.mxu0 0.0
    %1775 = vmatprep.subr.mxu0 0.0
    %1776 = vmatpush1.xpose.msra.mxu0 0.0
    %1777 = vmatprep.subr.mxu0 0.0
    %1778 = vmatpush1.xpose.msra.mxu0 0.0
    %1779 = vmatprep.subr.mxu0 0.0
    %1780 = vmatpush1.xpose.msra.mxu0 0.0
    %1781 = vmatprep.subr.mxu0 0.0
    %1782 = vmatpush1.xpose.msra.mxu0 0.0
    %1783 = vmatprep.subr.mxu0 0.0
    %1784 = vmatpush1.xpose.msra.mxu0 0.0
    %1785 = vmatprep.subr.mxu0 0.0
    %1786 = vmatpush1.xpose.msra.mxu0 0.0
    %1787 = vmatprep.subr.mxu0 0.0
    %1788 = vmatpush1.xpose.msra.mxu0 0.0
    %1789 = vmatprep.subr.mxu0 0.0
    %1790 = vmatpush1.xpose.msra.mxu0 0.0
    %1791 = vmatprep.subr.mxu0 0.0
    %1792 = vmatpush1.xpose.msra.mxu0 0.0
    %1793 = vmatprep.subr.mxu0 0.0
    %1794 = vmatpush1.xpose.msra.mxu0 0.0
    %1795 = vmatprep.subr.mxu0 0.0
    %1796 = vmatpush1.xpose.msra.mxu0 0.0
    %1797 = vmatprep.subr.mxu0 0.0
    %1798 = vmatpush1.xpose.msra.mxu0 0.0
    %1799 = vmatprep.subr.mxu0 0.0
    %1800 = vmatpush1.xpose.msra.mxu0 0.0
    %1801 = vmatprep.subr.mxu0 0.0
    %1802 = vmatpush1.xpose.msra.mxu0 0.0
    %1803 = vmatprep.subr.mxu0 0.0
    %1804 = vmatpush1.xpose.msra.mxu0 0.0
    %1805 = vmatprep.subr.mxu0 0.0
    %1806 = vmatpush1.xpose.msra.mxu0 0.0
    %1807 = vmatprep.subr.mxu0 0.0
    %1808 = vmatpush1.xpose.msra.mxu0 0.0
    %1809 = vmatprep.subr.mxu0 0.0
    %1810 = vmatpush1.xpose.msra.mxu0 0.0
    %1811 = vmatprep.subr.mxu0 0.0
    %1812 = vmatpush1.xpose.msra.mxu0 0.0
    %1813 = vmatprep.subr.mxu0 0.0
    %1814 = vmatpush1.xpose.msra.mxu0 0.0
    %1815 = vmatprep.subr.mxu0 0.0
    %1816 = vmatpush1.xpose.msra.mxu0 0.0
    %1817 = vmatprep.mubr.f32.mxu0 0.0
    %1818 = vmatmul.mubr.f32.gmra.mrb[0].mxu0 %v1749
    %v1819 = vpop.f32.mrb[0].mxu0
    %v1820 = vadd.f32 %v30, %v1819
    %v1821 = vpop.f32.mrb[0].mxu0
    %1822 = vdwg.mxu0
    %v1823 = vsel %vm344, %v1820, -inf
    %1824 = vmax.xlane.f32.xlu0 %v1823
    %v1825 = vpop.xlane.xlu0 %1824
    %v1826 = vsub.f32 %v1820, %v1825
    %v1827 = vmul.f32 %v1826, 1.442695
    %v1828 = vpow.pop %v1827
    %v1829 = vsel %vm344, %v1828, 0.0
    %1830 = vadd.xlane.f32.xlu0 %v1829
    %v1831 = vpop.xlane.xlu0 %1830
    %v1832 = vrcp.pop %v1831
    %v1833 = vmul.f32 %v1828, %v1832
    %1834 = vrot.lane.b32.xlu0 %v1404, 64
    %v1835 = vpop.permute.xlu0 %1834
    %v1838 = vsel %vm344, %v1833, 0
    %1840 = vmatprep.subr.mxu0 0.0
    %1841 = vmatpush1.msra.mxu0 %v1835
    %1842 = vmatprep.subr.mxu0 0.0
    %1843 = vmatpush1.msra.mxu0 0.0
    %1844 = vmatprep.subr.mxu0 0.0
    %1845 = vmatpush1.msra.mxu0 0.0
    %1846 = vmatprep.subr.mxu0 0.0
    %1847 = vmatpush1.msra.mxu0 0.0
    %1848 = vmatprep.subr.mxu0 0.0
    %1849 = vmatpush1.msra.mxu0 0.0
    %1850 = vmatprep.subr.mxu0 0.0
    %1851 = vmatpush1.msra.mxu0 0.0
    %1852 = vmatprep.subr.mxu0 0.0
    %1853 = vmatpush1.msra.mxu0 0.0
    %1854 = vmatprep.subr.mxu0 0.0
    %1855 = vmatpush1.msra.mxu0 0.0
    %1856 = vmatprep.subr.mxu0 0.0
    %1857 = vmatpush1.msra.mxu0 0.0
    %1858 = vmatprep.subr.mxu0 0.0
    %1859 = vmatpush1.msra.mxu0 0.0
    %1860 = vmatprep.subr.mxu0 0.0
    %1861 = vmatpush1.msra.mxu0 0.0
    %1862 = vmatprep.subr.mxu0 0.0
    %1863 = vmatpush1.msra.mxu0 0.0
    %1864 = vmatprep.subr.mxu0 0.0
    %1865 = vmatpush1.msra.mxu0 0.0
    %1866 = vmatprep.subr.mxu0 0.0
    %1867 = vmatpush1.msra.mxu0 0.0
    %1868 = vmatprep.subr.mxu0 0.0
    %1869 = vmatpush1.msra.mxu0 0.0
    %1870 = vmatprep.subr.mxu0 0.0
    %1871 = vmatpush1.msra.mxu0 0.0
    %1872 = vmatprep.subr.mxu0 0.0
    %1873 = vmatpush1.msra.mxu0 0.0
    %1874 = vmatprep.subr.mxu0 0.0
    %1875 = vmatpush1.msra.mxu0 0.0
    %1876 = vmatprep.subr.mxu0 0.0
    %1877 = vmatpush1.msra.mxu0 0.0
    %1878 = vmatprep.subr.mxu0 0.0
    %1879 = vmatpush1.msra.mxu0 0.0
    %1880 = vmatprep.subr.mxu0 0.0
    %1881 = vmatpush1.msra.mxu0 0.0
    %1882 = vmatprep.subr.mxu0 0.0
    %1883 = vmatpush1.msra.mxu0 0.0
    %1884 = vmatprep.subr.mxu0 0.0
    %1885 = vmatpush1.msra.mxu0 0.0
    %1886 = vmatprep.subr.mxu0 0.0
    %1887 = vmatpush1.msra.mxu0 0.0
    %1888 = vmatprep.subr.mxu0 0.0
    %1889 = vmatpush1.msra.mxu0 0.0
    %1890 = vmatprep.subr.mxu0 0.0
    %1891 = vmatpush1.msra.mxu0 0.0
    %1892 = vmatprep.subr.mxu0 0.0
    %1893 = vmatpush1.msra.mxu0 0.0
    %1894 = vmatprep.subr.mxu0 0.0
    %1895 = vmatpush1.msra.mxu0 0.0
    %1896 = vmatprep.subr.mxu0 0.0
    %1897 = vmatpush1.msra.mxu0 0.0
    %1898 = vmatprep.subr.mxu0 0.0
    %1899 = vmatpush1.msra.mxu0 0.0
    %1900 = vmatprep.subr.mxu0 0.0
    %1901 = vmatpush1.msra.mxu0 0.0
    %1902 = vmatprep.subr.mxu0 0.0
    %1903 = vmatpush1.msra.mxu0 0.0
    %1904 = vmatprep.mubr.f32.mxu0 0.0
    %1905 = vmatmul.mubr.f32.gmra.mrb[0].mxu0 %v1838
    %v1906 = vpop.f32.mrb[0].mxu0
    %v1907 = vadd.f32 0.0, %v1906
    %v1908 = vpop.f32.mrb[0].mxu0
    %1909 = vdwg.mxu0
    %1910 = vst.msk [vmem:[#allocation2 + $0x8] sm:$0xff] %vm268, %v1907
    %1911 = vrot.lane.b32.xlu0 %v1744, 112
    %v1912 = vpop.permute.xlu0 %1911
    %1913 = vrot.lane.b32.xlu0 %v1404, 80
    %v1914 = vpop.permute.xlu0 %1913
    %v1915 = vsel %vm268, %v1912, 0
    %v1917 = vsel %vm268, %v1914, 0
    %1919 = vmatprep.subr.mxu0 0.0
    %1920 = vmatpush1.xpose.msra.mxu0 %v1917
    %1921 = vmatprep.subr.mxu0 0.0
    %1922 = vmatpush1.xpose.msra.mxu0 0.0
    %1923 = vmatprep.subr.mxu0 0.0
    %1924 = vmatpush1.xpose.msra.mxu0 0.0
    %1925 = vmatprep.subr.mxu0 0.0
    %1926 = vmatpush1.xpose.msra.mxu0 0.0
    %1927 = vmatprep.subr.mxu0 0.0
    %1928 = vmatpush1.xpose.msra.mxu0 0.0
    %1929 = vmatprep.subr.mxu0 0.0
    %1930 = vmatpush1.xpose.msra.mxu0 0.0
    %1931 = vmatprep.subr.mxu0 0.0
    %1932 = vmatpush1.xpose.msra.mxu0 0.0
    %1933 = vmatprep.subr.mxu0 0.0
    %1934 = vmatpush1.xpose.msra.mxu0 0.0
    %1935 = vmatprep.subr.mxu0 0.0
    %1936 = vmatpush1.xpose.msra.mxu0 0.0
    %1937 = vmatprep.subr.mxu0 0.0
    %1938 = vmatpush1.xpose.msra.mxu0 0.0
    %1939 = vmatprep.subr.mxu0 0.0
    %1940 = vmatpush1.xpose.msra.mxu0 0.0
    %1941 = vmatprep.subr.mxu0 0.0
    %1942 = vmatpush1.xpose.msra.mxu0 0.0
    %1943 = vmatprep.subr.mxu0 0.0
    %1944 = vmatpush1.xpose.msra.mxu0 0.0
    %1945 = vmatprep.subr.mxu0 0.0
    %1946 = vmatpush1.xpose.msra.mxu0 0.0
    %1947 = vmatprep.subr.mxu0 0.0
    %1948 = vmatpush1.xpose.msra.mxu0 0.0
    %1949 = vmatprep.subr.mxu0 0.0
    %1950 = vmatpush1.xpose.msra.mxu0 0.0
    %1951 = vmatprep.subr.mxu0 0.0
    %1952 = vmatpush1.xpose.msra.mxu0 0.0
    %1953 = vmatprep.subr.mxu0 0.0
    %1954 = vmatpush1.xpose.msra.mxu0 0.0
    %1955 = vmatprep.subr.mxu0 0.0
    %1956 = vmatpush1.xpose.msra.mxu0 0.0
    %1957 = vmatprep.subr.mxu0 0.0
    %1958 = vmatpush1.xpose.msra.mxu0 0.0
    %1959 = vmatprep.subr.mxu0 0.0
    %1960 = vmatpush1.xpose.msra.mxu0 0.0
    %1961 = vmatprep.subr.mxu0 0.0
    %1962 = vmatpush1.xpose.msra.mxu0 0.0
    %1963 = vmatprep.subr.mxu0 0.0
    %1964 = vmatpush1.xpose.msra.mxu0 0.0
    %1965 = vmatprep.subr.mxu0 0.0
    %1966 = vmatpush1.xpose.msra.mxu0 0.0
    %1967 = vmatprep.subr.mxu0 0.0
    %1968 = vmatpush1.xpose.msra.mxu0 0.0
    %1969 = vmatprep.subr.mxu0 0.0
    %1970 = vmatpush1.xpose.msra.mxu0 0.0
    %1971 = vmatprep.subr.mxu0 0.0
    %1972 = vmatpush1.xpose.msra.mxu0 0.0
    %1973 = vmatprep.subr.mxu0 0.0
    %1974 = vmatpush1.xpose.msra.mxu0 0.0
    %1975 = vmatprep.subr.mxu0 0.0
    %1976 = vmatpush1.xpose.msra.mxu0 0.0
    %1977 = vmatprep.subr.mxu0 0.0
    %1978 = vmatpush1.xpose.msra.mxu0 0.0
    %1979 = vmatprep.subr.mxu0 0.0
    %1980 = vmatpush1.xpose.msra.mxu0 0.0
    %1981 = vmatprep.subr.mxu0 0.0
    %1982 = vmatpush1.xpose.msra.mxu0 0.0
    %1983 = vmatprep.mubr.f32.mxu0 0.0
    %1984 = vmatmul.mubr.f32.gmra.mrb[0].mxu0 %v1915
    %v1985 = vpop.f32.mrb[0].mxu0
    %v1986 = vadd.f32 %v30, %v1985
    %v1987 = vpop.f32.mrb[0].mxu0
    %1988 = vdwg.mxu0
    %v1989 = vsel %vm344, %v1986, -inf
    %1990 = vmax.xlane.f32.xlu0 %v1989
    %v1991 = vpop.xlane.xlu0 %1990
    %v1992 = vsub.f32 %v1986, %v1991
    %v1993 = vmul.f32 %v1992, 1.442695
    %v1994 = vpow.pop %v1993
    %v1995 = vsel %vm344, %v1994, 0.0
    %1996 = vadd.xlane.f32.xlu0 %v1995
    %v1997 = vpop.xlane.xlu0 %1996
    %v1998 = vrcp.pop %v1997
    %v1999 = vmul.f32 %v1994, %v1998
    %2000 = vrot.lane.b32.xlu0 %v1404, 48
    %v2001 = vpop.permute.xlu0 %2000
    %v2004 = vsel %vm344, %v1999, 0
    %2006 = vmatprep.subr.mxu0 0.0
    %2007 = vmatpush1.msra.mxu0 %v2001
    %2008 = vmatprep.subr.mxu0 0.0
    %2009 = vmatpush1.msra.mxu0 0.0
    %2010 = vmatprep.subr.mxu0 0.0
    %2011 = vmatpush1.msra.mxu0 0.0
    %2012 = vmatprep.subr.mxu0 0.0
    %2013 = vmatpush1.msra.mxu0 0.0
    %2014 = vmatprep.subr.mxu0 0.0
    %2015 = vmatpush1.msra.mxu0 0.0
    %2016 = vmatprep.subr.mxu0 0.0
    %2017 = vmatpush1.msra.mxu0 0.0
    %2018 = vmatprep.subr.mxu0 0.0
    %2019 = vmatpush1.msra.mxu0 0.0
    %2020 = vmatprep.subr.mxu0 0.0
    %2021 = vmatpush1.msra.mxu0 0.0
    %2022 = vmatprep.subr.mxu0 0.0
    %2023 = vmatpush1.msra.mxu0 0.0
    %2024 = vmatprep.subr.mxu0 0.0
    %2025 = vmatpush1.msra.mxu0 0.0
    %2026 = vmatprep.subr.mxu0 0.0
    %2027 = vmatpush1.msra.mxu0 0.0
    %2028 = vmatprep.subr.mxu0 0.0
    %2029 = vmatpush1.msra.mxu0 0.0
    %2030 = vmatprep.subr.mxu0 0.0
    %2031 = vmatpush1.msra.mxu0 0.0
    %2032 = vmatprep.subr.mxu0 0.0
    %2033 = vmatpush1.msra.mxu0 0.0
    %2034 = vmatprep.subr.mxu0 0.0
    %2035 = vmatpush1.msra.mxu0 0.0
    %2036 = vmatprep.subr.mxu0 0.0
    %2037 = vmatpush1.msra.mxu0 0.0
    %2038 = vmatprep.subr.mxu0 0.0
    %2039 = vmatpush1.msra.mxu0 0.0
    %2040 = vmatprep.subr.mxu0 0.0
    %2041 = vmatpush1.msra.mxu0 0.0
    %2042 = vmatprep.subr.mxu0 0.0
    %2043 = vmatpush1.msra.mxu0 0.0
    %2044 = vmatprep.subr.mxu0 0.0
    %2045 = vmatpush1.msra.mxu0 0.0
    %2046 = vmatprep.subr.mxu0 0.0
    %2047 = vmatpush1.msra.mxu0 0.0
    %2048 = vmatprep.subr.mxu0 0.0
    %2049 = vmatpush1.msra.mxu0 0.0
    %2050 = vmatprep.subr.mxu0 0.0
    %2051 = vmatpush1.msra.mxu0 0.0
    %2052 = vmatprep.subr.mxu0 0.0
    %2053 = vmatpush1.msra.mxu0 0.0
    %2054 = vmatprep.subr.mxu0 0.0
    %2055 = vmatpush1.msra.mxu0 0.0
    %2056 = vmatprep.subr.mxu0 0.0
    %2057 = vmatpush1.msra.mxu0 0.0
    %2058 = vmatprep.subr.mxu0 0.0
    %2059 = vmatpush1.msra.mxu0 0.0
    %2060 = vmatprep.subr.mxu0 0.0
    %2061 = vmatpush1.msra.mxu0 0.0
    %2062 = vmatprep.subr.mxu0 0.0
    %2063 = vmatpush1.msra.mxu0 0.0
    %2064 = vmatprep.subr.mxu0 0.0
    %2065 = vmatpush1.msra.mxu0 0.0
    %2066 = vmatprep.subr.mxu0 0.0
    %2067 = vmatpush1.msra.mxu0 0.0
    %2068 = vmatprep.subr.mxu0 0.0
    %2069 = vmatpush1.msra.mxu0 0.0
    %2070 = vmatprep.mubr.f32.mxu0 0.0
    %2071 = vmatmul.mubr.f32.gmra.mrb[0].mxu0 %v2004
    %v2072 = vpop.f32.mrb[0].mxu0
    %v2073 = vadd.f32 0.0, %v2072
    %v2074 = vpop.f32.mrb[0].mxu0
    %2075 = vdwg.mxu0
    %2077 = vrot.lane.b32.xlu0 %v2073, 16
    %v2078 = vpop.permute.xlu0 %2077
    %2080 = vst.msk [vmem:[#allocation2 + $0x8] sm:$0xff] %vm602, %v2078
    %v2081 = vld [vmem:[#allocation2] sm:$0xff]
    %v2082 = vld [vmem:[#allocation2 + $0x8] sm:$0xff]
    %v2083 = vld [vmem:[#allocation3 + $0x110] sm:$0xff]
    %v2084 = vld [vmem:[#allocation3 + $0x118] sm:$0xff]
    %v2085 = vld [vmem:[#allocation3 + $0x120] sm:$0xff]
    %v2086 = vld [vmem:[#allocation3 + $0x128] sm:$0xff]
    %v2087 = vld [vmem:[#allocation3 + $0x130] sm:$0x1]
    %v2088 = vlaneseq
    %v2089 = vshrl.u32 %v2088, 7
    %v2090 = vsub.s32 0, %v2089
    %v2091 = vrot.slane %v2087, %v2090
    %v2093 = vsel %vm134, %v2081, 0
    %v2096 = vsel %vm134, %v2082, 0
    %2098 = vmatprep.subr.mxu0 0.0
    %2099 = vmatpush1.msra.mxu0 %v2083
    %2100 = vmatprep.subr.mxu0 0.0
    %2101 = vmatpush1.msra.mxu0 %v2084
    %2102 = vmatprep.subr.mxu0 0.0
    %2103 = vmatpush1.msra.mxu0 %v2085
    %2104 = vmatprep.subr.mxu0 0.0
    %2105 = vmatpush1.msra.mxu0 %v2086
    %2106 = vmatprep.subr.mxu0 0.0
    %2107 = vmatpush1.msra.mxu0 0.0
    %2108 = vmatprep.subr.mxu0 0.0
    %2109 = vmatpush1.msra.mxu0 0.0
    %2110 = vmatprep.subr.mxu0 0.0
    %2111 = vmatpush1.msra.mxu0 0.0
    %2112 = vmatprep.subr.mxu0 0.0
    %2113 = vmatpush1.msra.mxu0 0.0
    %2114 = vmatprep.subr.mxu0 0.0
    %2115 = vmatpush1.msra.mxu0 0.0
    %2116 = vmatprep.subr.mxu0 0.0
    %2117 = vmatpush1.msra.mxu0 0.0
    %2118 = vmatprep.subr.mxu0 0.0
    %2119 = vmatpush1.msra.mxu0 0.0
    %2120 = vmatprep.subr.mxu0 0.0
    %2121 = vmatpush1.msra.mxu0 0.0
    %2122 = vmatprep.subr.mxu0 0.0
    %2123 = vmatpush1.msra.mxu0 0.0
    %2124 = vmatprep.subr.mxu0 0.0
    %2125 = vmatpush1.msra.mxu0 0.0
    %2126 = vmatprep.subr.mxu0 0.0
    %2127 = vmatpush1.msra.mxu0 0.0
    %2128 = vmatprep.subr.mxu0 0.0
    %2129 = vmatpush1.msra.mxu0 0.0
    %2130 = vmatprep.subr.mxu0 0.0
    %2131 = vmatpush1.msra.mxu0 0.0
    %2132 = vmatprep.subr.mxu0 0.0
    %2133 = vmatpush1.msra.mxu0 0.0
    %2134 = vmatprep.subr.mxu0 0.0
    %2135 = vmatpush1.msra.mxu0 0.0
    %2136 = vmatprep.subr.mxu0 0.0
    %2137 = vmatpush1.msra.mxu0 0.0
    %2138 = vmatprep.subr.mxu0 0.0
    %2139 = vmatpush1.msra.mxu0 0.0
    %2140 = vmatprep.subr.mxu0 0.0
    %2141 = vmatpush1.msra.mxu0 0.0
    %2142 = vmatprep.subr.mxu0 0.0
    %2143 = vmatpush1.msra.mxu0 0.0
    %2144 = vmatprep.subr.mxu0 0.0
    %2145 = vmatpush1.msra.mxu0 0.0
    %2146 = vmatprep.subr.mxu0 0.0
    %2147 = vmatpush1.msra.mxu0 0.0
    %2148 = vmatprep.subr.mxu0 0.0
    %2149 = vmatpush1.msra.mxu0 0.0
    %2150 = vmatprep.subr.mxu0 0.0
    %2151 = vmatpush1.msra.mxu0 0.0
    %2152 = vmatprep.subr.mxu0 0.0
    %2153 = vmatpush1.msra.mxu0 0.0
    %2154 = vmatprep.subr.mxu0 0.0
    %2155 = vmatpush1.msra.mxu0 0.0
    %2156 = vmatprep.subr.mxu0 0.0
    %2157 = vmatpush1.msra.mxu0 0.0
    %2158 = vmatprep.subr.mxu0 0.0
    %2159 = vmatpush1.msra.mxu0 0.0
    %2160 = vmatprep.subr.mxu0 0.0
    %2161 = vmatpush1.msra.mxu0 0.0
    %2162 = vmatprep.mubr.f32.mxu0 0.0
    %2163 = vmatmul.mubr.f32.gmra.mrb[0].mxu0 %v2093
    %v2164 = vpop.f32.mrb[0].mxu0
    %v2165 = vadd.f32 %v2091, %v2164
    %v2166 = vpop.f32.mrb[0].mxu0
    %2167 = vmatprep.mubr.f32.mxu0 0.0
    %2168 = vmatmul.mubr.f32.gmra.mrb[0].mxu0 %v2096
    %v2169 = vpop.f32.mrb[0].mxu0
    %v2170 = vadd.f32 %v2091, %v2169
    %v2171 = vpop.f32.mrb[0].mxu0
    %2172 = vdwg.mxu0
    %v2173 = vadd.f32 %v2165, %v1277
    %v2174 = vadd.f32 %v2170, %v1278
    %v2175 = vsel %vm134, %v2173, 0.0
    %2176 = vadd.xlane.f32.xlu0 %v2175
    %v2177 = vpop.xlane.xlu0 %2176
    %v2178 = vsel %vm134, %v2174, 0.0
    %2179 = vadd.xlane.f32.xlu0 %v2178
    %v2180 = vpop.xlane.xlu0 %2179
    %v2181 = vmul.f32 %v2177, %v141
    %v2182 = vmul.f32 %v2180, %v141
    %v2183 = vsub.f32 %v2173, %v2181
    %v2184 = vsub.f32 %v2174, %v2182
    %v2185 = vmul.f32 %v2183, %v2183
    %v2186 = vmul.f32 %v2184, %v2184
    %v2187 = vsel %vm134, %v2185, 0.0
    %2188 = vadd.xlane.f32.xlu0 %v2187
    %v2189 = vpop.xlane.xlu0 %2188
    %v2190 = vsel %vm134, %v2186, 0.0
    %2191 = vadd.xlane.f32.xlu0 %v2190
    %v2192 = vpop.xlane.xlu0 %2191
    %v2193 = vmul.f32 %v2189, %v141
    %v2194 = vmul.f32 %v2192, %v141
    %v2195 = vadd.f32 %v2193, 1e-05
    %v2196 = vadd.f32 %v2194, 1e-05
    %v2197 = vrsqrt.pop %v2195
    %v2198 = vrsqrt.pop %v2196
    %v2199 = vmul.f32 %v2183, %v2197
    %v2200 = vmul.f32 %v2184, %v2198
    %v2201 = vmul.f32 %v2199, %v1308
    %v2202 = vmul.f32 %v2200, %v1308
    %v2203 = vadd.f32 %v2201, %v1314
    %v2204 = vadd.f32 %v2202, %v1314
    %v2205 = vld [vmem:[#allocation3 + $0x138] sm:$0xff]
    %v2206 = vld [vmem:[#allocation3 + $0x140] sm:$0xff]
    %v2207 = vld [vmem:[#allocation3 + $0x148] sm:$0xff]
    %v2208 = vld [vmem:[#allocation3 + $0x150] sm:$0xff]
    %v2209 = vld [vmem:[#allocation3 + $0x158] sm:$0x1]
    %v2210 = vlaneseq
    %v2211 = vshrl.u32 %v2210, 7
    %v2212 = vsub.s32 0, %v2211
    %v2213 = vrot.slane %v2209, %v2212
    %v2215 = vsel %vm134, %v2203, 0
    %v2218 = vsel %vm134, %v2204, 0
    %2220 = vmatprep.subr.mxu0 0.0
    %2221 = vmatpush1.msra.mxu0 %v2205
    %2222 = vmatprep.subr.mxu0 0.0
    %2223 = vmatpush1.msra.mxu0 %v2206
    %2224 = vmatprep.subr.mxu0 0.0
    %2225 = vmatpush1.msra.mxu0 %v2207
    %2226 = vmatprep.subr.mxu0 0.0
    %2227 = vmatpush1.msra.mxu0 %v2208
    %2228 = vmatprep.subr.mxu0 0.0
    %2229 = vmatpush1.msra.mxu0 0.0
    %2230 = vmatprep.subr.mxu0 0.0
    %2231 = vmatpush1.msra.mxu0 0.0
    %2232 = vmatprep.subr.mxu0 0.0
    %2233 = vmatpush1.msra.mxu0 0.0
    %2234 = vmatprep.subr.mxu0 0.0
    %2235 = vmatpush1.msra.mxu0 0.0
    %2236 = vmatprep.subr.mxu0 0.0
    %2237 = vmatpush1.msra.mxu0 0.0
    %2238 = vmatprep.subr.mxu0 0.0
    %2239 = vmatpush1.msra.mxu0 0.0
    %2240 = vmatprep.subr.mxu0 0.0
    %2241 = vmatpush1.msra.mxu0 0.0
    %2242 = vmatprep.subr.mxu0 0.0
    %2243 = vmatpush1.msra.mxu0 0.0
    %2244 = vmatprep.subr.mxu0 0.0
    %2245 = vmatpush1.msra.mxu0 0.0
    %2246 = vmatprep.subr.mxu0 0.0
    %2247 = vmatpush1.msra.mxu0 0.0
    %2248 = vmatprep.subr.mxu0 0.0
    %2249 = vmatpush1.msra.mxu0 0.0
    %2250 = vmatprep.subr.mxu0 0.0
    %2251 = vmatpush1.msra.mxu0 0.0
    %2252 = vmatprep.subr.mxu0 0.0
    %2253 = vmatpush1.msra.mxu0 0.0
    %2254 = vmatprep.subr.mxu0 0.0
    %2255 = vmatpush1.msra.mxu0 0.0
    %2256 = vmatprep.subr.mxu0 0.0
    %2257 = vmatpush1.msra.mxu0 0.0
    %2258 = vmatprep.subr.mxu0 0.0
    %2259 = vmatpush1.msra.mxu0 0.0
    %2260 = vmatprep.subr.mxu0 0.0
    %2261 = vmatpush1.msra.mxu0 0.0
    %2262 = vmatprep.subr.mxu0 0.0
    %2263 = vmatpush1.msra.mxu0 0.0
    %2264 = vmatprep.subr.mxu0 0.0
    %2265 = vmatpush1.msra.mxu0 0.0
    %2266 = vmatprep.subr.mxu0 0.0
    %2267 = vmatpush1.msra.mxu0 0.0
    %2268 = vmatprep.subr.mxu0 0.0
    %2269 = vmatpush1.msra.mxu0 0.0
    %2270 = vmatprep.subr.mxu0 0.0
    %2271 = vmatpush1.msra.mxu0 0.0
    %2272 = vmatprep.subr.mxu0 0.0
    %2273 = vmatpush1.msra.mxu0 0.0
    %2274 = vmatprep.subr.mxu0 0.0
    %2275 = vmatpush1.msra.mxu0 0.0
    %2276 = vmatprep.subr.mxu0 0.0
    %2277 = vmatpush1.msra.mxu0 0.0
    %2278 = vmatprep.subr.mxu0 0.0
    %2279 = vmatpush1.msra.mxu0 0.0
    %2280 = vmatprep.subr.mxu0 0.0
    %2281 = vmatpush1.msra.mxu0 0.0
    %2282 = vmatprep.subr.mxu0 0.0
    %2283 = vmatpush1.msra.mxu0 0.0
    %2284 = vmatprep.mubr.f32.mxu0 0.0
    %2285 = vmatmul.mubr.f32.gmra.mrb[0].mxu0 %v2215
    %v2286 = vpop.f32.mrb[0].mxu0
    %v2287 = vadd.f32 %v2213, %v2286
    %v2288 = vpop.f32.mrb[0].mxu0
    %2289 = vmatprep.mubr.f32.mxu0 0.0
    %2290 = vmatmul.mubr.f32.gmra.mrb[0].mxu0 %v2218
    %v2291 = vpop.f32.mrb[0].mxu0
    %v2292 = vadd.f32 %v2213, %v2291
    %v2293 = vpop.f32.mrb[0].mxu0
    %2294 = vdwg.mxu0
    %v2295 = vmul.f32 %v2287, %v2287
    %v2296 = vmul.f32 %v2292, %v2292
    %v2297 = vmul.f32 %v2287, %v2295
    %v2298 = vmul.f32 %v2292, %v2296
    %v2299 = vmul.f32 %v2297, 0.044715
    %v2300 = vmul.f32 %v2298, 0.044715
    %v2301 = vadd.f32 %v2287, %v2299
    %v2302 = vadd.f32 %v2292, %v2300
    %v2303 = vmul.f32 %v2301, 0.7978846
    %v2304 = vmul.f32 %v2302, 0.7978846
    %v2305 = vtanh.pop %v2303
    %v2306 = vtanh.pop %v2304
    %v2307 = vadd.f32 %v2305, 1.0
    %v2308 = vadd.f32 %v2306, 1.0
    %v2309 = vmul.f32 %v2307, 0.5
    %v2310 = vmul.f32 %v2308, 0.5
    %v2311 = vmul.f32 %v2287, %v2309
    %v2312 = vmul.f32 %v2292, %v2310
    %v2313 = vld [vmem:[#allocation3 + $0x160] sm:$0xff]
    %v2314 = vld [vmem:[#allocation3 + $0x168] sm:$0xff]
    %v2315 = vld [vmem:[#allocation3 + $0x170] sm:$0xff]
    %v2316 = vld [vmem:[#allocation3 + $0x178] sm:$0xff]
    %v2317 = vld [vmem:[#allocation3 + $0x180] sm:$0xff]
    %v2318 = vld [vmem:[#allocation3 + $0x188] sm:$0xff]
    %v2319 = vld [vmem:[#allocation3 + $0x190] sm:$0xff]
    %v2320 = vld [vmem:[#allocation3 + $0x198] sm:$0xff]
    %v2321 = vld [vmem:[#allocation3 + $0x1a0] sm:$0x1]
    %v2322 = vlaneseq
    %v2323 = vshrl.u32 %v2322, 7
    %v2324 = vsub.s32 0, %v2323
    %v2325 = vrot.slane %v2321, %v2324
    %v2327 = vsel %vm1186, %v2311, 0
    %v2330 = vsel %vm1186, %v2312, 0
    %2332 = vmatprep.subr.mxu0 0.0
    %2333 = vmatpush1.msra.mxu0 %v2313
    %2334 = vmatprep.subr.mxu0 0.0
    %2335 = vmatpush1.msra.mxu0 %v2314
    %2336 = vmatprep.subr.mxu0 0.0
    %2337 = vmatpush1.msra.mxu0 %v2315
    %2338 = vmatprep.subr.mxu0 0.0
    %2339 = vmatpush1.msra.mxu0 %v2316
    %2340 = vmatprep.subr.mxu0 0.0
    %2341 = vmatpush1.msra.mxu0 %v2317
    %2342 = vmatprep.subr.mxu0 0.0
    %2343 = vmatpush1.msra.mxu0 %v2318
    %2344 = vmatprep.subr.mxu0 0.0
    %2345 = vmatpush1.msra.mxu0 %v2319
    %2346 = vmatprep.subr.mxu0 0.0
    %2347 = vmatpush1.msra.mxu0 %v2320
    %2348 = vmatprep.subr.mxu0 0.0
    %2349 = vmatpush1.msra.mxu0 0.0
    %2350 = vmatprep.subr.mxu0 0.0
    %2351 = vmatpush1.msra.mxu0 0.0
    %2352 = vmatprep.subr.mxu0 0.0
    %2353 = vmatpush1.msra.mxu0 0.0
    %2354 = vmatprep.subr.mxu0 0.0
    %2355 = vmatpush1.msra.mxu0 0.0
    %2356 = vmatprep.subr.mxu0 0.0
    %2357 = vmatpush1.msra.mxu0 0.0
    %2358 = vmatprep.subr.mxu0 0.0
    %2359 = vmatpush1.msra.mxu0 0.0
    %2360 = vmatprep.subr.mxu0 0.0
    %2361 = vmatpush1.msra.mxu0 0.0
    %2362 = vmatprep.subr.mxu0 0.0
    %2363 = vmatpush1.msra.mxu0 0.0
    %2364 = vmatprep.subr.mxu0 0.0
    %2365 = vmatpush1.msra.mxu0 0.0
    %2366 = vmatprep.subr.mxu0 0.0
    %2367 = vmatpush1.msra.mxu0 0.0
    %2368 = vmatprep.subr.mxu0 0.0
    %2369 = vmatpush1.msra.mxu0 0.0
    %2370 = vmatprep.subr.mxu0 0.0
    %2371 = vmatpush1.msra.mxu0 0.0
    %2372 = vmatprep.subr.mxu0 0.0
    %2373 = vmatpush1.msra.mxu0 0.0
    %2374 = vmatprep.subr.mxu0 0.0
    %2375 = vmatpush1.msra.mxu0 0.0
    %2376 = vmatprep.subr.mxu0 0.0
    %2377 = vmatpush1.msra.mxu0 0.0
    %2378 = vmatprep.subr.mxu0 0.0
    %2379 = vmatpush1.msra.mxu0 0.0
    %2380 = vmatprep.subr.mxu0 0.0
    %2381 = vmatpush1.msra.mxu0 0.0
    %2382 = vmatprep.subr.mxu0 0.0
    %2383 = vmatpush1.msra.mxu0 0.0
    %2384 = vmatprep.subr.mxu0 0.0
    %2385 = vmatpush1.msra.mxu0 0.0
    %2386 = vmatprep.subr.mxu0 0.0
    %2387 = vmatpush1.msra.mxu0 0.0
    %2388 = vmatprep.subr.mxu0 0.0
    %2389 = vmatpush1.msra.mxu0 0.0
    %2390 = vmatprep.subr.mxu0 0.0
    %2391 = vmatpush1.msra.mxu0 0.0
    %2392 = vmatprep.subr.mxu0 0.0
    %2393 = vmatpush1.msra.mxu0 0.0
    %2394 = vmatprep.subr.mxu0 0.0
    %2395 = vmatpush1.msra.mxu0 0.0
    %2396 = vmatprep.mubr.f32.mxu0 0.0
    %2397 = vmatmul.mubr.f32.gmra.mrb[0].mxu0 %v2327
    %v2398 = vpop.f32.mrb[0].mxu0
    %v2399 = vadd.f32 %v2325, %v2398
    %v2400 = vpop.f32.mrb[0].mxu0
    %2401 = vmatprep.mubr.f32.mxu0 0.0
    %2402 = vmatmul.mubr.f32.gmra.mrb[0].mxu0 %v2330
    %v2403 = vpop.f32.mrb[0].mxu0
    %v2404 = vadd.f32 %v2325, %v2403
    %v2405 = vpop.f32.mrb[0].mxu0
    %2406 = vdwg.mxu0
    %v2407 = vadd.f32 %v2173, %v2399
    %v2408 = vadd.f32 %v2174, %v2404
    %v2409 = vld [vmem:[#allocation3 + $0x1c0] sm:$0x1]
    %v2410 = vld [vmem:[#allocation3 + $0x1c8] sm:$0x1]
    %v2411 = vsel %vm134, %v2407, 0.0
    %2412 = vadd.xlane.f32.xlu0 %v2411
    %v2413 = vpop.xlane.xlu0 %2412
    %v2414 = vsel %vm134, %v2408, 0.0
    %2415 = vadd.xlane.f32.xlu0 %v2414
    %v2416 = vpop.xlane.xlu0 %2415
    %v2417 = vmul.f32 %v2413, %v141
    %v2418 = vmul.f32 %v2416, %v141
    %v2419 = vsub.f32 %v2407, %v2417
    %v2420 = vsub.f32 %v2408, %v2418
    %v2421 = vmul.f32 %v2419, %v2419
    %v2422 = vmul.f32 %v2420, %v2420
    %v2423 = vsel %vm134, %v2421, 0.0
    %2424 = vadd.xlane.f32.xlu0 %v2423
    %v2425 = vpop.xlane.xlu0 %2424
    %v2426 = vsel %vm134, %v2422, 0.0
    %2427 = vadd.xlane.f32.xlu0 %v2426
    %v2428 = vpop.xlane.xlu0 %2427
    %v2429 = vmul.f32 %v2425, %v141
    %v2430 = vmul.f32 %v2428, %v141
    %v2431 = vadd.f32 %v2429, 1e-05
    %v2432 = vadd.f32 %v2430, 1e-05
    %v2433 = vrsqrt.pop %v2431
    %v2434 = vrsqrt.pop %v2432
    %v2435 = vmul.f32 %v2419, %v2433
    %v2436 = vmul.f32 %v2420, %v2434
    %v2437 = vlaneseq
    %v2438 = vshrl.u32 %v2437, 7
    %v2439 = vsub.s32 0, %v2438
    %v2440 = vrot.slane %v2409, %v2439
    %v2441 = vmul.f32 %v2435, %v2440
    %v2442 = vmul.f32 %v2436, %v2440
    %v2443 = vlaneseq
    %v2444 = vshrl.u32 %v2443, 7
    %v2445 = vsub.s32 0, %v2444
    %v2446 = vrot.slane %v2410, %v2445
    %v2447 = vadd.f32 %v2441, %v2446
    %v2448 = vadd.f32 %v2442, %v2446
    %v2449 = vld [vmem:[#allocation3 + $0x1d0] sm:$0xff]
    %v2450 = vld [vmem:[#allocation3 + $0x1d8] sm:$0xff]
    %v2451 = vld [vmem:[#allocation3 + $0x1e0] sm:$0xff]
    %v2452 = vld [vmem:[#allocation3 + $0x1e8] sm:$0xff]
    %v2453 = vld [vmem:[#allocation3 + $0x1f0] sm:$0x1]
    %v2454 = vlaneseq
    %v2455 = vshrl.u32 %v2454, 7
    %v2456 = vsub.s32 0, %v2455
    %v2457 = vrot.slane %v2453, %v2456
    %v2459 = vsel %vm134, %v2447, 0
    %v2462 = vsel %vm134, %v2448, 0
    %2464 = vmatprep.subr.mxu0 0.0
    %2465 = vmatpush1.msra.mxu0 %v2449
    %2466 = vmatprep.subr.mxu0 0.0
    %2467 = vmatpush1.msra.mxu0 %v2450
    %2468 = vmatprep.subr.mxu0 0.0
    %2469 = vmatpush1.msra.mxu0 %v2451
    %2470 = vmatprep.subr.mxu0 0.0
    %2471 = vmatpush1.msra.mxu0 %v2452
    %2472 = vmatprep.subr.mxu0 0.0
    %2473 = vmatpush1.msra.mxu0 0.0
    %2474 = vmatprep.subr.mxu0 0.0
    %2475 = vmatpush1.msra.mxu0 0.0
    %2476 = vmatprep.subr.mxu0 0.0
    %2477 = vmatpush1.msra.mxu0 0.0
    %2478 = vmatprep.subr.mxu0 0.0
    %2479 = vmatpush1.msra.mxu0 0.0
    %2480 = vmatprep.subr.mxu0 0.0
    %2481 = vmatpush1.msra.mxu0 0.0
    %2482 = vmatprep.subr.mxu0 0.0
    %2483 = vmatpush1.msra.mxu0 0.0
    %2484 = vmatprep.subr.mxu0 0.0
    %2485 = vmatpush1.msra.mxu0 0.0
    %2486 = vmatprep.subr.mxu0 0.0
    %2487 = vmatpush1.msra.mxu0 0.0
    %2488 = vmatprep.subr.mxu0 0.0
    %2489 = vmatpush1.msra.mxu0 0.0
    %2490 = vmatprep.subr.mxu0 0.0
    %2491 = vmatpush1.msra.mxu0 0.0
    %2492 = vmatprep.subr.mxu0 0.0
    %2493 = vmatpush1.msra.mxu0 0.0
    %2494 = vmatprep.subr.mxu0 0.0
    %2495 = vmatpush1.msra.mxu0 0.0
    %2496 = vmatprep.subr.mxu0 0.0
    %2497 = vmatpush1.msra.mxu0 0.0
    %2498 = vmatprep.subr.mxu0 0.0
    %2499 = vmatpush1.msra.mxu0 0.0
    %2500 = vmatprep.subr.mxu0 0.0
    %2501 = vmatpush1.msra.mxu0 0.0
    %2502 = vmatprep.subr.mxu0 0.0
    %2503 = vmatpush1.msra.mxu0 0.0
    %2504 = vmatprep.subr.mxu0 0.0
    %2505 = vmatpush1.msra.mxu0 0.0
    %2506 = vmatprep.subr.mxu0 0.0
    %2507 = vmatpush1.msra.mxu0 0.0
    %2508 = vmatprep.subr.mxu0 0.0
    %2509 = vmatpush1.msra.mxu0 0.0
    %2510 = vmatprep.subr.mxu0 0.0
    %2511 = vmatpush1.msra.mxu0 0.0
    %2512 = vmatprep.subr.mxu0 0.0
    %2513 = vmatpush1.msra.mxu0 0.0
    %2514 = vmatprep.subr.mxu0 0.0
    %2515 = vmatpush1.msra.mxu0 0.0
    %2516 = vmatprep.subr.mxu0 0.0
    %2517 = vmatpush1.msra.mxu0 0.0
    %2518 = vmatprep.subr.mxu0 0.0
    %2519 = vmatpush1.msra.mxu0 0.0
    %2520 = vmatprep.subr.mxu0 0.0
    %2521 = vmatpush1.msra.mxu0 0.0
    %2522 = vmatprep.subr.mxu0 0.0
    %2523 = vmatpush1.msra.mxu0 0.0
    %2524 = vmatprep.subr.mxu0 0.0
    %2525 = vmatpush1.msra.mxu0 0.0
    %2526 = vmatprep.subr.mxu0 0.0
    %2527 = vmatpush1.msra.mxu0 0.0
    %2528 = vmatprep.mubr.f32.mxu0 0.0
    %2529 = vmatmul.mubr.f32.gmra.mrb[0].mxu0 %v2459
    %v2530 = vpop.f32.mrb[0].mxu0
    %v2531 = vadd.f32 %v2457, %v2530
    %v2532 = vpop.f32.mrb[0].mxu0
    %2533 = vmatprep.mubr.f32.mxu0 0.0
    %2534 = vmatmul.mubr.f32.gmra.mrb[0].mxu0 %v2462
    %v2535 = vpop.f32.mrb[0].mxu0
    %v2536 = vadd.f32 %v2457, %v2535
    %v2537 = vpop.f32.mrb[0].mxu0
    %2538 = vdwg.mxu0
    %v2539 = vsel %vm39, %v2531, -inf
    %v2540 = vrot.slane %v2539, 4
    %v2541 = vmax.f32 %v2539, %v2540
    %v2542 = vrot.slane %v2541, 2
    %v2543 = vmax.f32 %v2541, %v2542
    %v2544 = vrot.slane %v2543, 1
    %v2545 = vmax.f32 %v2543, %v2544
    %v2546 = vsub.f32 %v2531, %v2545
    %v2547 = vmul.f32 %v2546, 1.442695
    %v2548 = vpow.pop %v2547
    %v2549 = vsel %vm39, %v2548, 0.0
    %v2550 = vrot.slane %v2549, 4
    %v2551 = vadd.f32 %v2549, %v2550
    %v2552 = vrot.slane %v2551, 2
    %v2553 = vadd.f32 %v2551, %v2552
    %v2554 = vrot.slane %v2553, 1
    %v2555 = vadd.f32 %v2553, %v2554
    %v2556 = vrcp.pop %v2555
    %v2557 = vmul.f32 %v2548, %v2556
    %2558 = vst.msk [vmem:[%s2] sm:$0xff] %vm39, %v2557
    %v2559 = vsel %vm39, %v2536, -inf
    %v2560 = vrot.slane %v2559, 4
    %v2561 = vmax.f32 %v2559, %v2560
    %v2562 = vrot.slane %v2561, 2
    %v2563 = vmax.f32 %v2561, %v2562
    %v2564 = vrot.slane %v2563, 1
    %v2565 = vmax.f32 %v2563, %v2564
    %v2566 = vsub.f32 %v2536, %v2565
    %v2567 = vmul.f32 %v2566, 1.442695
    %v2568 = vpow.pop %v2567
    %v2569 = vsel %vm39, %v2568, 0.0
    %v2570 = vrot.slane %v2569, 4
    %v2571 = vadd.f32 %v2569, %v2570
    %v2572 = vrot.slane %v2571, 2
    %v2573 = vadd.f32 %v2571, %v2572
    %v2574 = vrot.slane %v2573, 1
    %v2575 = vadd.f32 %v2573, %v2574
    %v2576 = vrcp.pop %v2575
    %v2577 = vmul.f32 %v2568, %v2576
    %2578 = vst.msk [vmem:[%s2 + $0x8] sm:$0xff] %vm39, %v2577
    // Predicated region
    $region14: #{tpu_custom_call.1} parent=1 // pred_check
      _
    $region15: #{tpu_custom_call.1} parent=1 // pred_check_branch
      %2580 = sbr.rel (0) target = $region17
    $region16: #{tpu_custom_call.1} parent=1 // pred_region
      _
    $region17: #{tpu_custom_call.1} parent=1 // pred_fallthru
      _
    // Predicated region
    $region18: #{tpu_custom_call.1} parent=1 // pred_check
      _
    $region19: #{tpu_custom_call.1} parent=1 // pred_check_branch
      %2582 = sbr.rel (0) target = $region21
    $region20: #{tpu_custom_call.1} parent=1 // pred_region
      _
    $region21: #{tpu_custom_call.1} parent=1 // pred_fallthru
      _
    %2583 = vsyncpa [#allocation4], 1

</llo_original>
